<compile_context>
chip_gen: v7x
topology: tpu7x:2x2x1
jax: 0.10.0
libtpu: 0.0.40
codegen_flags: <defaults>
</compile_context>

<pallas_src>
import jax
import jax.numpy as jnp
from jax import lax
from jax.experimental import pallas as pl
from jax.experimental.pallas import tpu as pltpu

HIDDEN = 150  # nn.Conv2d(in=1, out=150, kernel=3, padding=1)


def _plan(n, h, w):
    """Choose (nb, hw_pad, g): images per grid step (sublane axis, multiple of
    8) and the 128-padded flattened plane width (lane axis)."""
    hw = h * w
    hw_pad = ((hw + 127) // 128) * 128          # lane axis: multiple of 128
    # ~8K plane elements per grid step: good DMA size, comfortably inside the
    # scoped-VMEM defaults of v5e/v6e/v7x together with the (150, hw_pad) hid.
    nb = max(1, 8192 // hw_pad)
    nb = max(8, (nb // 8) * 8)                  # sublane axis: multiple of 8
    n8 = ((n + 7) // 8) * 8
    nb = min(nb, max(8, (n8 // 16) * 8))        # keep >=2 grid steps if batch allows
    g = (n + nb - 1) // nb
    return nb, hw_pad, g


def _make_kernel(nb, h, w, hw_pad, k):
    f32 = jnp.float32
    neg = -1.0e30  # behaves like -inf for the max-pool implicit padding

    def kernel(occ_ref, rew_ref, bnd_ref, wc_ref, wp_ref, out_ref, s_ref, p_ref):
        x0 = occ_ref[...]                      # (nb, hw_pad) occupancy planes
        r = rew_ref[...]                       # (nb, hw_pad) reward planes

        # Boundary masks: one flattened (1, hw_pad) row broadcast over the nb
        # images stacked on the sublane axis (broadcast hoisted out of the loops).
        full = (nb, hw_pad)
        at_top = jnp.broadcast_to(bnd_ref[0:1, :] != 0.0, full)
        at_bot = jnp.broadcast_to(bnd_ref[1:2, :] != 0.0, full)
        at_lft = jnp.broadcast_to(bnd_ref[2:3, :] != 0.0, full)
        at_rgt = jnp.broadcast_to(bnd_ref[3:4, :] != 0.0, full)

        def shift(val, dr, dc, pad):
            """val at (row+dr, col+dc) of the same image; `pad` outside it.
            Shifts are taken mod hw_pad so they are always non-negative; the
            roll rotates each sublane row (image) independently."""
            y = val
            if dr != 0:
                y = pltpu.roll(y, (-dr * w) % hw_pad, axis=1)
                y = jnp.where(at_bot if dr > 0 else at_top, pad, y)
            if dc != 0:
                y = pltpu.roll(y, (-dc) % hw_pad, axis=1)
                y = jnp.where(at_rgt if dc > 0 else at_lft, pad, y)
            return y

        # ---- relu(conv3x3 + bias) -> 1x1 conv -> sigmoid as two MXU matmuls ----
        # 9 shifted copies of the occupancy plane (dense rolls over all images),
        # bias folded in as a 10th all-ones tap.
        taps = [shift(x0, dr, dc, 0.0) for dr in (-1, 0, 1) for dc in (-1, 0, 1)]
        s_ref[9:10, :] = jnp.ones((1, hw_pad), f32)      # bias tap (constant)
        for b in range(nb):                               # static, nb <= 32
            for t in range(9):
                s_ref[t:t + 1, :] = taps[t][b:b + 1, :]
            hid = jnp.dot(wc_ref[...], s_ref[...],
                          preferred_element_type=f32)     # (150, hw_pad)
            hid = jnp.maximum(hid, 0.0)
            pp = jnp.dot(wp_ref[...], hid,
                         preferred_element_type=f32)      # (1, hw_pad)
            p_ref[b:b + 1, :] = 1.0 / (1.0 + jnp.exp(-pp))  # exact sigmoid
        p = p_ref[...]                                    # (nb, hw_pad)

        # ---- k-step value propagation: 3x3 / stride-1 / pad=-inf max pool ----
        def maxpool3x3(v):
            m = jnp.maximum(v, shift(v, -1, 0, neg))
            m = jnp.maximum(m, shift(v, 1, 0, neg))
            m2 = jnp.maximum(m, shift(m, 0, -1, neg))
            return jnp.maximum(m2, shift(m, 0, 1, neg))

        def body(_, v):
            return jnp.maximum(v, r + p * (maxpool3x3(v) - r))

        v = lax.fori_loop(0, k, body, r, unroll=True)

        out_ref[...] = jnp.where(x0 > 0.49, v, -1.0)

    return kernel


def mvprop_forward(image, w_conv, b_conv, w_p, k):
    n, c, h, w = image.shape
    assert c >= 2
    f32 = jnp.float32
    hw = h * w
    nb, hw_pad, g = _plan(n, h, w)
    n_pad = g * nb

    # Channel split + flatten are pure reshapes; pad with zeros only if needed.
    occ = image[:, 0].astype(f32).reshape(n, hw)
    rew = image[:, 1].astype(f32).reshape(n, hw)
    if (n_pad, hw_pad) != (n, hw):
        pad = ((0, n_pad - n), (0, hw_pad - hw))
        occ = jnp.pad(occ, pad)
        rew = jnp.pad(rew, pad)

    # Conv weights as a (150, 10) tile: 9 taps + folded bias column.
    wc = jnp.concatenate(
        [w_conv.reshape(HIDDEN, 9), b_conv.reshape(HIDDEN, 1)], axis=1).astype(f32)
    wp = w_p.reshape(1, HIDDEN).astype(f32)

    # Flattened boundary masks (rows: top, bottom, left, right), computed once
    # on the host so no vector integer div/mod is needed inside the kernel.
    lane = jnp.arange(hw_pad, dtype=jnp.int32)
    row_i, col_i = lane // w, lane % w
    bnd = jnp.stack(
        [row_i == 0, row_i == h - 1, col_i == 0, col_i == w - 1]).astype(f32)

    kernel = _make_kernel(nb, h, w, hw_pad, k)
    out = pl.pallas_call(
        kernel,
        out_shape=jax.ShapeDtypeStruct((n_pad, hw_pad), f32),
        grid=(g,),
        in_specs=[
            pl.BlockSpec((nb, hw_pad), lambda i: (i, 0)),    # occupancy planes
            pl.BlockSpec((nb, hw_pad), lambda i: (i, 0)),    # reward planes
            pl.BlockSpec((4, hw_pad), lambda i: (0, 0)),     # boundary masks
            pl.BlockSpec((HIDDEN, 10), lambda i: (0, 0)),    # conv weight + bias
            pl.BlockSpec((1, HIDDEN), lambda i: (0, 0)),     # 1x1 conv weight
        ],
        out_specs=pl.BlockSpec((nb, hw_pad), lambda i: (i, 0)),
        scratch_shapes=[
            pltpu.VMEM((10, hw_pad), f32),   # per-image tap stack (MXU operand)
            pltpu.VMEM((nb, hw_pad), f32),   # assembled p plane
        ],
        compiler_params=pltpu.CompilerParams(
            dimension_semantics=("parallel",),
            vmem_limit_bytes=32 * 1024 * 1024,
        ),
    )(occ, rew, bnd, wc, wp)

    # Unpack (n_pad, hw_pad) -> (n, 1, h, w): cheap slice + reshape.
    return out[:n, :hw].reshape(n, 1, h, w)


if __name__ == "__main__":
    key = jax.random.PRNGKey(0)
    k_img, k_w, k_b, k_p = jax.random.split(key, 4)

    N, C, H, W = 2, 2, 16, 16
    K = 8

    # channel 0: occupancy-like map in {0,1}; channel 1: reward map in [-1, 1]
    occ = (jax.random.uniform(k_img, (N, 1, H, W)) > 0.3).astype(jnp.float32)
    rew = jax.random.uniform(jax.random.fold_in(k_img, 1), (N, 1, H, W),
                             minval=-1.0, maxval=1.0)
    image = jnp.concatenate([occ, rew], axis=1)  # (N, 2, H, W)

    # Deterministic synthetic parameters (shapes from the module __init__).
    w_conv = 0.1 * jax.random.normal(k_w, (HIDDEN, 1, 3, 3), dtype=jnp.float32)
    b_conv = 0.1 * jax.random.normal(k_b, (HIDDEN,), dtype=jnp.float32)
    w_p = 0.1 * jax.random.normal(k_p, (1, HIDDEN, 1, 1), dtype=jnp.float32)

    out = mvprop_forward(image, w_conv, b_conv, w_p, K)
    out = jax.block_until_ready(out)

    assert out.shape == (N, 1, H, W) and out.dtype == jnp.float32
    assert bool(jnp.all(jnp.isfinite(out)))
    # Blocked cells are exactly -1; free cells stay inside [min(r), max(r)] ⊆ [-1, 1].
    assert bool(jnp.all(out >= -1.001)) and bool(jnp.all(out <= 1.001))
    print("KERNEL_OK")
</pallas_src>

<mosaic_0001>
module attributes {stable_mosaic.version = 11 : i64} {
  func.func @kernel(%arg0: i32, %arg1: memref<8x256xf32, #tpu.memory_space<vmem>>, %arg2: memref<8x256xf32, #tpu.memory_space<vmem>>, %arg3: memref<4x256xf32, #tpu.memory_space<vmem>>, %arg4: memref<150x10xf32, #tpu.memory_space<vmem>>, %arg5: memref<1x150xf32, #tpu.memory_space<vmem>>, %arg6: memref<8x256xf32, #tpu.memory_space<vmem>>, %arg7: memref<10x256xf32, #tpu.memory_space<vmem>>, %arg8: memref<8x256xf32, #tpu.memory_space<vmem>>) attributes {dimension_semantics = [#tpu.dimension_semantics<parallel>], iteration_bounds = array<i64: 1>, scalar_prefetch = 0 : i64, scratch_operands = 2 : i64, tpu.core_type = #tpu.core_type<tc>, window_params = [{transform_indices = @transform_0, window_bounds = array<i64: 8, 256>}, {transform_indices = @transform_1, window_bounds = array<i64: 8, 256>}, {pipeline_mode = #tpu.pipeline_mode<synchronous>, transform_indices = @transform_2, window_bounds = array<i64: 4, 256>}, {pipeline_mode = #tpu.pipeline_mode<synchronous>, transform_indices = @transform_3, window_bounds = array<i64: 150, 10>}, {pipeline_mode = #tpu.pipeline_mode<synchronous>, transform_indices = @transform_4, window_bounds = array<i64: 1, 150>}, {transform_indices = @transform_5, window_bounds = array<i64: 8, 256>}]} {
    %c0 = arith.constant 0 : index
    %c0_0 = arith.constant 0 : index
    %0 = vector.load %arg1[%c0, %c0_0] : memref<8x256xf32, #tpu.memory_space<vmem>>, vector<8x256xf32>
    %c0_1 = arith.constant 0 : index
    %c0_2 = arith.constant 0 : index
    %1 = vector.load %arg2[%c0_1, %c0_2] : memref<8x256xf32, #tpu.memory_space<vmem>>, vector<8x256xf32>
    %c0_3 = arith.constant 0 : index
    %c0_4 = arith.constant 0 : index
    %2 = vector.load %arg3[%c0_3, %c0_4] : memref<4x256xf32, #tpu.memory_space<vmem>>, vector<1x256xf32>
    %cst = arith.constant 0.000000e+00 : f32
    %3 = vector.broadcast %cst : f32 to vector<1x256xf32>
    %4 = arith.cmpf one, %2, %3 : vector<1x256xf32>
    %5 = vector.shape_cast %4 : vector<1x256xi1> to vector<1x256xi1>
    %6 = vector.broadcast %5 : vector<1x256xi1> to vector<8x256xi1>
    %c1 = arith.constant 1 : index
    %c0_5 = arith.constant 0 : index
    %7 = vector.load %arg3[%c1, %c0_5] : memref<4x256xf32, #tpu.memory_space<vmem>>, vector<1x256xf32>
    %cst_6 = arith.constant 0.000000e+00 : f32
    %8 = vector.broadcast %cst_6 : f32 to vector<1x256xf32>
    %9 = arith.cmpf one, %7, %8 : vector<1x256xf32>
    %10 = vector.shape_cast %9 : vector<1x256xi1> to vector<1x256xi1>
    %11 = vector.broadcast %10 : vector<1x256xi1> to vector<8x256xi1>
    %c2 = arith.constant 2 : index
    %c0_7 = arith.constant 0 : index
    %12 = vector.load %arg3[%c2, %c0_7] : memref<4x256xf32, #tpu.memory_space<vmem>>, vector<1x256xf32>
    %cst_8 = arith.constant 0.000000e+00 : f32
    %13 = vector.broadcast %cst_8 : f32 to vector<1x256xf32>
    %14 = arith.cmpf one, %12, %13 : vector<1x256xf32>
    %15 = vector.shape_cast %14 : vector<1x256xi1> to vector<1x256xi1>
    %16 = vector.broadcast %15 : vector<1x256xi1> to vector<8x256xi1>
    %c3 = arith.constant 3 : index
    %c0_9 = arith.constant 0 : index
    %17 = vector.load %arg3[%c3, %c0_9] : memref<4x256xf32, #tpu.memory_space<vmem>>, vector<1x256xf32>
    %cst_10 = arith.constant 0.000000e+00 : f32
    %18 = vector.broadcast %cst_10 : f32 to vector<1x256xf32>
    %19 = arith.cmpf one, %17, %18 : vector<1x256xf32>
    %20 = vector.shape_cast %19 : vector<1x256xi1> to vector<1x256xi1>
    %21 = vector.broadcast %20 : vector<1x256xi1> to vector<8x256xi1>
    %c16_i32 = arith.constant 16 : i32
    %22 = tpu.dynamic_rotate %0 by %c16_i32 dim 1 : vector<8x256xf32>, i32 -> vector<8x256xf32>
    %cst_11 = arith.constant 0.000000e+00 : f32
    %23 = vector.broadcast %cst_11 : f32 to vector<8x256xf32>
    %24 = arith.select %6, %23, %22 : vector<8x256xi1>, vector<8x256xf32>
    %c1_i32 = arith.constant 1 : i32
    %25 = tpu.dynamic_rotate %24 by %c1_i32 dim 1 : vector<8x256xf32>, i32 -> vector<8x256xf32>
    %cst_12 = arith.constant 0.000000e+00 : f32
    %26 = vector.broadcast %cst_12 : f32 to vector<8x256xf32>
    %27 = arith.select %16, %26, %25 : vector<8x256xi1>, vector<8x256xf32>
    %c16_i32_13 = arith.constant 16 : i32
    %28 = tpu.dynamic_rotate %0 by %c16_i32_13 dim 1 : vector<8x256xf32>, i32 -> vector<8x256xf32>
    %cst_14 = arith.constant 0.000000e+00 : f32
    %29 = vector.broadcast %cst_14 : f32 to vector<8x256xf32>
    %30 = arith.select %6, %29, %28 : vector<8x256xi1>, vector<8x256xf32>
    %c16_i32_15 = arith.constant 16 : i32
    %31 = tpu.dynamic_rotate %0 by %c16_i32_15 dim 1 : vector<8x256xf32>, i32 -> vector<8x256xf32>
    %cst_16 = arith.constant 0.000000e+00 : f32
    %32 = vector.broadcast %cst_16 : f32 to vector<8x256xf32>
    %33 = arith.select %6, %32, %31 : vector<8x256xi1>, vector<8x256xf32>
    %c255_i32 = arith.constant 255 : i32
    %34 = tpu.dynamic_rotate %33 by %c255_i32 dim 1 : vector<8x256xf32>, i32 -> vector<8x256xf32>
    %cst_17 = arith.constant 0.000000e+00 : f32
    %35 = vector.broadcast %cst_17 : f32 to vector<8x256xf32>
    %36 = arith.select %21, %35, %34 : vector<8x256xi1>, vector<8x256xf32>
    %c1_i32_18 = arith.constant 1 : i32
    %37 = tpu.dynamic_rotate %0 by %c1_i32_18 dim 1 : vector<8x256xf32>, i32 -> vector<8x256xf32>
    %cst_19 = arith.constant 0.000000e+00 : f32
    %38 = vector.broadcast %cst_19 : f32 to vector<8x256xf32>
    %39 = arith.select %16, %38, %37 : vector<8x256xi1>, vector<8x256xf32>
    %c255_i32_20 = arith.constant 255 : i32
    %40 = tpu.dynamic_rotate %0 by %c255_i32_20 dim 1 : vector<8x256xf32>, i32 -> vector<8x256xf32>
    %cst_21 = arith.constant 0.000000e+00 : f32
    %41 = vector.broadcast %cst_21 : f32 to vector<8x256xf32>
    %42 = arith.select %21, %41, %40 : vector<8x256xi1>, vector<8x256xf32>
    %c240_i32 = arith.constant 240 : i32
    %43 = tpu.dynamic_rotate %0 by %c240_i32 dim 1 : vector<8x256xf32>, i32 -> vector<8x256xf32>
    %cst_22 = arith.constant 0.000000e+00 : f32
    %44 = vector.broadcast %cst_22 : f32 to vector<8x256xf32>
    %45 = arith.select %11, %44, %43 : vector<8x256xi1>, vector<8x256xf32>
    %c1_i32_23 = arith.constant 1 : i32
    %46 = tpu.dynamic_rotate %45 by %c1_i32_23 dim 1 : vector<8x256xf32>, i32 -> vector<8x256xf32>
    %cst_24 = arith.constant 0.000000e+00 : f32
    %47 = vector.broadcast %cst_24 : f32 to vector<8x256xf32>
    %48 = arith.select %16, %47, %46 : vector<8x256xi1>, vector<8x256xf32>
    %c240_i32_25 = arith.constant 240 : i32
    %49 = tpu.dynamic_rotate %0 by %c240_i32_25 dim 1 : vector<8x256xf32>, i32 -> vector<8x256xf32>
    %cst_26 = arith.constant 0.000000e+00 : f32
    %50 = vector.broadcast %cst_26 : f32 to vector<8x256xf32>
    %51 = arith.select %11, %50, %49 : vector<8x256xi1>, vector<8x256xf32>
    %c240_i32_27 = arith.constant 240 : i32
    %52 = tpu.dynamic_rotate %0 by %c240_i32_27 dim 1 : vector<8x256xf32>, i32 -> vector<8x256xf32>
    %cst_28 = arith.constant 0.000000e+00 : f32
    %53 = vector.broadcast %cst_28 : f32 to vector<8x256xf32>
    %54 = arith.select %11, %53, %52 : vector<8x256xi1>, vector<8x256xf32>
    %c255_i32_29 = arith.constant 255 : i32
    %55 = tpu.dynamic_rotate %54 by %c255_i32_29 dim 1 : vector<8x256xf32>, i32 -> vector<8x256xf32>
    %cst_30 = arith.constant 0.000000e+00 : f32
    %56 = vector.broadcast %cst_30 : f32 to vector<8x256xf32>
    %57 = arith.select %21, %56, %55 : vector<8x256xi1>, vector<8x256xf32>
    %cst_31 = arith.constant 1.000000e+00 : f32
    %58 = vector.broadcast %cst_31 : f32 to vector<1x256xf32>
    %c9 = arith.constant 9 : index
    %c0_32 = arith.constant 0 : index
    %59 = vector.load %arg7[%c9, %c0_32] : memref<10x256xf32, #tpu.memory_space<vmem>>, vector<1x256xf32>
    tpu.vector_store %arg7[%c9, %c0_32], %58 {strides = array<i32>} : memref<10x256xf32, #tpu.memory_space<vmem>>, vector<1x256xf32>,
    %60 = vector.extract_strided_slice %27 {offsets = [0, 0], sizes = [1, 256], strides = [1, 1]} : vector<8x256xf32> to vector<1x256xf32>
    %c0_33 = arith.constant 0 : index
    %c0_34 = arith.constant 0 : index
    %61 = vector.load %arg7[%c0_33, %c0_34] : memref<10x256xf32, #tpu.memory_space<vmem>>, vector<1x256xf32>
    tpu.vector_store %arg7[%c0_33, %c0_34], %60 {strides = array<i32>} : memref<10x256xf32, #tpu.memory_space<vmem>>, vector<1x256xf32>,
    %62 = vector.extract_strided_slice %30 {offsets = [0, 0], sizes = [1, 256], strides = [1, 1]} : vector<8x256xf32> to vector<1x256xf32>
    %c1_35 = arith.constant 1 : index
    %c0_36 = arith.constant 0 : index
    %63 = vector.load %arg7[%c1_35, %c0_36] : memref<10x256xf32, #tpu.memory_space<vmem>>, vector<1x256xf32>
    tpu.vector_store %arg7[%c1_35, %c0_36], %62 {strides = array<i32>} : memref<10x256xf32, #tpu.memory_space<vmem>>, vector<1x256xf32>,
    %64 = vector.extract_strided_slice %36 {offsets = [0, 0], sizes = [1, 256], strides = [1, 1]} : vector<8x256xf32> to vector<1x256xf32>
    %c2_37 = arith.constant 2 : index
    %c0_38 = arith.constant 0 : index
    %65 = vector.load %arg7[%c2_37, %c0_38] : memref<10x256xf32, #tpu.memory_space<vmem>>, vector<1x256xf32>
    tpu.vector_store %arg7[%c2_37, %c0_38], %64 {strides = array<i32>} : memref<10x256xf32, #tpu.memory_space<vmem>>, vector<1x256xf32>,
    %66 = vector.extract_strided_slice %39 {offsets = [0, 0], sizes = [1, 256], strides = [1, 1]} : vector<8x256xf32> to vector<1x256xf32>
    %c3_39 = arith.constant 3 : index
    %c0_40 = arith.constant 0 : index
    %67 = vector.load %arg7[%c3_39, %c0_40] : memref<10x256xf32, #tpu.memory_space<vmem>>, vector<1x256xf32>
    tpu.vector_store %arg7[%c3_39, %c0_40], %66 {strides = array<i32>} : memref<10x256xf32, #tpu.memory_space<vmem>>, vector<1x256xf32>,
    %68 = vector.extract_strided_slice %0 {offsets = [0, 0], sizes = [1, 256], strides = [1, 1]} : vector<8x256xf32> to vector<1x256xf32>
    %c4 = arith.constant 4 : index
    %c0_41 = arith.constant 0 : index
    %69 = vector.load %arg7[%c4, %c0_41] : memref<10x256xf32, #tpu.memory_space<vmem>>, vector<1x256xf32>
    tpu.vector_store %arg7[%c4, %c0_41], %68 {strides = array<i32>} : memref<10x256xf32, #tpu.memory_space<vmem>>, vector<1x256xf32>,
    %70 = vector.extract_strided_slice %42 {offsets = [0, 0], sizes = [1, 256], strides = [1, 1]} : vector<8x256xf32> to vector<1x256xf32>
    %c5 = arith.constant 5 : index
    %c0_42 = arith.constant 0 : index
    %71 = vector.load %arg7[%c5, %c0_42] : memref<10x256xf32, #tpu.memory_space<vmem>>, vector<1x256xf32>
    tpu.vector_store %arg7[%c5, %c0_42], %70 {strides = array<i32>} : memref<10x256xf32, #tpu.memory_space<vmem>>, vector<1x256xf32>,
    %72 = vector.extract_strided_slice %48 {offsets = [0, 0], sizes = [1, 256], strides = [1, 1]} : vector<8x256xf32> to vector<1x256xf32>
    %c6 = arith.constant 6 : index
    %c0_43 = arith.constant 0 : index
    %73 = vector.load %arg7[%c6, %c0_43] : memref<10x256xf32, #tpu.memory_space<vmem>>, vector<1x256xf32>
    tpu.vector_store %arg7[%c6, %c0_43], %72 {strides = array<i32>} : memref<10x256xf32, #tpu.memory_space<vmem>>, vector<1x256xf32>,
    %74 = vector.extract_strided_slice %51 {offsets = [0, 0], sizes = [1, 256], strides = [1, 1]} : vector<8x256xf32> to vector<1x256xf32>
    %c7 = arith.constant 7 : index
    %c0_44 = arith.constant 0 : index
    %75 = vector.load %arg7[%c7, %c0_44] : memref<10x256xf32, #tpu.memory_space<vmem>>, vector<1x256xf32>
    tpu.vector_store %arg7[%c7, %c0_44], %74 {strides = array<i32>} : memref<10x256xf32, #tpu.memory_space<vmem>>, vector<1x256xf32>,
    %76 = vector.extract_strided_slice %57 {offsets = [0, 0], sizes = [1, 256], strides = [1, 1]} : vector<8x256xf32> to vector<1x256xf32>
    %c8 = arith.constant 8 : index
    %c0_45 = arith.constant 0 : index
    %77 = vector.load %arg7[%c8, %c0_45] : memref<10x256xf32, #tpu.memory_space<vmem>>, vector<1x256xf32>
    tpu.vector_store %arg7[%c8, %c0_45], %76 {strides = array<i32>} : memref<10x256xf32, #tpu.memory_space<vmem>>, vector<1x256xf32>,
    %c0_46 = arith.constant 0 : index
    %c0_47 = arith.constant 0 : index
    %78 = vector.load %arg4[%c0_46, %c0_47] : memref<150x10xf32, #tpu.memory_space<vmem>>, vector<150x10xf32>
    %c0_48 = arith.constant 0 : index
    %c0_49 = arith.constant 0 : index
    %79 = vector.load %arg7[%c0_48, %c0_49] : memref<10x256xf32, #tpu.memory_space<vmem>>, vector<10x256xf32>
    %cst_50 = arith.constant dense<0.000000e+00> : vector<150x256xf32>
    %80 = tpu.matmul %78, %79, %cst_50 {dimension_numbers = #tpu.dot_dimension_numbers<[1], [0], [0], [1], [0, 0, 1, 1], [], []>} : vector<150x10xf32>, vector<10x256xf32>, vector<150x256xf32> -> vector<150x256xf32>
    %cst_51 = arith.constant 0.000000e+00 : f32
    %81 = vector.broadcast %cst_51 : f32 to vector<150x256xf32>
    %82 = arith.maximumf %80, %81 : vector<150x256xf32>
    %c0_52 = arith.constant 0 : index
    %c0_53 = arith.constant 0 : index
    %83 = vector.load %arg5[%c0_52, %c0_53] : memref<1x150xf32, #tpu.memory_space<vmem>>, vector<1x150xf32>
    %cst_54 = arith.constant dense<0.000000e+00> : vector<1x256xf32>
    %84 = tpu.matmul %83, %82, %cst_54 {dimension_numbers = #tpu.dot_dimension_numbers<[1], [0], [0], [1], [0, 0, 1, 1], [], []>} : vector<1x150xf32>, vector<150x256xf32>, vector<1x256xf32> -> vector<1x256xf32>
    %cst_55 = arith.constant 0.000000e+00 : f32
    %85 = vector.broadcast %cst_55 : f32 to vector<1x256xf32>
    %86 = arith.subf %85, %84 : vector<1x256xf32>
    %87 = math.exp %86 : vector<1x256xf32>
    %cst_56 = arith.constant 1.000000e+00 : f32
    %88 = vector.broadcast %cst_56 : f32 to vector<1x256xf32>
    %89 = arith.addf %88, %87 : vector<1x256xf32>
    %cst_57 = arith.constant 1.000000e+00 : f32
    %90 = vector.broadcast %cst_57 : f32 to vector<1x256xf32>
    %91 = arith.divf %90, %89 : vector<1x256xf32>
    %c0_58 = arith.constant 0 : index
    %c0_59 = arith.constant 0 : index
    %92 = vector.load %arg8[%c0_58, %c0_59] : memref<8x256xf32, #tpu.memory_space<vmem>>, vector<1x256xf32>
    tpu.vector_store %arg8[%c0_58, %c0_59], %91 {strides = array<i32>} : memref<8x256xf32, #tpu.memory_space<vmem>>, vector<1x256xf32>,
    %93 = vector.extract_strided_slice %27 {offsets = [1, 0], sizes = [1, 256], strides = [1, 1]} : vector<8x256xf32> to vector<1x256xf32>
    %c0_60 = arith.constant 0 : index
    %c0_61 = arith.constant 0 : index
    %94 = vector.load %arg7[%c0_60, %c0_61] : memref<10x256xf32, #tpu.memory_space<vmem>>, vector<1x256xf32>
    tpu.vector_store %arg7[%c0_60, %c0_61], %93 {strides = array<i32>} : memref<10x256xf32, #tpu.memory_space<vmem>>, vector<1x256xf32>,
    %95 = vector.extract_strided_slice %30 {offsets = [1, 0], sizes = [1, 256], strides = [1, 1]} : vector<8x256xf32> to vector<1x256xf32>
    %c1_62 = arith.constant 1 : index
    %c0_63 = arith.constant 0 : index
    %96 = vector.load %arg7[%c1_62, %c0_63] : memref<10x256xf32, #tpu.memory_space<vmem>>, vector<1x256xf32>
    tpu.vector_store %arg7[%c1_62, %c0_63], %95 {strides = array<i32>} : memref<10x256xf32, #tpu.memory_space<vmem>>, vector<1x256xf32>,
    %97 = vector.extract_strided_slice %36 {offsets = [1, 0], sizes = [1, 256], strides = [1, 1]} : vector<8x256xf32> to vector<1x256xf32>
    %c2_64 = arith.constant 2 : index
    %c0_65 = arith.constant 0 : index
    %98 = vector.load %arg7[%c2_64, %c0_65] : memref<10x256xf32, #tpu.memory_space<vmem>>, vector<1x256xf32>
    tpu.vector_store %arg7[%c2_64, %c0_65], %97 {strides = array<i32>} : memref<10x256xf32, #tpu.memory_space<vmem>>, vector<1x256xf32>,
    %99 = vector.extract_strided_slice %39 {offsets = [1, 0], sizes = [1, 256], strides = [1, 1]} : vector<8x256xf32> to vector<1x256xf32>
    %c3_66 = arith.constant 3 : index
    %c0_67 = arith.constant 0 : index
    %100 = vector.load %arg7[%c3_66, %c0_67] : memref<10x256xf32, #tpu.memory_space<vmem>>, vector<1x256xf32>
    tpu.vector_store %arg7[%c3_66, %c0_67], %99 {strides = array<i32>} : memref<10x256xf32, #tpu.memory_space<vmem>>, vector<1x256xf32>,
    %101 = vector.extract_strided_slice %0 {offsets = [1, 0], sizes = [1, 256], strides = [1, 1]} : vector<8x256xf32> to vector<1x256xf32>
    %c4_68 = arith.constant 4 : index
    %c0_69 = arith.constant 0 : index
    %102 = vector.load %arg7[%c4_68, %c0_69] : memref<10x256xf32, #tpu.memory_space<vmem>>, vector<1x256xf32>
    tpu.vector_store %arg7[%c4_68, %c0_69], %101 {strides = array<i32>} : memref<10x256xf32, #tpu.memory_space<vmem>>, vector<1x256xf32>,
    %103 = vector.extract_strided_slice %42 {offsets = [1, 0], sizes = [1, 256], strides = [1, 1]} : vector<8x256xf32> to vector<1x256xf32>
    %c5_70 = arith.constant 5 : index
    %c0_71 = arith.constant 0 : index
    %104 = vector.load %arg7[%c5_70, %c0_71] : memref<10x256xf32, #tpu.memory_space<vmem>>, vector<1x256xf32>
    tpu.vector_store %arg7[%c5_70, %c0_71], %103 {strides = array<i32>} : memref<10x256xf32, #tpu.memory_space<vmem>>, vector<1x256xf32>,
    %105 = vector.extract_strided_slice %48 {offsets = [1, 0], sizes = [1, 256], strides = [1, 1]} : vector<8x256xf32> to vector<1x256xf32>
    %c6_72 = arith.constant 6 : index
    %c0_73 = arith.constant 0 : index
    %106 = vector.load %arg7[%c6_72, %c0_73] : memref<10x256xf32, #tpu.memory_space<vmem>>, vector<1x256xf32>
    tpu.vector_store %arg7[%c6_72, %c0_73], %105 {strides = array<i32>} : memref<10x256xf32, #tpu.memory_space<vmem>>, vector<1x256xf32>,
    %107 = vector.extract_strided_slice %51 {offsets = [1, 0], sizes = [1, 256], strides = [1, 1]} : vector<8x256xf32> to vector<1x256xf32>
    %c7_74 = arith.constant 7 : index
    %c0_75 = arith.constant 0 : index
    %108 = vector.load %arg7[%c7_74, %c0_75] : memref<10x256xf32, #tpu.memory_space<vmem>>, vector<1x256xf32>
    tpu.vector_store %arg7[%c7_74, %c0_75], %107 {strides = array<i32>} : memref<10x256xf32, #tpu.memory_space<vmem>>, vector<1x256xf32>,
    %109 = vector.extract_strided_slice %57 {offsets = [1, 0], sizes = [1, 256], strides = [1, 1]} : vector<8x256xf32> to vector<1x256xf32>
    %c8_76 = arith.constant 8 : index
    %c0_77 = arith.constant 0 : index
    %110 = vector.load %arg7[%c8_76, %c0_77] : memref<10x256xf32, #tpu.memory_space<vmem>>, vector<1x256xf32>
    tpu.vector_store %arg7[%c8_76, %c0_77], %109 {strides = array<i32>} : memref<10x256xf32, #tpu.memory_space<vmem>>, vector<1x256xf32>,
    %c0_78 = arith.constant 0 : index
    %c0_79 = arith.constant 0 : index
    %111 = vector.load %arg4[%c0_78, %c0_79] : memref<150x10xf32, #tpu.memory_space<vmem>>, vector<150x10xf32>
    %c0_80 = arith.constant 0 : index
    %c0_81 = arith.constant 0 : index
    %112 = vector.load %arg7[%c0_80, %c0_81] : memref<10x256xf32, #tpu.memory_space<vmem>>, vector<10x256xf32>
    %cst_82 = arith.constant dense<0.000000e+00> : vector<150x256xf32>
    %113 = tpu.matmul %111, %112, %cst_82 {dimension_numbers = #tpu.dot_dimension_numbers<[1], [0], [0], [1], [0, 0, 1, 1], [], []>} : vector<150x10xf32>, vector<10x256xf32>, vector<150x256xf32> -> vector<150x256xf32>
    %cst_83 = arith.constant 0.000000e+00 : f32
    %114 = vector.broadcast %cst_83 : f32 to vector<150x256xf32>
    %115 = arith.maximumf %113, %114 : vector<150x256xf32>
    %c0_84 = arith.constant 0 : index
    %c0_85 = arith.constant 0 : index
    %116 = vector.load %arg5[%c0_84, %c0_85] : memref<1x150xf32, #tpu.memory_space<vmem>>, vector<1x150xf32>
    %cst_86 = arith.constant dense<0.000000e+00> : vector<1x256xf32>
    %117 = tpu.matmul %116, %115, %cst_86 {dimension_numbers = #tpu.dot_dimension_numbers<[1], [0], [0], [1], [0, 0, 1, 1], [], []>} : vector<1x150xf32>, vector<150x256xf32>, vector<1x256xf32> -> vector<1x256xf32>
    %cst_87 = arith.constant 0.000000e+00 : f32
    %118 = vector.broadcast %cst_87 : f32 to vector<1x256xf32>
    %119 = arith.subf %118, %117 : vector<1x256xf32>
    %120 = math.exp %119 : vector<1x256xf32>
    %cst_88 = arith.constant 1.000000e+00 : f32
    %121 = vector.broadcast %cst_88 : f32 to vector<1x256xf32>
    %122 = arith.addf %121, %120 : vector<1x256xf32>
    %cst_89 = arith.constant 1.000000e+00 : f32
    %123 = vector.broadcast %cst_89 : f32 to vector<1x256xf32>
    %124 = arith.divf %123, %122 : vector<1x256xf32>
    %c1_90 = arith.constant 1 : index
    %c0_91 = arith.constant 0 : index
    %125 = vector.load %arg8[%c1_90, %c0_91] : memref<8x256xf32, #tpu.memory_space<vmem>>, vector<1x256xf32>
    tpu.vector_store %arg8[%c1_90, %c0_91], %124 {strides = array<i32>} : memref<8x256xf32, #tpu.memory_space<vmem>>, vector<1x256xf32>,
    %126 = vector.extract_strided_slice %27 {offsets = [2, 0], sizes = [1, 256], strides = [1, 1]} : vector<8x256xf32> to vector<1x256xf32>
    %c0_92 = arith.constant 0 : index
    %c0_93 = arith.constant 0 : index
    %127 = vector.load %arg7[%c0_92, %c0_93] : memref<10x256xf32, #tpu.memory_space<vmem>>, vector<1x256xf32>
    tpu.vector_store %arg7[%c0_92, %c0_93], %126 {strides = array<i32>} : memref<10x256xf32, #tpu.memory_space<vmem>>, vector<1x256xf32>,
    %128 = vector.extract_strided_slice %30 {offsets = [2, 0], sizes = [1, 256], strides = [1, 1]} : vector<8x256xf32> to vector<1x256xf32>
    %c1_94 = arith.constant 1 : index
    %c0_95 = arith.constant 0 : index
    %129 = vector.load %arg7[%c1_94, %c0_95] : memref<10x256xf32, #tpu.memory_space<vmem>>, vector<1x256xf32>
    tpu.vector_store %arg7[%c1_94, %c0_95], %128 {strides = array<i32>} : memref<10x256xf32, #tpu.memory_space<vmem>>, vector<1x256xf32>,
    %130 = vector.extract_strided_slice %36 {offsets = [2, 0], sizes = [1, 256], strides = [1, 1]} : vector<8x256xf32> to vector<1x256xf32>
    %c2_96 = arith.constant 2 : index
    %c0_97 = arith.constant 0 : index
    %131 = vector.load %arg7[%c2_96, %c0_97] : memref<10x256xf32, #tpu.memory_space<vmem>>, vector<1x256xf32>
    tpu.vector_store %arg7[%c2_96, %c0_97], %130 {strides = array<i32>} : memref<10x256xf32, #tpu.memory_space<vmem>>, vector<1x256xf32>,
    %132 = vector.extract_strided_slice %39 {offsets = [2, 0], sizes = [1, 256], strides = [1, 1]} : vector<8x256xf32> to vector<1x256xf32>
    %c3_98 = arith.constant 3 : index
    %c0_99 = arith.constant 0 : index
    %133 = vector.load %arg7[%c3_98, %c0_99] : memref<10x256xf32, #tpu.memory_space<vmem>>, vector<1x256xf32>
    tpu.vector_store %arg7[%c3_98, %c0_99], %132 {strides = array<i32>} : memref<10x256xf32, #tpu.memory_space<vmem>>, vector<1x256xf32>,
    %134 = vector.extract_strided_slice %0 {offsets = [2, 0], sizes = [1, 256], strides = [1, 1]} : vector<8x256xf32> to vector<1x256xf32>
    %c4_100 = arith.constant 4 : index
    %c0_101 = arith.constant 0 : index
    %135 = vector.load %arg7[%c4_100, %c0_101] : memref<10x256xf32, #tpu.memory_space<vmem>>, vector<1x256xf32>
    tpu.vector_store %arg7[%c4_100, %c0_101], %134 {strides = array<i32>} : memref<10x256xf32, #tpu.memory_space<vmem>>, vector<1x256xf32>,
    %136 = vector.extract_strided_slice %42 {offsets = [2, 0], sizes = [1, 256], strides = [1, 1]} : vector<8x256xf32> to vector<1x256xf32>
    %c5_102 = arith.constant 5 : index
    %c0_103 = arith.constant 0 : index
    %137 = vector.load %arg7[%c5_102, %c0_103] : memref<10x256xf32, #tpu.memory_space<vmem>>, vector<1x256xf32>
    tpu.vector_store %arg7[%c5_102, %c0_103], %136 {strides = array<i32>} : memref<10x256xf32, #tpu.memory_space<vmem>>, vector<1x256xf32>,
    %138 = vector.extract_strided_slice %48 {offsets = [2, 0], sizes = [1, 256], strides = [1, 1]} : vector<8x256xf32> to vector<1x256xf32>
    %c6_104 = arith.constant 6 : index
    %c0_105 = arith.constant 0 : index
    %139 = vector.load %arg7[%c6_104, %c0_105] : memref<10x256xf32, #tpu.memory_space<vmem>>, vector<1x256xf32>
    tpu.vector_store %arg7[%c6_104, %c0_105], %138 {strides = array<i32>} : memref<10x256xf32, #tpu.memory_space<vmem>>, vector<1x256xf32>,
    %140 = vector.extract_strided_slice %51 {offsets = [2, 0], sizes = [1, 256], strides = [1, 1]} : vector<8x256xf32> to vector<1x256xf32>
    %c7_106 = arith.constant 7 : index
    %c0_107 = arith.constant 0 : index
    %141 = vector.load %arg7[%c7_106, %c0_107] : memref<10x256xf32, #tpu.memory_space<vmem>>, vector<1x256xf32>
    tpu.vector_store %arg7[%c7_106, %c0_107], %140 {strides = array<i32>} : memref<10x256xf32, #tpu.memory_space<vmem>>, vector<1x256xf32>,
    %142 = vector.extract_strided_slice %57 {offsets = [2, 0], sizes = [1, 256], strides = [1, 1]} : vector<8x256xf32> to vector<1x256xf32>
    %c8_108 = arith.constant 8 : index
    %c0_109 = arith.constant 0 : index
    %143 = vector.load %arg7[%c8_108, %c0_109] : memref<10x256xf32, #tpu.memory_space<vmem>>, vector<1x256xf32>
    tpu.vector_store %arg7[%c8_108, %c0_109], %142 {strides = array<i32>} : memref<10x256xf32, #tpu.memory_space<vmem>>, vector<1x256xf32>,
    %c0_110 = arith.constant 0 : index
    %c0_111 = arith.constant 0 : index
    %144 = vector.load %arg4[%c0_110, %c0_111] : memref<150x10xf32, #tpu.memory_space<vmem>>, vector<150x10xf32>
    %c0_112 = arith.constant 0 : index
    %c0_113 = arith.constant 0 : index
    %145 = vector.load %arg7[%c0_112, %c0_113] : memref<10x256xf32, #tpu.memory_space<vmem>>, vector<10x256xf32>
    %cst_114 = arith.constant dense<0.000000e+00> : vector<150x256xf32>
    %146 = tpu.matmul %144, %145, %cst_114 {dimension_numbers = #tpu.dot_dimension_numbers<[1], [0], [0], [1], [0, 0, 1, 1], [], []>} : vector<150x10xf32>, vector<10x256xf32>, vector<150x256xf32> -> vector<150x256xf32>
    %cst_115 = arith.constant 0.000000e+00 : f32
    %147 = vector.broadcast %cst_115 : f32 to vector<150x256xf32>
    %148 = arith.maximumf %146, %147 : vector<150x256xf32>
    %c0_116 = arith.constant 0 : index
    %c0_117 = arith.constant 0 : index
    %149 = vector.load %arg5[%c0_116, %c0_117] : memref<1x150xf32, #tpu.memory_space<vmem>>, vector<1x150xf32>
    %cst_118 = arith.constant dense<0.000000e+00> : vector<1x256xf32>
    %150 = tpu.matmul %149, %148, %cst_118 {dimension_numbers = #tpu.dot_dimension_numbers<[1], [0], [0], [1], [0, 0, 1, 1], [], []>} : vector<1x150xf32>, vector<150x256xf32>, vector<1x256xf32> -> vector<1x256xf32>
    %cst_119 = arith.constant 0.000000e+00 : f32
    %151 = vector.broadcast %cst_119 : f32 to vector<1x256xf32>
    %152 = arith.subf %151, %150 : vector<1x256xf32>
    %153 = math.exp %152 : vector<1x256xf32>
    %cst_120 = arith.constant 1.000000e+00 : f32
    %154 = vector.broadcast %cst_120 : f32 to vector<1x256xf32>
    %155 = arith.addf %154, %153 : vector<1x256xf32>
    %cst_121 = arith.constant 1.000000e+00 : f32
    %156 = vector.broadcast %cst_121 : f32 to vector<1x256xf32>
    %157 = arith.divf %156, %155 : vector<1x256xf32>
    %c2_122 = arith.constant 2 : index
    %c0_123 = arith.constant 0 : index
    %158 = vector.load %arg8[%c2_122, %c0_123] : memref<8x256xf32, #tpu.memory_space<vmem>>, vector<1x256xf32>
    tpu.vector_store %arg8[%c2_122, %c0_123], %157 {strides = array<i32>} : memref<8x256xf32, #tpu.memory_space<vmem>>, vector<1x256xf32>,
    %159 = vector.extract_strided_slice %27 {offsets = [3, 0], sizes = [1, 256], strides = [1, 1]} : vector<8x256xf32> to vector<1x256xf32>
    %c0_124 = arith.constant 0 : index
    %c0_125 = arith.constant 0 : index
    %160 = vector.load %arg7[%c0_124, %c0_125] : memref<10x256xf32, #tpu.memory_space<vmem>>, vector<1x256xf32>
    tpu.vector_store %arg7[%c0_124, %c0_125], %159 {strides = array<i32>} : memref<10x256xf32, #tpu.memory_space<vmem>>, vector<1x256xf32>,
    %161 = vector.extract_strided_slice %30 {offsets = [3, 0], sizes = [1, 256], strides = [1, 1]} : vector<8x256xf32> to vector<1x256xf32>
    %c1_126 = arith.constant 1 : index
    %c0_127 = arith.constant 0 : index
    %162 = vector.load %arg7[%c1_126, %c0_127] : memref<10x256xf32, #tpu.memory_space<vmem>>, vector<1x256xf32>
    tpu.vector_store %arg7[%c1_126, %c0_127], %161 {strides = array<i32>} : memref<10x256xf32, #tpu.memory_space<vmem>>, vector<1x256xf32>,
    %163 = vector.extract_strided_slice %36 {offsets = [3, 0], sizes = [1, 256], strides = [1, 1]} : vector<8x256xf32> to vector<1x256xf32>
    %c2_128 = arith.constant 2 : index
    %c0_129 = arith.constant 0 : index
    %164 = vector.load %arg7[%c2_128, %c0_129] : memref<10x256xf32, #tpu.memory_space<vmem>>, vector<1x256xf32>
    tpu.vector_store %arg7[%c2_128, %c0_129], %163 {strides = array<i32>} : memref<10x256xf32, #tpu.memory_space<vmem>>, vector<1x256xf32>,
    %165 = vector.extract_strided_slice %39 {offsets = [3, 0], sizes = [1, 256], strides = [1, 1]} : vector<8x256xf32> to vector<1x256xf32>
    %c3_130 = arith.constant 3 : index
    %c0_131 = arith.constant 0 : index
    %166 = vector.load %arg7[%c3_130, %c0_131] : memref<10x256xf32, #tpu.memory_space<vmem>>, vector<1x256xf32>
    tpu.vector_store %arg7[%c3_130, %c0_131], %165 {strides = array<i32>} : memref<10x256xf32, #tpu.memory_space<vmem>>, vector<1x256xf32>,
    %167 = vector.extract_strided_slice %0 {offsets = [3, 0], sizes = [1, 256], strides = [1, 1]} : vector<8x256xf32> to vector<1x256xf32>
    %c4_132 = arith.constant 4 : index
    %c0_133 = arith.constant 0 : index
    %168 = vector.load %arg7[%c4_132, %c0_133] : memref<10x256xf32, #tpu.memory_space<vmem>>, vector<1x256xf32>
    tpu.vector_store %arg7[%c4_132, %c0_133], %167 {strides = array<i32>} : memref<10x256xf32, #tpu.memory_space<vmem>>, vector<1x256xf32>,
    %169 = vector.extract_strided_slice %42 {offsets = [3, 0], sizes = [1, 256], strides = [1, 1]} : vector<8x256xf32> to vector<1x256xf32>
    %c5_134 = arith.constant 5 : index
    %c0_135 = arith.constant 0 : index
    %170 = vector.load %arg7[%c5_134, %c0_135] : memref<10x256xf32, #tpu.memory_space<vmem>>, vector<1x256xf32>
    tpu.vector_store %arg7[%c5_134, %c0_135], %169 {strides = array<i32>} : memref<10x256xf32, #tpu.memory_space<vmem>>, vector<1x256xf32>,
    %171 = vector.extract_strided_slice %48 {offsets = [3, 0], sizes = [1, 256], strides = [1, 1]} : vector<8x256xf32> to vector<1x256xf32>
    %c6_136 = arith.constant 6 : index
    %c0_137 = arith.constant 0 : index
    %172 = vector.load %arg7[%c6_136, %c0_137] : memref<10x256xf32, #tpu.memory_space<vmem>>, vector<1x256xf32>
    tpu.vector_store %arg7[%c6_136, %c0_137], %171 {strides = array<i32>} : memref<10x256xf32, #tpu.memory_space<vmem>>, vector<1x256xf32>,
    %173 = vector.extract_strided_slice %51 {offsets = [3, 0], sizes = [1, 256], strides = [1, 1]} : vector<8x256xf32> to vector<1x256xf32>
    %c7_138 = arith.constant 7 : index
    %c0_139 = arith.constant 0 : index
    %174 = vector.load %arg7[%c7_138, %c0_139] : memref<10x256xf32, #tpu.memory_space<vmem>>, vector<1x256xf32>
    tpu.vector_store %arg7[%c7_138, %c0_139], %173 {strides = array<i32>} : memref<10x256xf32, #tpu.memory_space<vmem>>, vector<1x256xf32>,
    %175 = vector.extract_strided_slice %57 {offsets = [3, 0], sizes = [1, 256], strides = [1, 1]} : vector<8x256xf32> to vector<1x256xf32>
    %c8_140 = arith.constant 8 : index
    %c0_141 = arith.constant 0 : index
    %176 = vector.load %arg7[%c8_140, %c0_141] : memref<10x256xf32, #tpu.memory_space<vmem>>, vector<1x256xf32>
    tpu.vector_store %arg7[%c8_140, %c0_141], %175 {strides = array<i32>} : memref<10x256xf32, #tpu.memory_space<vmem>>, vector<1x256xf32>,
    %c0_142 = arith.constant 0 : index
    %c0_143 = arith.constant 0 : index
    %177 = vector.load %arg4[%c0_142, %c0_143] : memref<150x10xf32, #tpu.memory_space<vmem>>, vector<150x10xf32>
    %c0_144 = arith.constant 0 : index
    %c0_145 = arith.constant 0 : index
    %178 = vector.load %arg7[%c0_144, %c0_145] : memref<10x256xf32, #tpu.memory_space<vmem>>, vector<10x256xf32>
    %cst_146 = arith.constant dense<0.000000e+00> : vector<150x256xf32>
    %179 = tpu.matmul %177, %178, %cst_146 {dimension_numbers = #tpu.dot_dimension_numbers<[1], [0], [0], [1], [0, 0, 1, 1], [], []>} : vector<150x10xf32>, vector<10x256xf32>, vector<150x256xf32> -> vector<150x256xf32>
    %cst_147 = arith.constant 0.000000e+00 : f32
    %180 = vector.broadcast %cst_147 : f32 to vector<150x256xf32>
    %181 = arith.maximumf %179, %180 : vector<150x256xf32>
    %c0_148 = arith.constant 0 : index
    %c0_149 = arith.constant 0 : index
    %182 = vector.load %arg5[%c0_148, %c0_149] : memref<1x150xf32, #tpu.memory_space<vmem>>, vector<1x150xf32>
    %cst_150 = arith.constant dense<0.000000e+00> : vector<1x256xf32>
    %183 = tpu.matmul %182, %181, %cst_150 {dimension_numbers = #tpu.dot_dimension_numbers<[1], [0], [0], [1], [0, 0, 1, 1], [], []>} : vector<1x150xf32>, vector<150x256xf32>, vector<1x256xf32> -> vector<1x256xf32>
    %cst_151 = arith.constant 0.000000e+00 : f32
    %184 = vector.broadcast %cst_151 : f32 to vector<1x256xf32>
    %185 = arith.subf %184, %183 : vector<1x256xf32>
    %186 = math.exp %185 : vector<1x256xf32>
    %cst_152 = arith.constant 1.000000e+00 : f32
    %187 = vector.broadcast %cst_152 : f32 to vector<1x256xf32>
    %188 = arith.addf %187, %186 : vector<1x256xf32>
    %cst_153 = arith.constant 1.000000e+00 : f32
    %189 = vector.broadcast %cst_153 : f32 to vector<1x256xf32>
    %190 = arith.divf %189, %188 : vector<1x256xf32>
    %c3_154 = arith.constant 3 : index
    %c0_155 = arith.constant 0 : index
    %191 = vector.load %arg8[%c3_154, %c0_155] : memref<8x256xf32, #tpu.memory_space<vmem>>, vector<1x256xf32>
    tpu.vector_store %arg8[%c3_154, %c0_155], %190 {strides = array<i32>} : memref<8x256xf32, #tpu.memory_space<vmem>>, vector<1x256xf32>,
    %192 = vector.extract_strided_slice %27 {offsets = [4, 0], sizes = [1, 256], strides = [1, 1]} : vector<8x256xf32> to vector<1x256xf32>
    %c0_156 = arith.constant 0 : index
    %c0_157 = arith.constant 0 : index
    %193 = vector.load %arg7[%c0_156, %c0_157] : memref<10x256xf32, #tpu.memory_space<vmem>>, vector<1x256xf32>
    tpu.vector_store %arg7[%c0_156, %c0_157], %192 {strides = array<i32>} : memref<10x256xf32, #tpu.memory_space<vmem>>, vector<1x256xf32>,
    %194 = vector.extract_strided_slice %30 {offsets = [4, 0], sizes = [1, 256], strides = [1, 1]} : vector<8x256xf32> to vector<1x256xf32>
    %c1_158 = arith.constant 1 : index
    %c0_159 = arith.constant 0 : index
    %195 = vector.load %arg7[%c1_158, %c0_159] : memref<10x256xf32, #tpu.memory_space<vmem>>, vector<1x256xf32>
    tpu.vector_store %arg7[%c1_158, %c0_159], %194 {strides = array<i32>} : memref<10x256xf32, #tpu.memory_space<vmem>>, vector<1x256xf32>,
    %196 = vector.extract_strided_slice %36 {offsets = [4, 0], sizes = [1, 256], strides = [1, 1]} : vector<8x256xf32> to vector<1x256xf32>
    %c2_160 = arith.constant 2 : index
    %c0_161 = arith.constant 0 : index
    %197 = vector.load %arg7[%c2_160, %c0_161] : memref<10x256xf32, #tpu.memory_space<vmem>>, vector<1x256xf32>
    tpu.vector_store %arg7[%c2_160, %c0_161], %196 {strides = array<i32>} : memref<10x256xf32, #tpu.memory_space<vmem>>, vector<1x256xf32>,
    %198 = vector.extract_strided_slice %39 {offsets = [4, 0], sizes = [1, 256], strides = [1, 1]} : vector<8x256xf32> to vector<1x256xf32>
    %c3_162 = arith.constant 3 : index
    %c0_163 = arith.constant 0 : index
    %199 = vector.load %arg7[%c3_162, %c0_163] : memref<10x256xf32, #tpu.memory_space<vmem>>, vector<1x256xf32>
    tpu.vector_store %arg7[%c3_162, %c0_163], %198 {strides = array<i32>} : memref<10x256xf32, #tpu.memory_space<vmem>>, vector<1x256xf32>,
    %200 = vector.extract_strided_slice %0 {offsets = [4, 0], sizes = [1, 256], strides = [1, 1]} : vector<8x256xf32> to vector<1x256xf32>
    %c4_164 = arith.constant 4 : index
    %c0_165 = arith.constant 0 : index
    %201 = vector.load %arg7[%c4_164, %c0_165] : memref<10x256xf32, #tpu.memory_space<vmem>>, vector<1x256xf32>
    tpu.vector_store %arg7[%c4_164, %c0_165], %200 {strides = array<i32>} : memref<10x256xf32, #tpu.memory_space<vmem>>, vector<1x256xf32>,
    %202 = vector.extract_strided_slice %42 {offsets = [4, 0], sizes = [1, 256], strides = [1, 1]} : vector<8x256xf32> to vector<1x256xf32>
    %c5_166 = arith.constant 5 : index
    %c0_167 = arith.constant 0 : index
    %203 = vector.load %arg7[%c5_166, %c0_167] : memref<10x256xf32, #tpu.memory_space<vmem>>, vector<1x256xf32>
    tpu.vector_store %arg7[%c5_166, %c0_167], %202 {strides = array<i32>} : memref<10x256xf32, #tpu.memory_space<vmem>>, vector<1x256xf32>,
    %204 = vector.extract_strided_slice %48 {offsets = [4, 0], sizes = [1, 256], strides = [1, 1]} : vector<8x256xf32> to vector<1x256xf32>
    %c6_168 = arith.constant 6 : index
    %c0_169 = arith.constant 0 : index
    %205 = vector.load %arg7[%c6_168, %c0_169] : memref<10x256xf32, #tpu.memory_space<vmem>>, vector<1x256xf32>
    tpu.vector_store %arg7[%c6_168, %c0_169], %204 {strides = array<i32>} : memref<10x256xf32, #tpu.memory_space<vmem>>, vector<1x256xf32>,
    %206 = vector.extract_strided_slice %51 {offsets = [4, 0], sizes = [1, 256], strides = [1, 1]} : vector<8x256xf32> to vector<1x256xf32>
    %c7_170 = arith.constant 7 : index
    %c0_171 = arith.constant 0 : index
    %207 = vector.load %arg7[%c7_170, %c0_171] : memref<10x256xf32, #tpu.memory_space<vmem>>, vector<1x256xf32>
    tpu.vector_store %arg7[%c7_170, %c0_171], %206 {strides = array<i32>} : memref<10x256xf32, #tpu.memory_space<vmem>>, vector<1x256xf32>,
    %208 = vector.extract_strided_slice %57 {offsets = [4, 0], sizes = [1, 256], strides = [1, 1]} : vector<8x256xf32> to vector<1x256xf32>
    %c8_172 = arith.constant 8 : index
    %c0_173 = arith.constant 0 : index
    %209 = vector.load %arg7[%c8_172, %c0_173] : memref<10x256xf32, #tpu.memory_space<vmem>>, vector<1x256xf32>
    tpu.vector_store %arg7[%c8_172, %c0_173], %208 {strides = array<i32>} : memref<10x256xf32, #tpu.memory_space<vmem>>, vector<1x256xf32>,
    %c0_174 = arith.constant 0 : index
    %c0_175 = arith.constant 0 : index
    %210 = vector.load %arg4[%c0_174, %c0_175] : memref<150x10xf32, #tpu.memory_space<vmem>>, vector<150x10xf32>
    %c0_176 = arith.constant 0 : index
    %c0_177 = arith.constant 0 : index
    %211 = vector.load %arg7[%c0_176, %c0_177] : memref<10x256xf32, #tpu.memory_space<vmem>>, vector<10x256xf32>
    %cst_178 = arith.constant dense<0.000000e+00> : vector<150x256xf32>
    %212 = tpu.matmul %210, %211, %cst_178 {dimension_numbers = #tpu.dot_dimension_numbers<[1], [0], [0], [1], [0, 0, 1, 1], [], []>} : vector<150x10xf32>, vector<10x256xf32>, vector<150x256xf32> -> vector<150x256xf32>
    %cst_179 = arith.constant 0.000000e+00 : f32
    %213 = vector.broadcast %cst_179 : f32 to vector<150x256xf32>
    %214 = arith.maximumf %212, %213 : vector<150x256xf32>
    %c0_180 = arith.constant 0 : index
    %c0_181 = arith.constant 0 : index
    %215 = vector.load %arg5[%c0_180, %c0_181] : memref<1x150xf32, #tpu.memory_space<vmem>>, vector<1x150xf32>
    %cst_182 = arith.constant dense<0.000000e+00> : vector<1x256xf32>
    %216 = tpu.matmul %215, %214, %cst_182 {dimension_numbers = #tpu.dot_dimension_numbers<[1], [0], [0], [1], [0, 0, 1, 1], [], []>} : vector<1x150xf32>, vector<150x256xf32>, vector<1x256xf32> -> vector<1x256xf32>
    %cst_183 = arith.constant 0.000000e+00 : f32
    %217 = vector.broadcast %cst_183 : f32 to vector<1x256xf32>
    %218 = arith.subf %217, %216 : vector<1x256xf32>
    %219 = math.exp %218 : vector<1x256xf32>
    %cst_184 = arith.constant 1.000000e+00 : f32
    %220 = vector.broadcast %cst_184 : f32 to vector<1x256xf32>
    %221 = arith.addf %220, %219 : vector<1x256xf32>
    %cst_185 = arith.constant 1.000000e+00 : f32
    %222 = vector.broadcast %cst_185 : f32 to vector<1x256xf32>
    %223 = arith.divf %222, %221 : vector<1x256xf32>
    %c4_186 = arith.constant 4 : index
    %c0_187 = arith.constant 0 : index
    %224 = vector.load %arg8[%c4_186, %c0_187] : memref<8x256xf32, #tpu.memory_space<vmem>>, vector<1x256xf32>
    tpu.vector_store %arg8[%c4_186, %c0_187], %223 {strides = array<i32>} : memref<8x256xf32, #tpu.memory_space<vmem>>, vector<1x256xf32>,
    %225 = vector.extract_strided_slice %27 {offsets = [5, 0], sizes = [1, 256], strides = [1, 1]} : vector<8x256xf32> to vector<1x256xf32>
    %c0_188 = arith.constant 0 : index
    %c0_189 = arith.constant 0 : index
    %226 = vector.load %arg7[%c0_188, %c0_189] : memref<10x256xf32, #tpu.memory_space<vmem>>, vector<1x256xf32>
    tpu.vector_store %arg7[%c0_188, %c0_189], %225 {strides = array<i32>} : memref<10x256xf32, #tpu.memory_space<vmem>>, vector<1x256xf32>,
    %227 = vector.extract_strided_slice %30 {offsets = [5, 0], sizes = [1, 256], strides = [1, 1]} : vector<8x256xf32> to vector<1x256xf32>
    %c1_190 = arith.constant 1 : index
    %c0_191 = arith.constant 0 : index
    %228 = vector.load %arg7[%c1_190, %c0_191] : memref<10x256xf32, #tpu.memory_space<vmem>>, vector<1x256xf32>
    tpu.vector_store %arg7[%c1_190, %c0_191], %227 {strides = array<i32>} : memref<10x256xf32, #tpu.memory_space<vmem>>, vector<1x256xf32>,
    %229 = vector.extract_strided_slice %36 {offsets = [5, 0], sizes = [1, 256], strides = [1, 1]} : vector<8x256xf32> to vector<1x256xf32>
    %c2_192 = arith.constant 2 : index
    %c0_193 = arith.constant 0 : index
    %230 = vector.load %arg7[%c2_192, %c0_193] : memref<10x256xf32, #tpu.memory_space<vmem>>, vector<1x256xf32>
    tpu.vector_store %arg7[%c2_192, %c0_193], %229 {strides = array<i32>} : memref<10x256xf32, #tpu.memory_space<vmem>>, vector<1x256xf32>,
    %231 = vector.extract_strided_slice %39 {offsets = [5, 0], sizes = [1, 256], strides = [1, 1]} : vector<8x256xf32> to vector<1x256xf32>
    %c3_194 = arith.constant 3 : index
    %c0_195 = arith.constant 0 : index
    %232 = vector.load %arg7[%c3_194, %c0_195] : memref<10x256xf32, #tpu.memory_space<vmem>>, vector<1x256xf32>
    tpu.vector_store %arg7[%c3_194, %c0_195], %231 {strides = array<i32>} : memref<10x256xf32, #tpu.memory_space<vmem>>, vector<1x256xf32>,
    %233 = vector.extract_strided_slice %0 {offsets = [5, 0], sizes = [1, 256], strides = [1, 1]} : vector<8x256xf32> to vector<1x256xf32>
    %c4_196 = arith.constant 4 : index
    %c0_197 = arith.constant 0 : index
    %234 = vector.load %arg7[%c4_196, %c0_197] : memref<10x256xf32, #tpu.memory_space<vmem>>, vector<1x256xf32>
    tpu.vector_store %arg7[%c4_196, %c0_197], %233 {strides = array<i32>} : memref<10x256xf32, #tpu.memory_space<vmem>>, vector<1x256xf32>,
    %235 = vector.extract_strided_slice %42 {offsets = [5, 0], sizes = [1, 256], strides = [1, 1]} : vector<8x256xf32> to vector<1x256xf32>
    %c5_198 = arith.constant 5 : index
    %c0_199 = arith.constant 0 : index
    %236 = vector.load %arg7[%c5_198, %c0_199] : memref<10x256xf32, #tpu.memory_space<vmem>>, vector<1x256xf32>
    tpu.vector_store %arg7[%c5_198, %c0_199], %235 {strides = array<i32>} : memref<10x256xf32, #tpu.memory_space<vmem>>, vector<1x256xf32>,
    %237 = vector.extract_strided_slice %48 {offsets = [5, 0], sizes = [1, 256], strides = [1, 1]} : vector<8x256xf32> to vector<1x256xf32>
    %c6_200 = arith.constant 6 : index
    %c0_201 = arith.constant 0 : index
    %238 = vector.load %arg7[%c6_200, %c0_201] : memref<10x256xf32, #tpu.memory_space<vmem>>, vector<1x256xf32>
    tpu.vector_store %arg7[%c6_200, %c0_201], %237 {strides = array<i32>} : memref<10x256xf32, #tpu.memory_space<vmem>>, vector<1x256xf32>,
    %239 = vector.extract_strided_slice %51 {offsets = [5, 0], sizes = [1, 256], strides = [1, 1]} : vector<8x256xf32> to vector<1x256xf32>
    %c7_202 = arith.constant 7 : index
    %c0_203 = arith.constant 0 : index
    %240 = vector.load %arg7[%c7_202, %c0_203] : memref<10x256xf32, #tpu.memory_space<vmem>>, vector<1x256xf32>
    tpu.vector_store %arg7[%c7_202, %c0_203], %239 {strides = array<i32>} : memref<10x256xf32, #tpu.memory_space<vmem>>, vector<1x256xf32>,
    %241 = vector.extract_strided_slice %57 {offsets = [5, 0], sizes = [1, 256], strides = [1, 1]} : vector<8x256xf32> to vector<1x256xf32>
    %c8_204 = arith.constant 8 : index
    %c0_205 = arith.constant 0 : index
    %242 = vector.load %arg7[%c8_204, %c0_205] : memref<10x256xf32, #tpu.memory_space<vmem>>, vector<1x256xf32>
    tpu.vector_store %arg7[%c8_204, %c0_205], %241 {strides = array<i32>} : memref<10x256xf32, #tpu.memory_space<vmem>>, vector<1x256xf32>,
    %c0_206 = arith.constant 0 : index
    %c0_207 = arith.constant 0 : index
    %243 = vector.load %arg4[%c0_206, %c0_207] : memref<150x10xf32, #tpu.memory_space<vmem>>, vector<150x10xf32>
    %c0_208 = arith.constant 0 : index
    %c0_209 = arith.constant 0 : index
    %244 = vector.load %arg7[%c0_208, %c0_209] : memref<10x256xf32, #tpu.memory_space<vmem>>, vector<10x256xf32>
    %cst_210 = arith.constant dense<0.000000e+00> : vector<150x256xf32>
    %245 = tpu.matmul %243, %244, %cst_210 {dimension_numbers = #tpu.dot_dimension_numbers<[1], [0], [0], [1], [0, 0, 1, 1], [], []>} : vector<150x10xf32>, vector<10x256xf32>, vector<150x256xf32> -> vector<150x256xf32>
    %cst_211 = arith.constant 0.000000e+00 : f32
    %246 = vector.broadcast %cst_211 : f32 to vector<150x256xf32>
    %247 = arith.maximumf %245, %246 : vector<150x256xf32>
    %c0_212 = arith.constant 0 : index
    %c0_213 = arith.constant 0 : index
    %248 = vector.load %arg5[%c0_212, %c0_213] : memref<1x150xf32, #tpu.memory_space<vmem>>, vector<1x150xf32>
    %cst_214 = arith.constant dense<0.000000e+00> : vector<1x256xf32>
    %249 = tpu.matmul %248, %247, %cst_214 {dimension_numbers = #tpu.dot_dimension_numbers<[1], [0], [0], [1], [0, 0, 1, 1], [], []>} : vector<1x150xf32>, vector<150x256xf32>, vector<1x256xf32> -> vector<1x256xf32>
    %cst_215 = arith.constant 0.000000e+00 : f32
    %250 = vector.broadcast %cst_215 : f32 to vector<1x256xf32>
    %251 = arith.subf %250, %249 : vector<1x256xf32>
    %252 = math.exp %251 : vector<1x256xf32>
    %cst_216 = arith.constant 1.000000e+00 : f32
    %253 = vector.broadcast %cst_216 : f32 to vector<1x256xf32>
    %254 = arith.addf %253, %252 : vector<1x256xf32>
    %cst_217 = arith.constant 1.000000e+00 : f32
    %255 = vector.broadcast %cst_217 : f32 to vector<1x256xf32>
    %256 = arith.divf %255, %254 : vector<1x256xf32>
    %c5_218 = arith.constant 5 : index
    %c0_219 = arith.constant 0 : index
    %257 = vector.load %arg8[%c5_218, %c0_219] : memref<8x256xf32, #tpu.memory_space<vmem>>, vector<1x256xf32>
    tpu.vector_store %arg8[%c5_218, %c0_219], %256 {strides = array<i32>} : memref<8x256xf32, #tpu.memory_space<vmem>>, vector<1x256xf32>,
    %258 = vector.extract_strided_slice %27 {offsets = [6, 0], sizes = [1, 256], strides = [1, 1]} : vector<8x256xf32> to vector<1x256xf32>
    %c0_220 = arith.constant 0 : index
    %c0_221 = arith.constant 0 : index
    %259 = vector.load %arg7[%c0_220, %c0_221] : memref<10x256xf32, #tpu.memory_space<vmem>>, vector<1x256xf32>
    tpu.vector_store %arg7[%c0_220, %c0_221], %258 {strides = array<i32>} : memref<10x256xf32, #tpu.memory_space<vmem>>, vector<1x256xf32>,
    %260 = vector.extract_strided_slice %30 {offsets = [6, 0], sizes = [1, 256], strides = [1, 1]} : vector<8x256xf32> to vector<1x256xf32>
    %c1_222 = arith.constant 1 : index
    %c0_223 = arith.constant 0 : index
    %261 = vector.load %arg7[%c1_222, %c0_223] : memref<10x256xf32, #tpu.memory_space<vmem>>, vector<1x256xf32>
    tpu.vector_store %arg7[%c1_222, %c0_223], %260 {strides = array<i32>} : memref<10x256xf32, #tpu.memory_space<vmem>>, vector<1x256xf32>,
    %262 = vector.extract_strided_slice %36 {offsets = [6, 0], sizes = [1, 256], strides = [1, 1]} : vector<8x256xf32> to vector<1x256xf32>
    %c2_224 = arith.constant 2 : index
    %c0_225 = arith.constant 0 : index
    %263 = vector.load %arg7[%c2_224, %c0_225] : memref<10x256xf32, #tpu.memory_space<vmem>>, vector<1x256xf32>
    tpu.vector_store %arg7[%c2_224, %c0_225], %262 {strides = array<i32>} : memref<10x256xf32, #tpu.memory_space<vmem>>, vector<1x256xf32>,
    %264 = vector.extract_strided_slice %39 {offsets = [6, 0], sizes = [1, 256], strides = [1, 1]} : vector<8x256xf32> to vector<1x256xf32>
    %c3_226 = arith.constant 3 : index
    %c0_227 = arith.constant 0 : index
    %265 = vector.load %arg7[%c3_226, %c0_227] : memref<10x256xf32, #tpu.memory_space<vmem>>, vector<1x256xf32>
    tpu.vector_store %arg7[%c3_226, %c0_227], %264 {strides = array<i32>} : memref<10x256xf32, #tpu.memory_space<vmem>>, vector<1x256xf32>,
    %266 = vector.extract_strided_slice %0 {offsets = [6, 0], sizes = [1, 256], strides = [1, 1]} : vector<8x256xf32> to vector<1x256xf32>
    %c4_228 = arith.constant 4 : index
    %c0_229 = arith.constant 0 : index
    %267 = vector.load %arg7[%c4_228, %c0_229] : memref<10x256xf32, #tpu.memory_space<vmem>>, vector<1x256xf32>
    tpu.vector_store %arg7[%c4_228, %c0_229], %266 {strides = array<i32>} : memref<10x256xf32, #tpu.memory_space<vmem>>, vector<1x256xf32>,
    %268 = vector.extract_strided_slice %42 {offsets = [6, 0], sizes = [1, 256], strides = [1, 1]} : vector<8x256xf32> to vector<1x256xf32>
    %c5_230 = arith.constant 5 : index
    %c0_231 = arith.constant 0 : index
    %269 = vector.load %arg7[%c5_230, %c0_231] : memref<10x256xf32, #tpu.memory_space<vmem>>, vector<1x256xf32>
    tpu.vector_store %arg7[%c5_230, %c0_231], %268 {strides = array<i32>} : memref<10x256xf32, #tpu.memory_space<vmem>>, vector<1x256xf32>,
    %270 = vector.extract_strided_slice %48 {offsets = [6, 0], sizes = [1, 256], strides = [1, 1]} : vector<8x256xf32> to vector<1x256xf32>
    %c6_232 = arith.constant 6 : index
    %c0_233 = arith.constant 0 : index
    %271 = vector.load %arg7[%c6_232, %c0_233] : memref<10x256xf32, #tpu.memory_space<vmem>>, vector<1x256xf32>
    tpu.vector_store %arg7[%c6_232, %c0_233], %270 {strides = array<i32>} : memref<10x256xf32, #tpu.memory_space<vmem>>, vector<1x256xf32>,
    %272 = vector.extract_strided_slice %51 {offsets = [6, 0], sizes = [1, 256], strides = [1, 1]} : vector<8x256xf32> to vector<1x256xf32>
    %c7_234 = arith.constant 7 : index
    %c0_235 = arith.constant 0 : index
    %273 = vector.load %arg7[%c7_234, %c0_235] : memref<10x256xf32, #tpu.memory_space<vmem>>, vector<1x256xf32>
    tpu.vector_store %arg7[%c7_234, %c0_235], %272 {strides = array<i32>} : memref<10x256xf32, #tpu.memory_space<vmem>>, vector<1x256xf32>,
    %274 = vector.extract_strided_slice %57 {offsets = [6, 0], sizes = [1, 256], strides = [1, 1]} : vector<8x256xf32> to vector<1x256xf32>
    %c8_236 = arith.constant 8 : index
    %c0_237 = arith.constant 0 : index
    %275 = vector.load %arg7[%c8_236, %c0_237] : memref<10x256xf32, #tpu.memory_space<vmem>>, vector<1x256xf32>
    tpu.vector_store %arg7[%c8_236, %c0_237], %274 {strides = array<i32>} : memref<10x256xf32, #tpu.memory_space<vmem>>, vector<1x256xf32>,
    %c0_238 = arith.constant 0 : index
    %c0_239 = arith.constant 0 : index
    %276 = vector.load %arg4[%c0_238, %c0_239] : memref<150x10xf32, #tpu.memory_space<vmem>>, vector<150x10xf32>
    %c0_240 = arith.constant 0 : index
    %c0_241 = arith.constant 0 : index
    %277 = vector.load %arg7[%c0_240, %c0_241] : memref<10x256xf32, #tpu.memory_space<vmem>>, vector<10x256xf32>
    %cst_242 = arith.constant dense<0.000000e+00> : vector<150x256xf32>
    %278 = tpu.matmul %276, %277, %cst_242 {dimension_numbers = #tpu.dot_dimension_numbers<[1], [0], [0], [1], [0, 0, 1, 1], [], []>} : vector<150x10xf32>, vector<10x256xf32>, vector<150x256xf32> -> vector<150x256xf32>
    %cst_243 = arith.constant 0.000000e+00 : f32
    %279 = vector.broadcast %cst_243 : f32 to vector<150x256xf32>
    %280 = arith.maximumf %278, %279 : vector<150x256xf32>
    %c0_244 = arith.constant 0 : index
    %c0_245 = arith.constant 0 : index
    %281 = vector.load %arg5[%c0_244, %c0_245] : memref<1x150xf32, #tpu.memory_space<vmem>>, vector<1x150xf32>
    %cst_246 = arith.constant dense<0.000000e+00> : vector<1x256xf32>
    %282 = tpu.matmul %281, %280, %cst_246 {dimension_numbers = #tpu.dot_dimension_numbers<[1], [0], [0], [1], [0, 0, 1, 1], [], []>} : vector<1x150xf32>, vector<150x256xf32>, vector<1x256xf32> -> vector<1x256xf32>
    %cst_247 = arith.constant 0.000000e+00 : f32
    %283 = vector.broadcast %cst_247 : f32 to vector<1x256xf32>
    %284 = arith.subf %283, %282 : vector<1x256xf32>
    %285 = math.exp %284 : vector<1x256xf32>
    %cst_248 = arith.constant 1.000000e+00 : f32
    %286 = vector.broadcast %cst_248 : f32 to vector<1x256xf32>
    %287 = arith.addf %286, %285 : vector<1x256xf32>
    %cst_249 = arith.constant 1.000000e+00 : f32
    %288 = vector.broadcast %cst_249 : f32 to vector<1x256xf32>
    %289 = arith.divf %288, %287 : vector<1x256xf32>
    %c6_250 = arith.constant 6 : index
    %c0_251 = arith.constant 0 : index
    %290 = vector.load %arg8[%c6_250, %c0_251] : memref<8x256xf32, #tpu.memory_space<vmem>>, vector<1x256xf32>
    tpu.vector_store %arg8[%c6_250, %c0_251], %289 {strides = array<i32>} : memref<8x256xf32, #tpu.memory_space<vmem>>, vector<1x256xf32>,
    %291 = vector.extract_strided_slice %27 {offsets = [7, 0], sizes = [1, 256], strides = [1, 1]} : vector<8x256xf32> to vector<1x256xf32>
    %c0_252 = arith.constant 0 : index
    %c0_253 = arith.constant 0 : index
    %292 = vector.load %arg7[%c0_252, %c0_253] : memref<10x256xf32, #tpu.memory_space<vmem>>, vector<1x256xf32>
    tpu.vector_store %arg7[%c0_252, %c0_253], %291 {strides = array<i32>} : memref<10x256xf32, #tpu.memory_space<vmem>>, vector<1x256xf32>,
    %293 = vector.extract_strided_slice %30 {offsets = [7, 0], sizes = [1, 256], strides = [1, 1]} : vector<8x256xf32> to vector<1x256xf32>
    %c1_254 = arith.constant 1 : index
    %c0_255 = arith.constant 0 : index
    %294 = vector.load %arg7[%c1_254, %c0_255] : memref<10x256xf32, #tpu.memory_space<vmem>>, vector<1x256xf32>
    tpu.vector_store %arg7[%c1_254, %c0_255], %293 {strides = array<i32>} : memref<10x256xf32, #tpu.memory_space<vmem>>, vector<1x256xf32>,
    %295 = vector.extract_strided_slice %36 {offsets = [7, 0], sizes = [1, 256], strides = [1, 1]} : vector<8x256xf32> to vector<1x256xf32>
    %c2_256 = arith.constant 2 : index
    %c0_257 = arith.constant 0 : index
    %296 = vector.load %arg7[%c2_256, %c0_257] : memref<10x256xf32, #tpu.memory_space<vmem>>, vector<1x256xf32>
    tpu.vector_store %arg7[%c2_256, %c0_257], %295 {strides = array<i32>} : memref<10x256xf32, #tpu.memory_space<vmem>>, vector<1x256xf32>,
    %297 = vector.extract_strided_slice %39 {offsets = [7, 0], sizes = [1, 256], strides = [1, 1]} : vector<8x256xf32> to vector<1x256xf32>
    %c3_258 = arith.constant 3 : index
    %c0_259 = arith.constant 0 : index
    %298 = vector.load %arg7[%c3_258, %c0_259] : memref<10x256xf32, #tpu.memory_space<vmem>>, vector<1x256xf32>
    tpu.vector_store %arg7[%c3_258, %c0_259], %297 {strides = array<i32>} : memref<10x256xf32, #tpu.memory_space<vmem>>, vector<1x256xf32>,
    %299 = vector.extract_strided_slice %0 {offsets = [7, 0], sizes = [1, 256], strides = [1, 1]} : vector<8x256xf32> to vector<1x256xf32>
    %c4_260 = arith.constant 4 : index
    %c0_261 = arith.constant 0 : index
    %300 = vector.load %arg7[%c4_260, %c0_261] : memref<10x256xf32, #tpu.memory_space<vmem>>, vector<1x256xf32>
    tpu.vector_store %arg7[%c4_260, %c0_261], %299 {strides = array<i32>} : memref<10x256xf32, #tpu.memory_space<vmem>>, vector<1x256xf32>,
    %301 = vector.extract_strided_slice %42 {offsets = [7, 0], sizes = [1, 256], strides = [1, 1]} : vector<8x256xf32> to vector<1x256xf32>
    %c5_262 = arith.constant 5 : index
    %c0_263 = arith.constant 0 : index
    %302 = vector.load %arg7[%c5_262, %c0_263] : memref<10x256xf32, #tpu.memory_space<vmem>>, vector<1x256xf32>
    tpu.vector_store %arg7[%c5_262, %c0_263], %301 {strides = array<i32>} : memref<10x256xf32, #tpu.memory_space<vmem>>, vector<1x256xf32>,
    %303 = vector.extract_strided_slice %48 {offsets = [7, 0], sizes = [1, 256], strides = [1, 1]} : vector<8x256xf32> to vector<1x256xf32>
    %c6_264 = arith.constant 6 : index
    %c0_265 = arith.constant 0 : index
    %304 = vector.load %arg7[%c6_264, %c0_265] : memref<10x256xf32, #tpu.memory_space<vmem>>, vector<1x256xf32>
    tpu.vector_store %arg7[%c6_264, %c0_265], %303 {strides = array<i32>} : memref<10x256xf32, #tpu.memory_space<vmem>>, vector<1x256xf32>,
    %305 = vector.extract_strided_slice %51 {offsets = [7, 0], sizes = [1, 256], strides = [1, 1]} : vector<8x256xf32> to vector<1x256xf32>
    %c7_266 = arith.constant 7 : index
    %c0_267 = arith.constant 0 : index
    %306 = vector.load %arg7[%c7_266, %c0_267] : memref<10x256xf32, #tpu.memory_space<vmem>>, vector<1x256xf32>
    tpu.vector_store %arg7[%c7_266, %c0_267], %305 {strides = array<i32>} : memref<10x256xf32, #tpu.memory_space<vmem>>, vector<1x256xf32>,
    %307 = vector.extract_strided_slice %57 {offsets = [7, 0], sizes = [1, 256], strides = [1, 1]} : vector<8x256xf32> to vector<1x256xf32>
    %c8_268 = arith.constant 8 : index
    %c0_269 = arith.constant 0 : index
    %308 = vector.load %arg7[%c8_268, %c0_269] : memref<10x256xf32, #tpu.memory_space<vmem>>, vector<1x256xf32>
    tpu.vector_store %arg7[%c8_268, %c0_269], %307 {strides = array<i32>} : memref<10x256xf32, #tpu.memory_space<vmem>>, vector<1x256xf32>,
    %c0_270 = arith.constant 0 : index
    %c0_271 = arith.constant 0 : index
    %309 = vector.load %arg4[%c0_270, %c0_271] : memref<150x10xf32, #tpu.memory_space<vmem>>, vector<150x10xf32>
    %c0_272 = arith.constant 0 : index
    %c0_273 = arith.constant 0 : index
    %310 = vector.load %arg7[%c0_272, %c0_273] : memref<10x256xf32, #tpu.memory_space<vmem>>, vector<10x256xf32>
    %cst_274 = arith.constant dense<0.000000e+00> : vector<150x256xf32>
    %311 = tpu.matmul %309, %310, %cst_274 {dimension_numbers = #tpu.dot_dimension_numbers<[1], [0], [0], [1], [0, 0, 1, 1], [], []>} : vector<150x10xf32>, vector<10x256xf32>, vector<150x256xf32> -> vector<150x256xf32>
    %cst_275 = arith.constant 0.000000e+00 : f32
    %312 = vector.broadcast %cst_275 : f32 to vector<150x256xf32>
    %313 = arith.maximumf %311, %312 : vector<150x256xf32>
    %c0_276 = arith.constant 0 : index
    %c0_277 = arith.constant 0 : index
    %314 = vector.load %arg5[%c0_276, %c0_277] : memref<1x150xf32, #tpu.memory_space<vmem>>, vector<1x150xf32>
    %cst_278 = arith.constant dense<0.000000e+00> : vector<1x256xf32>
    %315 = tpu.matmul %314, %313, %cst_278 {dimension_numbers = #tpu.dot_dimension_numbers<[1], [0], [0], [1], [0, 0, 1, 1], [], []>} : vector<1x150xf32>, vector<150x256xf32>, vector<1x256xf32> -> vector<1x256xf32>
    %cst_279 = arith.constant 0.000000e+00 : f32
    %316 = vector.broadcast %cst_279 : f32 to vector<1x256xf32>
    %317 = arith.subf %316, %315 : vector<1x256xf32>
    %318 = math.exp %317 : vector<1x256xf32>
    %cst_280 = arith.constant 1.000000e+00 : f32
    %319 = vector.broadcast %cst_280 : f32 to vector<1x256xf32>
    %320 = arith.addf %319, %318 : vector<1x256xf32>
    %cst_281 = arith.constant 1.000000e+00 : f32
    %321 = vector.broadcast %cst_281 : f32 to vector<1x256xf32>
    %322 = arith.divf %321, %320 : vector<1x256xf32>
    %c7_282 = arith.constant 7 : index
    %c0_283 = arith.constant 0 : index
    %323 = vector.load %arg8[%c7_282, %c0_283] : memref<8x256xf32, #tpu.memory_space<vmem>>, vector<1x256xf32>
    tpu.vector_store %arg8[%c7_282, %c0_283], %322 {strides = array<i32>} : memref<8x256xf32, #tpu.memory_space<vmem>>, vector<1x256xf32>,
    %c0_284 = arith.constant 0 : index
    %c0_285 = arith.constant 0 : index
    %324 = vector.load %arg8[%c0_284, %c0_285] : memref<8x256xf32, #tpu.memory_space<vmem>>, vector<8x256xf32>
    %c0_i32 = arith.constant 0 : i32
    %c16_i32_286 = arith.constant 16 : i32
    %325 = tpu.dynamic_rotate %1 by %c16_i32_286 dim 1 : vector<8x256xf32>, i32 -> vector<8x256xf32>
    %cst_287 = arith.constant -1.000000e+30 : f32
    %326 = vector.broadcast %cst_287 : f32 to vector<8x256xf32>
    %327 = arith.select %6, %326, %325 : vector<8x256xi1>, vector<8x256xf32>
    %328 = arith.maximumf %1, %327 : vector<8x256xf32>
    %c240_i32_288 = arith.constant 240 : i32
    %329 = tpu.dynamic_rotate %1 by %c240_i32_288 dim 1 : vector<8x256xf32>, i32 -> vector<8x256xf32>
    %cst_289 = arith.constant -1.000000e+30 : f32
    %330 = vector.broadcast %cst_289 : f32 to vector<8x256xf32>
    %331 = arith.select %11, %330, %329 : vector<8x256xi1>, vector<8x256xf32>
    %332 = arith.maximumf %328, %331 : vector<8x256xf32>
    %c1_i32_290 = arith.constant 1 : i32
    %333 = tpu.dynamic_rotate %332 by %c1_i32_290 dim 1 : vector<8x256xf32>, i32 -> vector<8x256xf32>
    %cst_291 = arith.constant -1.000000e+30 : f32
    %334 = vector.broadcast %cst_291 : f32 to vector<8x256xf32>
    %335 = arith.select %16, %334, %333 : vector<8x256xi1>, vector<8x256xf32>
    %336 = arith.maximumf %332, %335 : vector<8x256xf32>
    %c255_i32_292 = arith.constant 255 : i32
    %337 = tpu.dynamic_rotate %332 by %c255_i32_292 dim 1 : vector<8x256xf32>, i32 -> vector<8x256xf32>
    %cst_293 = arith.constant -1.000000e+30 : f32
    %338 = vector.broadcast %cst_293 : f32 to vector<8x256xf32>
    %339 = arith.select %21, %338, %337 : vector<8x256xi1>, vector<8x256xf32>
    %340 = arith.maximumf %336, %339 : vector<8x256xf32>
    %341 = arith.subf %340, %1 : vector<8x256xf32>
    %342 = arith.mulf %324, %341 : vector<8x256xf32>
    %343 = arith.addf %1, %342 : vector<8x256xf32>
    %344 = arith.maximumf %1, %343 : vector<8x256xf32>
    %c1_i32_294 = arith.constant 1 : i32
    %c16_i32_295 = arith.constant 16 : i32
    %345 = tpu.dynamic_rotate %344 by %c16_i32_295 dim 1 : vector<8x256xf32>, i32 -> vector<8x256xf32>
    %cst_296 = arith.constant -1.000000e+30 : f32
    %346 = vector.broadcast %cst_296 : f32 to vector<8x256xf32>
    %347 = arith.select %6, %346, %345 : vector<8x256xi1>, vector<8x256xf32>
    %348 = arith.maximumf %344, %347 : vector<8x256xf32>
    %c240_i32_297 = arith.constant 240 : i32
    %349 = tpu.dynamic_rotate %344 by %c240_i32_297 dim 1 : vector<8x256xf32>, i32 -> vector<8x256xf32>
    %cst_298 = arith.constant -1.000000e+30 : f32
    %350 = vector.broadcast %cst_298 : f32 to vector<8x256xf32>
    %351 = arith.select %11, %350, %349 : vector<8x256xi1>, vector<8x256xf32>
    %352 = arith.maximumf %348, %351 : vector<8x256xf32>
    %c1_i32_299 = arith.constant 1 : i32
    %353 = tpu.dynamic_rotate %352 by %c1_i32_299 dim 1 : vector<8x256xf32>, i32 -> vector<8x256xf32>
    %cst_300 = arith.constant -1.000000e+30 : f32
    %354 = vector.broadcast %cst_300 : f32 to vector<8x256xf32>
    %355 = arith.select %16, %354, %353 : vector<8x256xi1>, vector<8x256xf32>
    %356 = arith.maximumf %352, %355 : vector<8x256xf32>
    %c255_i32_301 = arith.constant 255 : i32
    %357 = tpu.dynamic_rotate %352 by %c255_i32_301 dim 1 : vector<8x256xf32>, i32 -> vector<8x256xf32>
    %cst_302 = arith.constant -1.000000e+30 : f32
    %358 = vector.broadcast %cst_302 : f32 to vector<8x256xf32>
    %359 = arith.select %21, %358, %357 : vector<8x256xi1>, vector<8x256xf32>
    %360 = arith.maximumf %356, %359 : vector<8x256xf32>
    %361 = arith.subf %360, %1 : vector<8x256xf32>
    %362 = arith.mulf %324, %361 : vector<8x256xf32>
    %363 = arith.addf %1, %362 : vector<8x256xf32>
    %364 = arith.maximumf %344, %363 : vector<8x256xf32>
    %c2_i32 = arith.constant 2 : i32
    %c16_i32_303 = arith.constant 16 : i32
    %365 = tpu.dynamic_rotate %364 by %c16_i32_303 dim 1 : vector<8x256xf32>, i32 -> vector<8x256xf32>
    %cst_304 = arith.constant -1.000000e+30 : f32
    %366 = vector.broadcast %cst_304 : f32 to vector<8x256xf32>
    %367 = arith.select %6, %366, %365 : vector<8x256xi1>, vector<8x256xf32>
    %368 = arith.maximumf %364, %367 : vector<8x256xf32>
    %c240_i32_305 = arith.constant 240 : i32
    %369 = tpu.dynamic_rotate %364 by %c240_i32_305 dim 1 : vector<8x256xf32>, i32 -> vector<8x256xf32>
    %cst_306 = arith.constant -1.000000e+30 : f32
    %370 = vector.broadcast %cst_306 : f32 to vector<8x256xf32>
    %371 = arith.select %11, %370, %369 : vector<8x256xi1>, vector<8x256xf32>
    %372 = arith.maximumf %368, %371 : vector<8x256xf32>
    %c1_i32_307 = arith.constant 1 : i32
    %373 = tpu.dynamic_rotate %372 by %c1_i32_307 dim 1 : vector<8x256xf32>, i32 -> vector<8x256xf32>
    %cst_308 = arith.constant -1.000000e+30 : f32
    %374 = vector.broadcast %cst_308 : f32 to vector<8x256xf32>
    %375 = arith.select %16, %374, %373 : vector<8x256xi1>, vector<8x256xf32>
    %376 = arith.maximumf %372, %375 : vector<8x256xf32>
    %c255_i32_309 = arith.constant 255 : i32
    %377 = tpu.dynamic_rotate %372 by %c255_i32_309 dim 1 : vector<8x256xf32>, i32 -> vector<8x256xf32>
    %cst_310 = arith.constant -1.000000e+30 : f32
    %378 = vector.broadcast %cst_310 : f32 to vector<8x256xf32>
    %379 = arith.select %21, %378, %377 : vector<8x256xi1>, vector<8x256xf32>
    %380 = arith.maximumf %376, %379 : vector<8x256xf32>
    %381 = arith.subf %380, %1 : vector<8x256xf32>
    %382 = arith.mulf %324, %381 : vector<8x256xf32>
    %383 = arith.addf %1, %382 : vector<8x256xf32>
    %384 = arith.maximumf %364, %383 : vector<8x256xf32>
    %c3_i32 = arith.constant 3 : i32
    %c16_i32_311 = arith.constant 16 : i32
    %385 = tpu.dynamic_rotate %384 by %c16_i32_311 dim 1 : vector<8x256xf32>, i32 -> vector<8x256xf32>
    %cst_312 = arith.constant -1.000000e+30 : f32
    %386 = vector.broadcast %cst_312 : f32 to vector<8x256xf32>
    %387 = arith.select %6, %386, %385 : vector<8x256xi1>, vector<8x256xf32>
    %388 = arith.maximumf %384, %387 : vector<8x256xf32>
    %c240_i32_313 = arith.constant 240 : i32
    %389 = tpu.dynamic_rotate %384 by %c240_i32_313 dim 1 : vector<8x256xf32>, i32 -> vector<8x256xf32>
    %cst_314 = arith.constant -1.000000e+30 : f32
    %390 = vector.broadcast %cst_314 : f32 to vector<8x256xf32>
    %391 = arith.select %11, %390, %389 : vector<8x256xi1>, vector<8x256xf32>
    %392 = arith.maximumf %388, %391 : vector<8x256xf32>
    %c1_i32_315 = arith.constant 1 : i32
    %393 = tpu.dynamic_rotate %392 by %c1_i32_315 dim 1 : vector<8x256xf32>, i32 -> vector<8x256xf32>
    %cst_316 = arith.constant -1.000000e+30 : f32
    %394 = vector.broadcast %cst_316 : f32 to vector<8x256xf32>
    %395 = arith.select %16, %394, %393 : vector<8x256xi1>, vector<8x256xf32>
    %396 = arith.maximumf %392, %395 : vector<8x256xf32>
    %c255_i32_317 = arith.constant 255 : i32
    %397 = tpu.dynamic_rotate %392 by %c255_i32_317 dim 1 : vector<8x256xf32>, i32 -> vector<8x256xf32>
    %cst_318 = arith.constant -1.000000e+30 : f32
    %398 = vector.broadcast %cst_318 : f32 to vector<8x256xf32>
    %399 = arith.select %21, %398, %397 : vector<8x256xi1>, vector<8x256xf32>
    %400 = arith.maximumf %396, %399 : vector<8x256xf32>
    %401 = arith.subf %400, %1 : vector<8x256xf32>
    %402 = arith.mulf %324, %401 : vector<8x256xf32>
    %403 = arith.addf %1, %402 : vector<8x256xf32>
    %404 = arith.maximumf %384, %403 : vector<8x256xf32>
    %c4_i32 = arith.constant 4 : i32
    %c16_i32_319 = arith.constant 16 : i32
    %405 = tpu.dynamic_rotate %404 by %c16_i32_319 dim 1 : vector<8x256xf32>, i32 -> vector<8x256xf32>
    %cst_320 = arith.constant -1.000000e+30 : f32
    %406 = vector.broadcast %cst_320 : f32 to vector<8x256xf32>
    %407 = arith.select %6, %406, %405 : vector<8x256xi1>, vector<8x256xf32>
    %408 = arith.maximumf %404, %407 : vector<8x256xf32>
    %c240_i32_321 = arith.constant 240 : i32
    %409 = tpu.dynamic_rotate %404 by %c240_i32_321 dim 1 : vector<8x256xf32>, i32 -> vector<8x256xf32>
    %cst_322 = arith.constant -1.000000e+30 : f32
    %410 = vector.broadcast %cst_322 : f32 to vector<8x256xf32>
    %411 = arith.select %11, %410, %409 : vector<8x256xi1>, vector<8x256xf32>
    %412 = arith.maximumf %408, %411 : vector<8x256xf32>
    %c1_i32_323 = arith.constant 1 : i32
    %413 = tpu.dynamic_rotate %412 by %c1_i32_323 dim 1 : vector<8x256xf32>, i32 -> vector<8x256xf32>
    %cst_324 = arith.constant -1.000000e+30 : f32
    %414 = vector.broadcast %cst_324 : f32 to vector<8x256xf32>
    %415 = arith.select %16, %414, %413 : vector<8x256xi1>, vector<8x256xf32>
    %416 = arith.maximumf %412, %415 : vector<8x256xf32>
    %c255_i32_325 = arith.constant 255 : i32
    %417 = tpu.dynamic_rotate %412 by %c255_i32_325 dim 1 : vector<8x256xf32>, i32 -> vector<8x256xf32>
    %cst_326 = arith.constant -1.000000e+30 : f32
    %418 = vector.broadcast %cst_326 : f32 to vector<8x256xf32>
    %419 = arith.select %21, %418, %417 : vector<8x256xi1>, vector<8x256xf32>
    %420 = arith.maximumf %416, %419 : vector<8x256xf32>
    %421 = arith.subf %420, %1 : vector<8x256xf32>
    %422 = arith.mulf %324, %421 : vector<8x256xf32>
    %423 = arith.addf %1, %422 : vector<8x256xf32>
    %424 = arith.maximumf %404, %423 : vector<8x256xf32>
    %c5_i32 = arith.constant 5 : i32
    %c16_i32_327 = arith.constant 16 : i32
    %425 = tpu.dynamic_rotate %424 by %c16_i32_327 dim 1 : vector<8x256xf32>, i32 -> vector<8x256xf32>
    %cst_328 = arith.constant -1.000000e+30 : f32
    %426 = vector.broadcast %cst_328 : f32 to vector<8x256xf32>
    %427 = arith.select %6, %426, %425 : vector<8x256xi1>, vector<8x256xf32>
    %428 = arith.maximumf %424, %427 : vector<8x256xf32>
    %c240_i32_329 = arith.constant 240 : i32
    %429 = tpu.dynamic_rotate %424 by %c240_i32_329 dim 1 : vector<8x256xf32>, i32 -> vector<8x256xf32>
    %cst_330 = arith.constant -1.000000e+30 : f32
    %430 = vector.broadcast %cst_330 : f32 to vector<8x256xf32>
    %431 = arith.select %11, %430, %429 : vector<8x256xi1>, vector<8x256xf32>
    %432 = arith.maximumf %428, %431 : vector<8x256xf32>
    %c1_i32_331 = arith.constant 1 : i32
    %433 = tpu.dynamic_rotate %432 by %c1_i32_331 dim 1 : vector<8x256xf32>, i32 -> vector<8x256xf32>
    %cst_332 = arith.constant -1.000000e+30 : f32
    %434 = vector.broadcast %cst_332 : f32 to vector<8x256xf32>
    %435 = arith.select %16, %434, %433 : vector<8x256xi1>, vector<8x256xf32>
    %436 = arith.maximumf %432, %435 : vector<8x256xf32>
    %c255_i32_333 = arith.constant 255 : i32
    %437 = tpu.dynamic_rotate %432 by %c255_i32_333 dim 1 : vector<8x256xf32>, i32 -> vector<8x256xf32>
    %cst_334 = arith.constant -1.000000e+30 : f32
    %438 = vector.broadcast %cst_334 : f32 to vector<8x256xf32>
    %439 = arith.select %21, %438, %437 : vector<8x256xi1>, vector<8x256xf32>
    %440 = arith.maximumf %436, %439 : vector<8x256xf32>
    %441 = arith.subf %440, %1 : vector<8x256xf32>
    %442 = arith.mulf %324, %441 : vector<8x256xf32>
    %443 = arith.addf %1, %442 : vector<8x256xf32>
    %444 = arith.maximumf %424, %443 : vector<8x256xf32>
    %c6_i32 = arith.constant 6 : i32
    %c16_i32_335 = arith.constant 16 : i32
    %445 = tpu.dynamic_rotate %444 by %c16_i32_335 dim 1 : vector<8x256xf32>, i32 -> vector<8x256xf32>
    %cst_336 = arith.constant -1.000000e+30 : f32
    %446 = vector.broadcast %cst_336 : f32 to vector<8x256xf32>
    %447 = arith.select %6, %446, %445 : vector<8x256xi1>, vector<8x256xf32>
    %448 = arith.maximumf %444, %447 : vector<8x256xf32>
    %c240_i32_337 = arith.constant 240 : i32
    %449 = tpu.dynamic_rotate %444 by %c240_i32_337 dim 1 : vector<8x256xf32>, i32 -> vector<8x256xf32>
    %cst_338 = arith.constant -1.000000e+30 : f32
    %450 = vector.broadcast %cst_338 : f32 to vector<8x256xf32>
    %451 = arith.select %11, %450, %449 : vector<8x256xi1>, vector<8x256xf32>
    %452 = arith.maximumf %448, %451 : vector<8x256xf32>
    %c1_i32_339 = arith.constant 1 : i32
    %453 = tpu.dynamic_rotate %452 by %c1_i32_339 dim 1 : vector<8x256xf32>, i32 -> vector<8x256xf32>
    %cst_340 = arith.constant -1.000000e+30 : f32
    %454 = vector.broadcast %cst_340 : f32 to vector<8x256xf32>
    %455 = arith.select %16, %454, %453 : vector<8x256xi1>, vector<8x256xf32>
    %456 = arith.maximumf %452, %455 : vector<8x256xf32>
    %c255_i32_341 = arith.constant 255 : i32
    %457 = tpu.dynamic_rotate %452 by %c255_i32_341 dim 1 : vector<8x256xf32>, i32 -> vector<8x256xf32>
    %cst_342 = arith.constant -1.000000e+30 : f32
    %458 = vector.broadcast %cst_342 : f32 to vector<8x256xf32>
    %459 = arith.select %21, %458, %457 : vector<8x256xi1>, vector<8x256xf32>
    %460 = arith.maximumf %456, %459 : vector<8x256xf32>
    %461 = arith.subf %460, %1 : vector<8x256xf32>
    %462 = arith.mulf %324, %461 : vector<8x256xf32>
    %463 = arith.addf %1, %462 : vector<8x256xf32>
    %464 = arith.maximumf %444, %463 : vector<8x256xf32>
    %c7_i32 = arith.constant 7 : i32
    %c16_i32_343 = arith.constant 16 : i32
    %465 = tpu.dynamic_rotate %464 by %c16_i32_343 dim 1 : vector<8x256xf32>, i32 -> vector<8x256xf32>
    %cst_344 = arith.constant -1.000000e+30 : f32
    %466 = vector.broadcast %cst_344 : f32 to vector<8x256xf32>
    %467 = arith.select %6, %466, %465 : vector<8x256xi1>, vector<8x256xf32>
    %468 = arith.maximumf %464, %467 : vector<8x256xf32>
    %c240_i32_345 = arith.constant 240 : i32
    %469 = tpu.dynamic_rotate %464 by %c240_i32_345 dim 1 : vector<8x256xf32>, i32 -> vector<8x256xf32>
    %cst_346 = arith.constant -1.000000e+30 : f32
    %470 = vector.broadcast %cst_346 : f32 to vector<8x256xf32>
    %471 = arith.select %11, %470, %469 : vector<8x256xi1>, vector<8x256xf32>
    %472 = arith.maximumf %468, %471 : vector<8x256xf32>
    %c1_i32_347 = arith.constant 1 : i32
    %473 = tpu.dynamic_rotate %472 by %c1_i32_347 dim 1 : vector<8x256xf32>, i32 -> vector<8x256xf32>
    %cst_348 = arith.constant -1.000000e+30 : f32
    %474 = vector.broadcast %cst_348 : f32 to vector<8x256xf32>
    %475 = arith.select %16, %474, %473 : vector<8x256xi1>, vector<8x256xf32>
    %476 = arith.maximumf %472, %475 : vector<8x256xf32>
    %c255_i32_349 = arith.constant 255 : i32
    %477 = tpu.dynamic_rotate %472 by %c255_i32_349 dim 1 : vector<8x256xf32>, i32 -> vector<8x256xf32>
    %cst_350 = arith.constant -1.000000e+30 : f32
    %478 = vector.broadcast %cst_350 : f32 to vector<8x256xf32>
    %479 = arith.select %21, %478, %477 : vector<8x256xi1>, vector<8x256xf32>
    %480 = arith.maximumf %476, %479 : vector<8x256xf32>
    %481 = arith.subf %480, %1 : vector<8x256xf32>
    %482 = arith.mulf %324, %481 : vector<8x256xf32>
    %483 = arith.addf %1, %482 : vector<8x256xf32>
    %484 = arith.maximumf %464, %483 : vector<8x256xf32>
    %cst_351 = arith.constant 4.900000e-01 : f32
    %485 = vector.broadcast %cst_351 : f32 to vector<8x256xf32>
    %486 = arith.cmpf ogt, %0, %485 : vector<8x256xf32>
    %cst_352 = arith.constant -1.000000e+00 : f32
    %487 = vector.broadcast %cst_352 : f32 to vector<8x256xf32>
    %488 = arith.select %486, %484, %487 : vector<8x256xi1>, vector<8x256xf32>
    %c0_353 = arith.constant 0 : index
    %c0_354 = arith.constant 0 : index
    %489 = vector.load %arg6[%c0_353, %c0_354] : memref<8x256xf32, #tpu.memory_space<vmem>>, vector<8x256xf32>
    tpu.vector_store %arg6[%c0_353, %c0_354], %488 {strides = array<i32>} : memref<8x256xf32, #tpu.memory_space<vmem>>, vector<8x256xf32>,
    return
  }
  func.func @transform_0(%arg0: i32) -> (i32, i32) {
    %c0_i32 = arith.constant 0 : i32
    %c0_i32_0 = arith.constant 0 : i32
    return %arg0, %c0_i32 : i32, i32
  }
  func.func @transform_1(%arg0: i32) -> (i32, i32) {
    %c0_i32 = arith.constant 0 : i32
    %c0_i32_0 = arith.constant 0 : i32
    return %arg0, %c0_i32 : i32, i32
  }
  func.func @transform_2(%arg0: i32) -> (i32, i32) {
    %c0_i32 = arith.constant 0 : i32
    %c0_i32_0 = arith.constant 0 : i32
    %c0_i32_1 = arith.constant 0 : i32
    return %c0_i32, %c0_i32_0 : i32, i32
  }
  func.func @transform_3(%arg0: i32) -> (i32, i32) {
    %c0_i32 = arith.constant 0 : i32
    %c0_i32_0 = arith.constant 0 : i32
    %c0_i32_1 = arith.constant 0 : i32
    return %c0_i32, %c0_i32_0 : i32, i32
  }
  func.func @transform_4(%arg0: i32) -> (i32, i32) {
    %c0_i32 = arith.constant 0 : i32
    %c0_i32_0 = arith.constant 0 : i32
    %c0_i32_1 = arith.constant 0 : i32
    return %c0_i32, %c0_i32_0 : i32, i32
  }
  func.func @transform_5(%arg0: i32) -> (i32, i32) {
    %c0_i32 = arith.constant 0 : i32
    %c0_i32_0 = arith.constant 0 : i32
    return %arg0, %c0_i32 : i32, i32
  }
}

</mosaic_0001>

<llo_original>
// kernel: tpu_custom_call.1
$region0: #{tpu_custom_call.1}
  #allocation0 [shape = 'u32[]', space=smem, size = 0x4, offset = 0x4, fixed_abs, tag = 'smem constant byte address 0x4 - core index']
  #allocation1 [shape = 'u32[144,128]{1,0:T(1,128)}', space=vmem, size = 0x12000, scoped, tag = 'internal scratch']
  #allocation2 [shape = 'f32[10,256]{1,0:T(8,128)}', space=vmem, size = 0x4000, scoped, tag = 'scratch operand']
  #allocation3 [shape = 'f32[8,256]{1,0:T(8,128)}', space=vmem, size = 0x2000, scoped, tag = 'scratch operand']
  %s0 = inlined_call_operand.vmem [shape: f32[8,256], index: 0, kind: input, shape index: {}]
  %s1 = inlined_call_operand.vmem [shape: f32[8,256], index: 1, kind: input, shape index: {}]
  %s2 = inlined_call_operand.vmem [shape: f32[4,256], index: 2, kind: input, shape index: {}]
  %s3 = inlined_call_operand.vmem [shape: f32[150,10], index: 3, kind: input, shape index: {}]
  %s4 = inlined_call_operand.vmem [shape: f32[1,150], index: 4, kind: input, shape index: {}]
  %s5 = inlined_call_operand.hbm [shape: f32[8,256], index: 5, kind: output, shape index: {}]
  %s6 = sld [smem:[#allocation0]]
  $region30: #{tpu_custom_call.1} parent=0
    _
  %s8 = ssub.s32 1, %s6
  %s9 = scalar_select 0, %s8, %s6
  $region1: #{tpu_custom_call.1} parent=0
    #allocation4 [shape = 'u8[8192]{0}', space=vmem, size = 0x2000, scoped, tag = 'output window, operand 0, single buffered']
    #allocation5 [shape = 's32[1]{0}', space=sflag, size = 0x4, scoped, tag = 'scoped memory for tpu_custom_call.1']
    %10 = vsyncpa [#allocation5], 0
    // Predicated region
    $region2: #{tpu_custom_call.1} parent=1 // pred_check
      _
    $region3: #{tpu_custom_call.1} parent=1 // pred_check_branch
      %12 = sbr.rel (0) target = $region5
    $region4: #{tpu_custom_call.1} parent=1 // pred_region
      _
    $region5: #{tpu_custom_call.1} parent=1 // pred_fallthru
      _
    // Predicated region
    $region6: #{tpu_custom_call.1} parent=1 // pred_check
      _
    $region7: #{tpu_custom_call.1} parent=1 // pred_check_branch
      %14 = sbr.rel (0) target = $region9
    $region8: #{tpu_custom_call.1} parent=1 // pred_region
      _
    $region9: #{tpu_custom_call.1} parent=1 // pred_fallthru
      _
    // Predicated region
    $region10: #{tpu_custom_call.1} parent=1 // pred_check
      _
    $region11: #{tpu_custom_call.1} parent=1 // pred_check_branch
      %16 = sbr.rel (0) target = $region13
    $region12: #{tpu_custom_call.1} parent=1 // pred_region
      _
    $region13: #{tpu_custom_call.1} parent=1 // pred_fallthru
      _
    // Predicated region
    $region14: #{tpu_custom_call.1} parent=1 // pred_check
      _
    $region15: #{tpu_custom_call.1} parent=1 // pred_check_branch
      %18 = sbr.rel (0) target = $region17
    $region16: #{tpu_custom_call.1} parent=1 // pred_region
      _
    $region17: #{tpu_custom_call.1} parent=1 // pred_fallthru
      _
    // Predicated region
    $region18: #{tpu_custom_call.1} parent=1 // pred_check
      _
    $region19: #{tpu_custom_call.1} parent=1 // pred_check_branch
      %20 = sbr.rel (0) target = $region21
    $region20: #{tpu_custom_call.1} parent=1 // pred_region
      _
    $region21: #{tpu_custom_call.1} parent=1 // pred_fallthru
      _
    %v21 = vld [vmem:[%s0] sm:$0xff]
    %v22 = vld [vmem:[%s0 + $0x8] sm:$0xff]
    %v23 = vld [vmem:[%s1] sm:$0xff]
    %v24 = vld [vmem:[%s1 + $0x8] sm:$0xff]
    %v25 = vld [vmem:[%s2] ss:$4 sm:$0x3]
    %vm26 = vcmp.ne.f32.partialorder %v25, 0.0
    %v27 = vsel %vm26, 1, 0
    %v28 = vlaneseq
    %v29 = vshrl.u32 %v28, 7
    %v30 = vsub.s32 0, %v29
    %v31 = vrot.slane %v27, %v30
    %v32 = vlaneseq
    %v33 = vshrl.u32 %v32, 7
    %v34 = vsub.s32 1, %v33
    %v35 = vrot.slane %v27, %v34
    %vm36 = vcmp.eq.s32.totalorder %v31, 1
    %vm37 = vcmp.eq.s32.totalorder %v35, 1
    %s38 = scalar_lea.vmem %s2, 1
    %v39 = vld [vmem:[%s38] ss:$4 sm:$0x3]
    %vm40 = vcmp.ne.f32.partialorder %v39, 0.0
    %v41 = vsel %vm40, 1, 0
    %v42 = vlaneseq
    %v43 = vshrl.u32 %v42, 7
    %v44 = vsub.s32 0, %v43
    %v45 = vrot.slane %v41, %v44
    %v46 = vlaneseq
    %v47 = vshrl.u32 %v46, 7
    %v48 = vsub.s32 1, %v47
    %v49 = vrot.slane %v41, %v48
    %vm50 = vcmp.eq.s32.totalorder %v45, 1
    %vm51 = vcmp.eq.s32.totalorder %v49, 1
    %s52 = scalar_lea.vmem %s2, 2
    %v53 = vld [vmem:[%s52] ss:$4 sm:$0x3]
    %vm54 = vcmp.ne.f32.partialorder %v53, 0.0
    %v55 = vsel %vm54, 1, 0
    %v56 = vlaneseq
    %v57 = vshrl.u32 %v56, 7
    %v58 = vsub.s32 0, %v57
    %v59 = vrot.slane %v55, %v58
    %v60 = vlaneseq
    %v61 = vshrl.u32 %v60, 7
    %v62 = vsub.s32 1, %v61
    %v63 = vrot.slane %v55, %v62
    %vm64 = vcmp.eq.s32.totalorder %v59, 1
    %vm65 = vcmp.eq.s32.totalorder %v63, 1
    %s66 = scalar_lea.vmem %s2, 3
    %v67 = vld [vmem:[%s66] ss:$4 sm:$0x3]
    %vm68 = vcmp.ne.f32.partialorder %v67, 0.0
    %v69 = vsel %vm68, 1, 0
    %v70 = vlaneseq
    %v71 = vshrl.u32 %v70, 7
    %v72 = vsub.s32 0, %v71
    %v73 = vrot.slane %v69, %v72
    %v74 = vlaneseq
    %v75 = vshrl.u32 %v74, 7
    %v76 = vsub.s32 1, %v75
    %v77 = vrot.slane %v69, %v76
    %vm78 = vcmp.eq.s32.totalorder %v73, 1
    %vm79 = vcmp.eq.s32.totalorder %v77, 1
    %80 = vrot.lane.b32.xlu0 %v21, 16
    %v81 = vpop.permute.xlu0 %80
    %82 = vrot.lane.b32.xlu0 %v22, 16
    %v83 = vpop.permute.xlu0 %82
    %v84 = vlaneseq
    %v85 = vand.u32 %v84, 127
    %vm86 = vcmp.lt.s32.totalorder %v85, 16
    %v87 = vsel %vm86, %v81, %v83
    %v88 = vsel %vm86, %v83, %v81
    %v89 = vsel %vm36, 0.0, %v88
    %v90 = vsel %vm37, 0.0, %v87
    %91 = vrot.lane.b32.xlu0 %v89, 1
    %v92 = vpop.permute.xlu0 %91
    %93 = vrot.lane.b32.xlu0 %v90, 1
    %v94 = vpop.permute.xlu0 %93
    %vm95 = vcmp.lt.s32.totalorder %v85, 1
    %v96 = vsel %vm95, %v92, %v94
    %v97 = vsel %vm95, %v94, %v92
    %v98 = vsel %vm64, 0.0, %v97
    %v99 = vsel %vm65, 0.0, %v96
    %100 = vrot.lane.b32.xlu0 %v89, 127
    %v101 = vpop.permute.xlu0 %100
    %102 = vrot.lane.b32.xlu0 %v90, 127
    %v103 = vpop.permute.xlu0 %102
    %vm104 = vcmp.lt.s32.totalorder %v85, 127
    %v105 = vsel %vm104, %v101, %v103
    %v106 = vsel %vm104, %v103, %v101
    %v107 = vsel %vm78, 0.0, %v105
    %v108 = vsel %vm79, 0.0, %v106
    %109 = vrot.lane.b32.xlu0 %v21, 1
    %v110 = vpop.permute.xlu0 %109
    %111 = vrot.lane.b32.xlu0 %v22, 1
    %v112 = vpop.permute.xlu0 %111
    %v113 = vsel %vm95, %v110, %v112
    %v114 = vsel %vm95, %v112, %v110
    %v115 = vsel %vm64, 0.0, %v114
    %v116 = vsel %vm65, 0.0, %v113
    %117 = vrot.lane.b32.xlu0 %v21, 127
    %v118 = vpop.permute.xlu0 %117
    %119 = vrot.lane.b32.xlu0 %v22, 127
    %v120 = vpop.permute.xlu0 %119
    %v121 = vsel %vm104, %v118, %v120
    %v122 = vsel %vm104, %v120, %v118
    %v123 = vsel %vm78, 0.0, %v121
    %v124 = vsel %vm79, 0.0, %v122
    %125 = vrot.lane.b32.xlu0 %v21, 112
    %v126 = vpop.permute.xlu0 %125
    %127 = vrot.lane.b32.xlu0 %v22, 112
    %v128 = vpop.permute.xlu0 %127
    %vm129 = vcmp.lt.s32.totalorder %v85, 112
    %v130 = vsel %vm129, %v126, %v128
    %v131 = vsel %vm129, %v128, %v126
    %v132 = vsel %vm50, 0.0, %v130
    %v133 = vsel %vm51, 0.0, %v131
    %134 = vrot.lane.b32.xlu0 %v132, 1
    %v135 = vpop.permute.xlu0 %134
    %136 = vrot.lane.b32.xlu0 %v133, 1
    %v137 = vpop.permute.xlu0 %136
    %v138 = vsel %vm95, %v135, %v137
    %v139 = vsel %vm95, %v137, %v135
    %v140 = vsel %vm64, 0.0, %v139
    %v141 = vsel %vm65, 0.0, %v138
    %142 = vrot.lane.b32.xlu0 %v132, 127
    %v143 = vpop.permute.xlu0 %142
    %144 = vrot.lane.b32.xlu0 %v133, 127
    %v145 = vpop.permute.xlu0 %144
    %v146 = vsel %vm104, %v143, %v145
    %v147 = vsel %vm104, %v145, %v143
    %v148 = vsel %vm78, 0.0, %v146
    %v149 = vsel %vm79, 0.0, %v147
    %v150 = vlaneseq
    %vm151 = vcmp.ge.s32.totalorder %v150, 0
    %vm152 = vcmp.lt.s32.totalorder %v150, 256
    %vm153 = vmand %vm151, %vm152
    %s154 = scalar_lea.vmem [#allocation2], 17
    %155 = vst.msk [vmem:[%s154] ss:$8 sm:$0x3] %vm153, 1.0
    %156 = vst.msk [vmem:[%s154] ss:$8 sm:$0x0] %vm153, 1.0
    %v159 = vcombine.low %v98, %v99
    %v161 = vunpack.c.l.s4 1966171168
    %v162 = vunpack.c.0.s8 %v161
    %v163 = vlaneseq
    %v164 = vshrl.u32 %v163, 7
    %v165 = vsub.s32 %v162, %v164
    %v166 = vrot.slane %v159, %v165
    %v168 = vunpack.c.l.s4 1966171168
    %v169 = vunpack.c.0.s8 %v168
    %v170 = vlaneseq
    %v171 = vshrl.u32 %v170, 7
    %v172 = vsub.s32 %v169, %v171
    %v173 = vrot.slane %v166, %v172
    %175 = vst.msk [vmem:[#allocation2] ss:$8 sm:$0x3] %vm153, %v173
    %176 = vst.msk [vmem:[#allocation2] ss:$8 sm:$0x0] %vm153, %v173
    %v179 = vcombine.low %v89, %v90
    %v181 = vunpack.c.l.s4 1966171168
    %v182 = vunpack.c.0.s8 %v181
    %v183 = vlaneseq
    %v184 = vshrl.u32 %v183, 7
    %v185 = vsub.s32 %v182, %v184
    %v186 = vrot.slane %v179, %v185
    %v188 = vunpack.c.l.s4 1966171168
    %v189 = vunpack.c.0.s8 %v188
    %v190 = vlaneseq
    %v191 = vshrl.u32 %v190, 7
    %v192 = vsub.s32 %v189, %v191
    %v193 = vrot.slane %v186, %v192
    %s195 = scalar_lea.vmem [#allocation2], 1
    %196 = vst.msk [vmem:[%s195] ss:$8 sm:$0x3] %vm153, %v193
    %197 = vst.msk [vmem:[%s195] ss:$8 sm:$0x0] %vm153, %v193
    %v200 = vcombine.low %v107, %v108
    %v202 = vunpack.c.l.s4 1966171168
    %v203 = vunpack.c.0.s8 %v202
    %v204 = vlaneseq
    %v205 = vshrl.u32 %v204, 7
    %v206 = vsub.s32 %v203, %v205
    %v207 = vrot.slane %v200, %v206
    %v209 = vunpack.c.l.s4 1966171168
    %v210 = vunpack.c.0.s8 %v209
    %v211 = vlaneseq
    %v212 = vshrl.u32 %v211, 7
    %v213 = vsub.s32 %v210, %v212
    %v214 = vrot.slane %v207, %v213
    %s216 = scalar_lea.vmem [#allocation2], 2
    %217 = vst.msk [vmem:[%s216] ss:$8 sm:$0x3] %vm153, %v214
    %218 = vst.msk [vmem:[%s216] ss:$8 sm:$0x0] %vm153, %v214
    %v221 = vcombine.low %v115, %v116
    %v223 = vunpack.c.l.s4 1966171168
    %v224 = vunpack.c.0.s8 %v223
    %v225 = vlaneseq
    %v226 = vshrl.u32 %v225, 7
    %v227 = vsub.s32 %v224, %v226
    %v228 = vrot.slane %v221, %v227
    %v230 = vunpack.c.l.s4 1966171168
    %v231 = vunpack.c.0.s8 %v230
    %v232 = vlaneseq
    %v233 = vshrl.u32 %v232, 7
    %v234 = vsub.s32 %v231, %v233
    %v235 = vrot.slane %v228, %v234
    %s237 = scalar_lea.vmem [#allocation2], 3
    %238 = vst.msk [vmem:[%s237] ss:$8 sm:$0x3] %vm153, %v235
    %239 = vst.msk [vmem:[%s237] ss:$8 sm:$0x0] %vm153, %v235
    %v242 = vcombine.low %v21, %v22
    %v244 = vunpack.c.l.s4 1966171168
    %v245 = vunpack.c.0.s8 %v244
    %v246 = vlaneseq
    %v247 = vshrl.u32 %v246, 7
    %v248 = vsub.s32 %v245, %v247
    %v249 = vrot.slane %v242, %v248
    %v251 = vunpack.c.l.s4 1966171168
    %v252 = vunpack.c.0.s8 %v251
    %v253 = vlaneseq
    %v254 = vshrl.u32 %v253, 7
    %v255 = vsub.s32 %v252, %v254
    %v256 = vrot.slane %v249, %v255
    %s258 = scalar_lea.vmem [#allocation2], 4
    %259 = vst.msk [vmem:[%s258] ss:$8 sm:$0x3] %vm153, %v256
    %260 = vst.msk [vmem:[%s258] ss:$8 sm:$0x0] %vm153, %v256
    %v263 = vcombine.low %v123, %v124
    %v265 = vunpack.c.l.s4 1966171168
    %v266 = vunpack.c.0.s8 %v265
    %v267 = vlaneseq
    %v268 = vshrl.u32 %v267, 7
    %v269 = vsub.s32 %v266, %v268
    %v270 = vrot.slane %v263, %v269
    %v272 = vunpack.c.l.s4 1966171168
    %v273 = vunpack.c.0.s8 %v272
    %v274 = vlaneseq
    %v275 = vshrl.u32 %v274, 7
    %v276 = vsub.s32 %v273, %v275
    %v277 = vrot.slane %v270, %v276
    %s279 = scalar_lea.vmem [#allocation2], 5
    %280 = vst.msk [vmem:[%s279] ss:$8 sm:$0x3] %vm153, %v277
    %281 = vst.msk [vmem:[%s279] ss:$8 sm:$0x0] %vm153, %v277
    %v284 = vcombine.low %v140, %v141
    %v286 = vunpack.c.l.s4 1966171168
    %v287 = vunpack.c.0.s8 %v286
    %v288 = vlaneseq
    %v289 = vshrl.u32 %v288, 7
    %v290 = vsub.s32 %v287, %v289
    %v291 = vrot.slane %v284, %v290
    %v293 = vunpack.c.l.s4 1966171168
    %v294 = vunpack.c.0.s8 %v293
    %v295 = vlaneseq
    %v296 = vshrl.u32 %v295, 7
    %v297 = vsub.s32 %v294, %v296
    %v298 = vrot.slane %v291, %v297
    %s300 = scalar_lea.vmem [#allocation2], 6
    %301 = vst.msk [vmem:[%s300] ss:$8 sm:$0x3] %vm153, %v298
    %302 = vst.msk [vmem:[%s300] ss:$8 sm:$0x0] %vm153, %v298
    %v305 = vcombine.low %v132, %v133
    %v307 = vunpack.c.l.s4 1966171168
    %v308 = vunpack.c.0.s8 %v307
    %v309 = vlaneseq
    %v310 = vshrl.u32 %v309, 7
    %v311 = vsub.s32 %v308, %v310
    %v312 = vrot.slane %v305, %v311
    %v314 = vunpack.c.l.s4 1966171168
    %v315 = vunpack.c.0.s8 %v314
    %v316 = vlaneseq
    %v317 = vshrl.u32 %v316, 7
    %v318 = vsub.s32 %v315, %v317
    %v319 = vrot.slane %v312, %v318
    %s321 = scalar_lea.vmem [#allocation2], 7
    %322 = vst.msk [vmem:[%s321] ss:$8 sm:$0x3] %vm153, %v319
    %323 = vst.msk [vmem:[%s321] ss:$8 sm:$0x0] %vm153, %v319
    %v326 = vcombine.low %v148, %v149
    %v328 = vunpack.c.l.s4 1966171168
    %v329 = vunpack.c.0.s8 %v328
    %v330 = vlaneseq
    %v331 = vshrl.u32 %v330, 7
    %v332 = vsub.s32 %v329, %v331
    %v333 = vrot.slane %v326, %v332
    %v335 = vunpack.c.l.s4 1966171168
    %v336 = vunpack.c.0.s8 %v335
    %v337 = vlaneseq
    %v338 = vshrl.u32 %v337, 7
    %v339 = vsub.s32 %v336, %v338
    %v340 = vrot.slane %v333, %v339
    %s342 = scalar_lea.vmem [#allocation2], 16
    %343 = vst.msk [vmem:[%s342] ss:$8 sm:$0x3] %vm153, %v340
    %344 = vst.msk [vmem:[%s342] ss:$8 sm:$0x0] %vm153, %v340
    %v345 = vld [vmem:[%s3] sm:$0xff]
    %v346 = vld [vmem:[%s3 + $0x8] sm:$0xff]
    %v347 = vld [vmem:[%s3 + $0x10] sm:$0xff]
    %v348 = vld [vmem:[%s3 + $0x18] sm:$0xff]
    %v349 = vld [vmem:[%s3 + $0x20] sm:$0xff]
    %v350 = vld [vmem:[%s3 + $0x28] sm:$0xff]
    %v351 = vld [vmem:[%s3 + $0x30] sm:$0xff]
    %v352 = vld [vmem:[%s3 + $0x38] sm:$0xff]
    %v353 = vld [vmem:[%s3 + $0x40] sm:$0xff]
    %v354 = vld [vmem:[%s3 + $0x48] sm:$0xff]
    %v355 = vld [vmem:[%s3 + $0x50] sm:$0xff]
    %v356 = vld [vmem:[%s3 + $0x58] sm:$0xff]
    %v357 = vld [vmem:[%s3 + $0x60] sm:$0xff]
    %v358 = vld [vmem:[%s3 + $0x68] sm:$0xff]
    %v359 = vld [vmem:[%s3 + $0x70] sm:$0xff]
    %v360 = vld [vmem:[%s3 + $0x78] sm:$0xff]
    %v361 = vld [vmem:[%s3 + $0x80] sm:$0xff]
    %v362 = vld [vmem:[%s3 + $0x88] sm:$0xff]
    %v363 = vld [vmem:[%s3 + $0x90] sm:$0x3f]
    %v364 = vld [vmem:[#allocation2] sm:$0xff]
    %v365 = vld [vmem:[#allocation2 + $0x8] sm:$0xff]
    %v366 = vld [vmem:[#allocation2 + $0x10] sm:$0x3]
    %v367 = vld [vmem:[#allocation2 + $0x18] sm:$0x3]
    %vm368 = vcmask 80896
    %v370 = vsel %vm368, %v345, 0
    %v373 = vsel %vm368, %v346, 0
    %v376 = vsel %vm368, %v347, 0
    %v379 = vsel %vm368, %v348, 0
    %v382 = vsel %vm368, %v349, 0
    %v385 = vsel %vm368, %v350, 0
    %v388 = vsel %vm368, %v351, 0
    %v391 = vsel %vm368, %v352, 0
    %v394 = vsel %vm368, %v353, 0
    %v397 = vsel %vm368, %v354, 0
    %v400 = vsel %vm368, %v355, 0
    %v403 = vsel %vm368, %v356, 0
    %v406 = vsel %vm368, %v357, 0
    %v409 = vsel %vm368, %v358, 0
    %v412 = vsel %vm368, %v359, 0
    %v415 = vsel %vm368, %v360, 0
    %v418 = vsel %vm368, %v361, 0
    %v421 = vsel %vm368, %v362, 0
    %v424 = vsel %vm368, %v363, 0
    %vm426 = vcmask 1041408
    %v428 = vsel %vm426, %v366, 0
    %v431 = vsel %vm426, %v367, 0
    %433 = vmatprep.subr.mxu0 %v365
    %434 = vmatpush1.msra.mxu0 %v364
    %435 = vmatprep.subr.mxu0 %v431
    %436 = vmatpush1.msra.mxu0 %v428
    %437 = vmatprep.subr.mxu0 0.0
    %438 = vmatpush1.msra.mxu0 0.0
    %439 = vmatprep.subr.mxu0 0.0
    %440 = vmatpush1.msra.mxu0 0.0
    %441 = vmatprep.subr.mxu0 0.0
    %442 = vmatpush1.msra.mxu0 0.0
    %443 = vmatprep.subr.mxu0 0.0
    %444 = vmatpush1.msra.mxu0 0.0
    %445 = vmatprep.subr.mxu0 0.0
    %446 = vmatpush1.msra.mxu0 0.0
    %447 = vmatprep.subr.mxu0 0.0
    %448 = vmatpush1.msra.mxu0 0.0
    %449 = vmatprep.subr.mxu0 0.0
    %450 = vmatpush1.msra.mxu0 0.0
    %451 = vmatprep.subr.mxu0 0.0
    %452 = vmatpush1.msra.mxu0 0.0
    %453 = vmatprep.subr.mxu0 0.0
    %454 = vmatpush1.msra.mxu0 0.0
    %455 = vmatprep.subr.mxu0 0.0
    %456 = vmatpush1.msra.mxu0 0.0
    %457 = vmatprep.subr.mxu0 0.0
    %458 = vmatpush1.msra.mxu0 0.0
    %459 = vmatprep.subr.mxu0 0.0
    %460 = vmatpush1.msra.mxu0 0.0
    %461 = vmatprep.subr.mxu0 0.0
    %462 = vmatpush1.msra.mxu0 0.0
    %463 = vmatprep.subr.mxu0 0.0
    %464 = vmatpush1.msra.mxu0 0.0
    %465 = vmatprep.subr.mxu0 0.0
    %466 = vmatpush1.msra.mxu0 0.0
    %467 = vmatprep.subr.mxu0 0.0
    %468 = vmatpush1.msra.mxu0 0.0
    %469 = vmatprep.subr.mxu0 0.0
    %470 = vmatpush1.msra.mxu0 0.0
    %471 = vmatprep.subr.mxu0 0.0
    %472 = vmatpush1.msra.mxu0 0.0
    %473 = vmatprep.subr.mxu0 0.0
    %474 = vmatpush1.msra.mxu0 0.0
    %475 = vmatprep.subr.mxu0 0.0
    %476 = vmatpush1.msra.mxu0 0.0
    %477 = vmatprep.subr.mxu0 0.0
    %478 = vmatpush1.msra.mxu0 0.0
    %479 = vmatprep.subr.mxu0 0.0
    %480 = vmatpush1.msra.mxu0 0.0
    %481 = vmatprep.subr.mxu0 0.0
    %482 = vmatpush1.msra.mxu0 0.0
    %483 = vmatprep.subr.mxu0 0.0
    %484 = vmatpush1.msra.mxu0 0.0
    %485 = vmatprep.subr.mxu0 0.0
    %486 = vmatpush1.msra.mxu0 0.0
    %487 = vmatprep.subr.mxu0 0.0
    %488 = vmatpush1.msra.mxu0 0.0
    %489 = vmatprep.subr.mxu0 0.0
    %490 = vmatpush1.msra.mxu0 0.0
    %491 = vmatprep.subr.mxu0 0.0
    %492 = vmatpush1.msra.mxu0 0.0
    %493 = vmatprep.subr.mxu0 0.0
    %494 = vmatpush1.msra.mxu0 0.0
    %495 = vmatprep.subr.mxu0 0.0
    %496 = vmatpush1.msra.mxu0 0.0
    %497 = vmatprep.mubr.f32.mxu0 0.0
    %498 = vmatmul.mubr.f32.gmra.mrb[0].mxu0 %v370
    %v499 = vpop.f32.mrb[0].mxu0
    %v500 = vadd.f32 0.0, %v499
    %v501 = vpop.f32.mrb[0].mxu0
    %v502 = vadd.f32 0.0, %v501
    %503 = vmatprep.mubr.f32.mxu0 0.0
    %504 = vmatmul.mubr.f32.gmra.mrb[0].mxu0 %v373
    %v505 = vpop.f32.mrb[0].mxu0
    %v506 = vadd.f32 0.0, %v505
    %v507 = vpop.f32.mrb[0].mxu0
    %v508 = vadd.f32 0.0, %v507
    %509 = vmatprep.mubr.f32.mxu0 0.0
    %510 = vmatmul.mubr.f32.gmra.mrb[0].mxu0 %v376
    %v511 = vpop.f32.mrb[0].mxu0
    %v512 = vadd.f32 0.0, %v511
    %v513 = vpop.f32.mrb[0].mxu0
    %v514 = vadd.f32 0.0, %v513
    %515 = vmatprep.mubr.f32.mxu0 0.0
    %516 = vmatmul.mubr.f32.gmra.mrb[0].mxu0 %v379
    %v517 = vpop.f32.mrb[0].mxu0
    %v518 = vadd.f32 0.0, %v517
    %v519 = vpop.f32.mrb[0].mxu0
    %v520 = vadd.f32 0.0, %v519
    %521 = vmatprep.mubr.f32.mxu0 0.0
    %522 = vmatmul.mubr.f32.gmra.mrb[0].mxu0 %v382
    %v523 = vpop.f32.mrb[0].mxu0
    %v524 = vadd.f32 0.0, %v523
    %v525 = vpop.f32.mrb[0].mxu0
    %v526 = vadd.f32 0.0, %v525
    %527 = vmatprep.mubr.f32.mxu0 0.0
    %528 = vmatmul.mubr.f32.gmra.mrb[0].mxu0 %v385
    %v529 = vpop.f32.mrb[0].mxu0
    %v530 = vadd.f32 0.0, %v529
    %v531 = vpop.f32.mrb[0].mxu0
    %v532 = vadd.f32 0.0, %v531
    %533 = vmatprep.mubr.f32.mxu0 0.0
    %534 = vmatmul.mubr.f32.gmra.mrb[0].mxu0 %v388
    %v535 = vpop.f32.mrb[0].mxu0
    %v536 = vadd.f32 0.0, %v535
    %v537 = vpop.f32.mrb[0].mxu0
    %v538 = vadd.f32 0.0, %v537
    %539 = vmatprep.mubr.f32.mxu0 0.0
    %540 = vmatmul.mubr.f32.gmra.mrb[0].mxu0 %v391
    %v541 = vpop.f32.mrb[0].mxu0
    %v542 = vadd.f32 0.0, %v541
    %v543 = vpop.f32.mrb[0].mxu0
    %v544 = vadd.f32 0.0, %v543
    %545 = vmatprep.mubr.f32.mxu0 0.0
    %546 = vmatmul.mubr.f32.gmra.mrb[0].mxu0 %v394
    %v547 = vpop.f32.mrb[0].mxu0
    %v548 = vadd.f32 0.0, %v547
    %v549 = vpop.f32.mrb[0].mxu0
    %v550 = vadd.f32 0.0, %v549
    %551 = vmatprep.mubr.f32.mxu0 0.0
    %552 = vmatmul.mubr.f32.gmra.mrb[0].mxu0 %v397
    %v553 = vpop.f32.mrb[0].mxu0
    %v554 = vadd.f32 0.0, %v553
    %v555 = vpop.f32.mrb[0].mxu0
    %v556 = vadd.f32 0.0, %v555
    %557 = vmatprep.mubr.f32.mxu0 0.0
    %558 = vmatmul.mubr.f32.gmra.mrb[0].mxu0 %v400
    %v559 = vpop.f32.mrb[0].mxu0
    %v560 = vadd.f32 0.0, %v559
    %v561 = vpop.f32.mrb[0].mxu0
    %v562 = vadd.f32 0.0, %v561
    %563 = vmatprep.mubr.f32.mxu0 0.0
    %564 = vmatmul.mubr.f32.gmra.mrb[0].mxu0 %v403
    %v565 = vpop.f32.mrb[0].mxu0
    %v566 = vadd.f32 0.0, %v565
    %v567 = vpop.f32.mrb[0].mxu0
    %v568 = vadd.f32 0.0, %v567
    %569 = vmatprep.mubr.f32.mxu0 0.0
    %570 = vmatmul.mubr.f32.gmra.mrb[0].mxu0 %v406
    %v571 = vpop.f32.mrb[0].mxu0
    %v572 = vadd.f32 0.0, %v571
    %v573 = vpop.f32.mrb[0].mxu0
    %v574 = vadd.f32 0.0, %v573
    %575 = vmatprep.mubr.f32.mxu0 0.0
    %576 = vmatmul.mubr.f32.gmra.mrb[0].mxu0 %v409
    %v577 = vpop.f32.mrb[0].mxu0
    %v578 = vadd.f32 0.0, %v577
    %v579 = vpop.f32.mrb[0].mxu0
    %v580 = vadd.f32 0.0, %v579
    %581 = vmatprep.mubr.f32.mxu0 0.0
    %582 = vmatmul.mubr.f32.gmra.mrb[0].mxu0 %v412
    %v583 = vpop.f32.mrb[0].mxu0
    %v584 = vadd.f32 0.0, %v583
    %v585 = vpop.f32.mrb[0].mxu0
    %v586 = vadd.f32 0.0, %v585
    %587 = vmatprep.mubr.f32.mxu0 0.0
    %588 = vmatmul.mubr.f32.gmra.mrb[0].mxu0 %v415
    %v589 = vpop.f32.mrb[0].mxu0
    %v590 = vadd.f32 0.0, %v589
    %v591 = vpop.f32.mrb[0].mxu0
    %v592 = vadd.f32 0.0, %v591
    %593 = vmatprep.mubr.f32.mxu0 0.0
    %594 = vmatmul.mubr.f32.gmra.mrb[0].mxu0 %v418
    %v595 = vpop.f32.mrb[0].mxu0
    %v596 = vadd.f32 0.0, %v595
    %v597 = vpop.f32.mrb[0].mxu0
    %v598 = vadd.f32 0.0, %v597
    %599 = vmatprep.mubr.f32.mxu0 0.0
    %600 = vmatmul.mubr.f32.gmra.mrb[0].mxu0 %v421
    %v601 = vpop.f32.mrb[0].mxu0
    %v602 = vadd.f32 0.0, %v601
    %v603 = vpop.f32.mrb[0].mxu0
    %v604 = vadd.f32 0.0, %v603
    %605 = vmatprep.mubr.f32.mxu0 0.0
    %606 = vmatmul.mubr.f32.gmra.mrb[0].mxu0 %v424
    %v607 = vpop.f32.mrb[0].mxu0
    %v608 = vadd.f32 0.0, %v607
    %v609 = vpop.f32.mrb[0].mxu0
    %v610 = vadd.f32 0.0, %v609
    %611 = vdwg.mxu0
    %v612 = vmax.f32 %v500, 0.0
    %v613 = vmax.f32 %v502, 0.0
    %v614 = vmax.f32 %v506, 0.0
    %v615 = vmax.f32 %v508, 0.0
    %v616 = vmax.f32 %v512, 0.0
    %v617 = vmax.f32 %v514, 0.0
    %v618 = vmax.f32 %v518, 0.0
    %v619 = vmax.f32 %v520, 0.0
    %v620 = vmax.f32 %v524, 0.0
    %v621 = vmax.f32 %v526, 0.0
    %v622 = vmax.f32 %v530, 0.0
    %v623 = vmax.f32 %v532, 0.0
    %v624 = vmax.f32 %v536, 0.0
    %v625 = vmax.f32 %v538, 0.0
    %v626 = vmax.f32 %v542, 0.0
    %v627 = vmax.f32 %v544, 0.0
    %v628 = vmax.f32 %v548, 0.0
    %v629 = vmax.f32 %v550, 0.0
    %v630 = vmax.f32 %v554, 0.0
    %v631 = vmax.f32 %v556, 0.0
    %v632 = vmax.f32 %v560, 0.0
    %v633 = vmax.f32 %v562, 0.0
    %v634 = vmax.f32 %v566, 0.0
    %v635 = vmax.f32 %v568, 0.0
    %v636 = vmax.f32 %v572, 0.0
    %v637 = vmax.f32 %v574, 0.0
    %v638 = vmax.f32 %v578, 0.0
    %v639 = vmax.f32 %v580, 0.0
    %v640 = vmax.f32 %v584, 0.0
    %v641 = vmax.f32 %v586, 0.0
    %v642 = vmax.f32 %v590, 0.0
    %v643 = vmax.f32 %v592, 0.0
    %v644 = vmax.f32 %v596, 0.0
    %v645 = vmax.f32 %v598, 0.0
    %v646 = vmax.f32 %v602, 0.0
    %v647 = vmax.f32 %v604, 0.0
    %v648 = vmax.f32 %v608, 0.0
    %v649 = vmax.f32 %v610, 0.0
    %v650 = vld [vmem:[%s4] sm:$0x3]
    %v652 = vlaneseq
    %v653 = vshrl.u32 %v652, 7
    %v654 = vsub.s32 0, %v653
    %v655 = vrot.slane %v650, %v654
    %v656 = vlaneseq
    %v657 = vshrl.u32 %v656, 7
    %v658 = vsub.s32 1, %v657
    %v659 = vrot.slane %v650, %v658
    %vm661 = vcmask 179200
    %v662 = vsel %vm661, %v659, 0
    %vm664 = vcmask 1045504
    %v666 = vsel %vm664, %v648, 0
    %v669 = vsel %vm664, %v649, 0
    %671 = vmatprep.subr.mxu0 %v613
    %672 = vmatpush1.msra.mxu0 %v612
    %673 = vmatprep.subr.mxu0 %v615
    %674 = vmatpush1.msra.mxu0 %v614
    %675 = vmatprep.subr.mxu0 %v617
    %676 = vmatpush1.msra.mxu0 %v616
    %677 = vmatprep.subr.mxu0 %v619
    %678 = vmatpush1.msra.mxu0 %v618
    %679 = vmatprep.subr.mxu0 %v621
    %680 = vmatpush1.msra.mxu0 %v620
    %681 = vmatprep.subr.mxu0 %v623
    %682 = vmatpush1.msra.mxu0 %v622
    %683 = vmatprep.subr.mxu0 %v625
    %684 = vmatpush1.msra.mxu0 %v624
    %685 = vmatprep.subr.mxu0 %v627
    %686 = vmatpush1.msra.mxu0 %v626
    %687 = vmatprep.subr.mxu0 %v629
    %688 = vmatpush1.msra.mxu0 %v628
    %689 = vmatprep.subr.mxu0 %v631
    %690 = vmatpush1.msra.mxu0 %v630
    %691 = vmatprep.subr.mxu0 %v633
    %692 = vmatpush1.msra.mxu0 %v632
    %693 = vmatprep.subr.mxu0 %v635
    %694 = vmatpush1.msra.mxu0 %v634
    %695 = vmatprep.subr.mxu0 %v637
    %696 = vmatpush1.msra.mxu0 %v636
    %697 = vmatprep.subr.mxu0 %v639
    %698 = vmatpush1.msra.mxu0 %v638
    %699 = vmatprep.subr.mxu0 %v641
    %700 = vmatpush1.msra.mxu0 %v640
    %701 = vmatprep.subr.mxu0 %v643
    %702 = vmatpush1.msra.mxu0 %v642
    %703 = vmatprep.subr.mxu0 %v645
    %704 = vmatpush1.msra.mxu0 %v644
    %705 = vmatprep.subr.mxu0 %v647
    %706 = vmatpush1.msra.mxu0 %v646
    %707 = vmatprep.subr.mxu0 %v669
    %708 = vmatpush1.msra.mxu0 %v666
    %709 = vmatprep.subr.mxu0 0.0
    %710 = vmatpush1.msra.mxu0 0.0
    %711 = vmatprep.subr.mxu0 0.0
    %712 = vmatpush1.msra.mxu0 0.0
    %713 = vmatprep.subr.mxu0 0.0
    %714 = vmatpush1.msra.mxu0 0.0
    %715 = vmatprep.subr.mxu0 0.0
    %716 = vmatpush1.msra.mxu0 0.0
    %717 = vmatprep.subr.mxu0 0.0
    %718 = vmatpush1.msra.mxu0 0.0
    %719 = vmatprep.subr.mxu0 0.0
    %720 = vmatpush1.msra.mxu0 0.0
    %721 = vmatprep.subr.mxu0 0.0
    %722 = vmatpush1.msra.mxu0 0.0
    %723 = vmatprep.subr.mxu0 0.0
    %724 = vmatpush1.msra.mxu0 0.0
    %725 = vmatprep.subr.mxu0 0.0
    %726 = vmatpush1.msra.mxu0 0.0
    %727 = vmatprep.subr.mxu0 0.0
    %728 = vmatpush1.msra.mxu0 0.0
    %729 = vmatprep.subr.mxu0 0.0
    %730 = vmatpush1.msra.mxu0 0.0
    %731 = vmatprep.subr.mxu0 0.0
    %732 = vmatpush1.msra.mxu0 0.0
    %733 = vmatprep.subr.mxu0 0.0
    %734 = vmatpush1.msra.mxu0 0.0
    %735 = vmatprep.mubr.f32.mxu0 %v662
    %736 = vmatmul.mubr.f32.gmra.mrb[0].mxu0 %v655
    %v737 = vpop.f32.mrb[0].mxu0
    %v738 = vadd.f32 0.0, %v737
    %v739 = vpop.f32.mrb[0].mxu0
    %v740 = vadd.f32 0.0, %v739
    %741 = vdwg.mxu0
    %v742 = vsub.f32 0.0, %v738
    %v743 = vsub.f32 0.0, %v740
    %v744 = vmul.f32 %v742, 1.442695
    %v745 = vpow.pop %v744
    %v746 = vmul.f32 %v743, 1.442695
    %v747 = vpow.pop %v746
    %v748 = vadd.f32 %v745, 1.0
    %v749 = vadd.f32 %v747, 1.0
    %v750 = vrcp.pop %v748
    %v751 = vmul.f32 1.0, %v750
    %v752 = vrcp.pop %v749
    %v753 = vmul.f32 1.0, %v752
    %v756 = vcombine.low %v751, %v753
    %v758 = vunpack.c.l.s4 1966171168
    %v759 = vunpack.c.0.s8 %v758
    %v760 = vlaneseq
    %v761 = vshrl.u32 %v760, 7
    %v762 = vsub.s32 %v759, %v761
    %v763 = vrot.slane %v756, %v762
    %v765 = vunpack.c.l.s4 1966171168
    %v766 = vunpack.c.0.s8 %v765
    %v767 = vlaneseq
    %v768 = vshrl.u32 %v767, 7
    %v769 = vsub.s32 %v766, %v768
    %v770 = vrot.slane %v763, %v769
    %772 = vst.msk [vmem:[#allocation3] ss:$8 sm:$0x3] %vm153, %v770
    %773 = vst.msk [vmem:[#allocation3] ss:$8 sm:$0x0] %vm153, %v770
    %v774 = vcombine.high %v166, %v166
    %v776 = vunpack.c.l.s4 1966171168
    %v777 = vunpack.c.0.s8 %v776
    %v778 = vlaneseq
    %v779 = vshrl.u32 %v778, 7
    %v780 = vsub.s32 %v777, %v779
    %v781 = vrot.slane %v774, %v780
    %783 = vst.msk [vmem:[#allocation2] ss:$8 sm:$0x3] %vm153, %v781
    %784 = vst.msk [vmem:[#allocation2] ss:$8 sm:$0x0] %vm153, %v781
    %v785 = vcombine.high %v186, %v186
    %v787 = vunpack.c.l.s4 1966171168
    %v788 = vunpack.c.0.s8 %v787
    %v789 = vlaneseq
    %v790 = vshrl.u32 %v789, 7
    %v791 = vsub.s32 %v788, %v790
    %v792 = vrot.slane %v785, %v791
    %794 = vst.msk [vmem:[%s195] ss:$8 sm:$0x3] %vm153, %v792
    %795 = vst.msk [vmem:[%s195] ss:$8 sm:$0x0] %vm153, %v792
    %v796 = vcombine.high %v207, %v207
    %v798 = vunpack.c.l.s4 1966171168
    %v799 = vunpack.c.0.s8 %v798
    %v800 = vlaneseq
    %v801 = vshrl.u32 %v800, 7
    %v802 = vsub.s32 %v799, %v801
    %v803 = vrot.slane %v796, %v802
    %805 = vst.msk [vmem:[%s216] ss:$8 sm:$0x3] %vm153, %v803
    %806 = vst.msk [vmem:[%s216] ss:$8 sm:$0x0] %vm153, %v803
    %v807 = vcombine.high %v228, %v228
    %v809 = vunpack.c.l.s4 1966171168
    %v810 = vunpack.c.0.s8 %v809
    %v811 = vlaneseq
    %v812 = vshrl.u32 %v811, 7
    %v813 = vsub.s32 %v810, %v812
    %v814 = vrot.slane %v807, %v813
    %816 = vst.msk [vmem:[%s237] ss:$8 sm:$0x3] %vm153, %v814
    %817 = vst.msk [vmem:[%s237] ss:$8 sm:$0x0] %vm153, %v814
    %v818 = vcombine.high %v249, %v249
    %v820 = vunpack.c.l.s4 1966171168
    %v821 = vunpack.c.0.s8 %v820
    %v822 = vlaneseq
    %v823 = vshrl.u32 %v822, 7
    %v824 = vsub.s32 %v821, %v823
    %v825 = vrot.slane %v818, %v824
    %827 = vst.msk [vmem:[%s258] ss:$8 sm:$0x3] %vm153, %v825
    %828 = vst.msk [vmem:[%s258] ss:$8 sm:$0x0] %vm153, %v825
    %v829 = vcombine.high %v270, %v270
    %v831 = vunpack.c.l.s4 1966171168
    %v832 = vunpack.c.0.s8 %v831
    %v833 = vlaneseq
    %v834 = vshrl.u32 %v833, 7
    %v835 = vsub.s32 %v832, %v834
    %v836 = vrot.slane %v829, %v835
    %838 = vst.msk [vmem:[%s279] ss:$8 sm:$0x3] %vm153, %v836
    %839 = vst.msk [vmem:[%s279] ss:$8 sm:$0x0] %vm153, %v836
    %v840 = vcombine.high %v291, %v291
    %v842 = vunpack.c.l.s4 1966171168
    %v843 = vunpack.c.0.s8 %v842
    %v844 = vlaneseq
    %v845 = vshrl.u32 %v844, 7
    %v846 = vsub.s32 %v843, %v845
    %v847 = vrot.slane %v840, %v846
    %849 = vst.msk [vmem:[%s300] ss:$8 sm:$0x3] %vm153, %v847
    %850 = vst.msk [vmem:[%s300] ss:$8 sm:$0x0] %vm153, %v847
    %v851 = vcombine.high %v312, %v312
    %v853 = vunpack.c.l.s4 1966171168
    %v854 = vunpack.c.0.s8 %v853
    %v855 = vlaneseq
    %v856 = vshrl.u32 %v855, 7
    %v857 = vsub.s32 %v854, %v856
    %v858 = vrot.slane %v851, %v857
    %860 = vst.msk [vmem:[%s321] ss:$8 sm:$0x3] %vm153, %v858
    %861 = vst.msk [vmem:[%s321] ss:$8 sm:$0x0] %vm153, %v858
    %v862 = vcombine.high %v333, %v333
    %v864 = vunpack.c.l.s4 1966171168
    %v865 = vunpack.c.0.s8 %v864
    %v866 = vlaneseq
    %v867 = vshrl.u32 %v866, 7
    %v868 = vsub.s32 %v865, %v867
    %v869 = vrot.slane %v862, %v868
    %871 = vst.msk [vmem:[%s342] ss:$8 sm:$0x3] %vm153, %v869
    %872 = vst.msk [vmem:[%s342] ss:$8 sm:$0x0] %vm153, %v869
    %v873 = vld [vmem:[%s3] sm:$0xff]
    %v874 = vld [vmem:[%s3 + $0x8] sm:$0xff]
    %v875 = vld [vmem:[%s3 + $0x10] sm:$0xff]
    %v876 = vld [vmem:[%s3 + $0x18] sm:$0xff]
    %v877 = vld [vmem:[%s3 + $0x20] sm:$0xff]
    %v878 = vld [vmem:[%s3 + $0x28] sm:$0xff]
    %v879 = vld [vmem:[%s3 + $0x30] sm:$0xff]
    %v880 = vld [vmem:[%s3 + $0x38] sm:$0xff]
    %v881 = vld [vmem:[%s3 + $0x40] sm:$0xff]
    %v882 = vld [vmem:[%s3 + $0x48] sm:$0xff]
    %v883 = vld [vmem:[%s3 + $0x50] sm:$0xff]
    %v884 = vld [vmem:[%s3 + $0x58] sm:$0xff]
    %v885 = vld [vmem:[%s3 + $0x60] sm:$0xff]
    %v886 = vld [vmem:[%s3 + $0x68] sm:$0xff]
    %v887 = vld [vmem:[%s3 + $0x70] sm:$0xff]
    %v888 = vld [vmem:[%s3 + $0x78] sm:$0xff]
    %v889 = vld [vmem:[%s3 + $0x80] sm:$0xff]
    %v890 = vld [vmem:[%s3 + $0x88] sm:$0xff]
    %v891 = vld [vmem:[%s3 + $0x90] sm:$0x3f]
    %v892 = vld [vmem:[#allocation2] sm:$0xff]
    %v893 = vld [vmem:[#allocation2 + $0x8] sm:$0xff]
    %v894 = vld [vmem:[#allocation2 + $0x10] sm:$0x3]
    %v895 = vld [vmem:[#allocation2 + $0x18] sm:$0x3]
    %v897 = vsel %vm368, %v873, 0
    %v900 = vsel %vm368, %v874, 0
    %v903 = vsel %vm368, %v875, 0
    %v906 = vsel %vm368, %v876, 0
    %v909 = vsel %vm368, %v877, 0
    %v912 = vsel %vm368, %v878, 0
    %v915 = vsel %vm368, %v879, 0
    %v918 = vsel %vm368, %v880, 0
    %v921 = vsel %vm368, %v881, 0
    %v924 = vsel %vm368, %v882, 0
    %v927 = vsel %vm368, %v883, 0
    %v930 = vsel %vm368, %v884, 0
    %v933 = vsel %vm368, %v885, 0
    %v936 = vsel %vm368, %v886, 0
    %v939 = vsel %vm368, %v887, 0
    %v942 = vsel %vm368, %v888, 0
    %v945 = vsel %vm368, %v889, 0
    %v948 = vsel %vm368, %v890, 0
    %v951 = vsel %vm368, %v891, 0
    %v954 = vsel %vm426, %v894, 0
    %v957 = vsel %vm426, %v895, 0
    %959 = vmatprep.subr.mxu0 %v893
    %960 = vmatpush1.msra.mxu0 %v892
    %961 = vmatprep.subr.mxu0 %v957
    %962 = vmatpush1.msra.mxu0 %v954
    %963 = vmatprep.subr.mxu0 0.0
    %964 = vmatpush1.msra.mxu0 0.0
    %965 = vmatprep.subr.mxu0 0.0
    %966 = vmatpush1.msra.mxu0 0.0
    %967 = vmatprep.subr.mxu0 0.0
    %968 = vmatpush1.msra.mxu0 0.0
    %969 = vmatprep.subr.mxu0 0.0
    %970 = vmatpush1.msra.mxu0 0.0
    %971 = vmatprep.subr.mxu0 0.0
    %972 = vmatpush1.msra.mxu0 0.0
    %973 = vmatprep.subr.mxu0 0.0
    %974 = vmatpush1.msra.mxu0 0.0
    %975 = vmatprep.subr.mxu0 0.0
    %976 = vmatpush1.msra.mxu0 0.0
    %977 = vmatprep.subr.mxu0 0.0
    %978 = vmatpush1.msra.mxu0 0.0
    %979 = vmatprep.subr.mxu0 0.0
    %980 = vmatpush1.msra.mxu0 0.0
    %981 = vmatprep.subr.mxu0 0.0
    %982 = vmatpush1.msra.mxu0 0.0
    %983 = vmatprep.subr.mxu0 0.0
    %984 = vmatpush1.msra.mxu0 0.0
    %985 = vmatprep.subr.mxu0 0.0
    %986 = vmatpush1.msra.mxu0 0.0
    %987 = vmatprep.subr.mxu0 0.0
    %988 = vmatpush1.msra.mxu0 0.0
    %989 = vmatprep.subr.mxu0 0.0
    %990 = vmatpush1.msra.mxu0 0.0
    %991 = vmatprep.subr.mxu0 0.0
    %992 = vmatpush1.msra.mxu0 0.0
    %993 = vmatprep.subr.mxu0 0.0
    %994 = vmatpush1.msra.mxu0 0.0
    %995 = vmatprep.subr.mxu0 0.0
    %996 = vmatpush1.msra.mxu0 0.0
    %997 = vmatprep.subr.mxu0 0.0
    %998 = vmatpush1.msra.mxu0 0.0
    %999 = vmatprep.subr.mxu0 0.0
    %1000 = vmatpush1.msra.mxu0 0.0
    %1001 = vmatprep.subr.mxu0 0.0
    %1002 = vmatpush1.msra.mxu0 0.0
    %1003 = vmatprep.subr.mxu0 0.0
    %1004 = vmatpush1.msra.mxu0 0.0
    %1005 = vmatprep.subr.mxu0 0.0
    %1006 = vmatpush1.msra.mxu0 0.0
    %1007 = vmatprep.subr.mxu0 0.0
    %1008 = vmatpush1.msra.mxu0 0.0
    %1009 = vmatprep.subr.mxu0 0.0
    %1010 = vmatpush1.msra.mxu0 0.0
    %1011 = vmatprep.subr.mxu0 0.0
    %1012 = vmatpush1.msra.mxu0 0.0
    %1013 = vmatprep.subr.mxu0 0.0
    %1014 = vmatpush1.msra.mxu0 0.0
    %1015 = vmatprep.subr.mxu0 0.0
    %1016 = vmatpush1.msra.mxu0 0.0
    %1017 = vmatprep.subr.mxu0 0.0
    %1018 = vmatpush1.msra.mxu0 0.0
    %1019 = vmatprep.subr.mxu0 0.0
    %1020 = vmatpush1.msra.mxu0 0.0
    %1021 = vmatprep.subr.mxu0 0.0
    %1022 = vmatpush1.msra.mxu0 0.0
    %1023 = vmatprep.mubr.f32.mxu0 0.0
    %1024 = vmatmul.mubr.f32.gmra.mrb[0].mxu0 %v897
    %v1025 = vpop.f32.mrb[0].mxu0
    %v1026 = vadd.f32 0.0, %v1025
    %v1027 = vpop.f32.mrb[0].mxu0
    %v1028 = vadd.f32 0.0, %v1027
    %1029 = vmatprep.mubr.f32.mxu0 0.0
    %1030 = vmatmul.mubr.f32.gmra.mrb[0].mxu0 %v900
    %v1031 = vpop.f32.mrb[0].mxu0
    %v1032 = vadd.f32 0.0, %v1031
    %v1033 = vpop.f32.mrb[0].mxu0
    %v1034 = vadd.f32 0.0, %v1033
    %1035 = vmatprep.mubr.f32.mxu0 0.0
    %1036 = vmatmul.mubr.f32.gmra.mrb[0].mxu0 %v903
    %v1037 = vpop.f32.mrb[0].mxu0
    %v1038 = vadd.f32 0.0, %v1037
    %v1039 = vpop.f32.mrb[0].mxu0
    %v1040 = vadd.f32 0.0, %v1039
    %1041 = vmatprep.mubr.f32.mxu0 0.0
    %1042 = vmatmul.mubr.f32.gmra.mrb[0].mxu0 %v906
    %v1043 = vpop.f32.mrb[0].mxu0
    %v1044 = vadd.f32 0.0, %v1043
    %v1045 = vpop.f32.mrb[0].mxu0
    %v1046 = vadd.f32 0.0, %v1045
    %1047 = vmatprep.mubr.f32.mxu0 0.0
    %1048 = vmatmul.mubr.f32.gmra.mrb[0].mxu0 %v909
    %v1049 = vpop.f32.mrb[0].mxu0
    %v1050 = vadd.f32 0.0, %v1049
    %v1051 = vpop.f32.mrb[0].mxu0
    %v1052 = vadd.f32 0.0, %v1051
    %1053 = vmatprep.mubr.f32.mxu0 0.0
    %1054 = vmatmul.mubr.f32.gmra.mrb[0].mxu0 %v912
    %v1055 = vpop.f32.mrb[0].mxu0
    %v1056 = vadd.f32 0.0, %v1055
    %v1057 = vpop.f32.mrb[0].mxu0
    %v1058 = vadd.f32 0.0, %v1057
    %1059 = vmatprep.mubr.f32.mxu0 0.0
    %1060 = vmatmul.mubr.f32.gmra.mrb[0].mxu0 %v915
    %v1061 = vpop.f32.mrb[0].mxu0
    %v1062 = vadd.f32 0.0, %v1061
    %v1063 = vpop.f32.mrb[0].mxu0
    %v1064 = vadd.f32 0.0, %v1063
    %1065 = vmatprep.mubr.f32.mxu0 0.0
    %1066 = vmatmul.mubr.f32.gmra.mrb[0].mxu0 %v918
    %v1067 = vpop.f32.mrb[0].mxu0
    %v1068 = vadd.f32 0.0, %v1067
    %v1069 = vpop.f32.mrb[0].mxu0
    %v1070 = vadd.f32 0.0, %v1069
    %1071 = vmatprep.mubr.f32.mxu0 0.0
    %1072 = vmatmul.mubr.f32.gmra.mrb[0].mxu0 %v921
    %v1073 = vpop.f32.mrb[0].mxu0
    %v1074 = vadd.f32 0.0, %v1073
    %v1075 = vpop.f32.mrb[0].mxu0
    %v1076 = vadd.f32 0.0, %v1075
    %1077 = vmatprep.mubr.f32.mxu0 0.0
    %1078 = vmatmul.mubr.f32.gmra.mrb[0].mxu0 %v924
    %v1079 = vpop.f32.mrb[0].mxu0
    %v1080 = vadd.f32 0.0, %v1079
    %v1081 = vpop.f32.mrb[0].mxu0
    %v1082 = vadd.f32 0.0, %v1081
    %1083 = vmatprep.mubr.f32.mxu0 0.0
    %1084 = vmatmul.mubr.f32.gmra.mrb[0].mxu0 %v927
    %v1085 = vpop.f32.mrb[0].mxu0
    %v1086 = vadd.f32 0.0, %v1085
    %v1087 = vpop.f32.mrb[0].mxu0
    %v1088 = vadd.f32 0.0, %v1087
    %1089 = vmatprep.mubr.f32.mxu0 0.0
    %1090 = vmatmul.mubr.f32.gmra.mrb[0].mxu0 %v930
    %v1091 = vpop.f32.mrb[0].mxu0
    %v1092 = vadd.f32 0.0, %v1091
    %v1093 = vpop.f32.mrb[0].mxu0
    %v1094 = vadd.f32 0.0, %v1093
    %1095 = vmatprep.mubr.f32.mxu0 0.0
    %1096 = vmatmul.mubr.f32.gmra.mrb[0].mxu0 %v933
    %v1097 = vpop.f32.mrb[0].mxu0
    %v1098 = vadd.f32 0.0, %v1097
    %v1099 = vpop.f32.mrb[0].mxu0
    %v1100 = vadd.f32 0.0, %v1099
    %1101 = vmatprep.mubr.f32.mxu0 0.0
    %1102 = vmatmul.mubr.f32.gmra.mrb[0].mxu0 %v936
    %v1103 = vpop.f32.mrb[0].mxu0
    %v1104 = vadd.f32 0.0, %v1103
    %v1105 = vpop.f32.mrb[0].mxu0
    %v1106 = vadd.f32 0.0, %v1105
    %1107 = vmatprep.mubr.f32.mxu0 0.0
    %1108 = vmatmul.mubr.f32.gmra.mrb[0].mxu0 %v939
    %v1109 = vpop.f32.mrb[0].mxu0
    %v1110 = vadd.f32 0.0, %v1109
    %v1111 = vpop.f32.mrb[0].mxu0
    %v1112 = vadd.f32 0.0, %v1111
    %1113 = vmatprep.mubr.f32.mxu0 0.0
    %1114 = vmatmul.mubr.f32.gmra.mrb[0].mxu0 %v942
    %v1115 = vpop.f32.mrb[0].mxu0
    %v1116 = vadd.f32 0.0, %v1115
    %v1117 = vpop.f32.mrb[0].mxu0
    %v1118 = vadd.f32 0.0, %v1117
    %1119 = vmatprep.mubr.f32.mxu0 0.0
    %1120 = vmatmul.mubr.f32.gmra.mrb[0].mxu0 %v945
    %v1121 = vpop.f32.mrb[0].mxu0
    %v1122 = vadd.f32 0.0, %v1121
    %v1123 = vpop.f32.mrb[0].mxu0
    %v1124 = vadd.f32 0.0, %v1123
    %1125 = vmatprep.mubr.f32.mxu0 0.0
    %1126 = vmatmul.mubr.f32.gmra.mrb[0].mxu0 %v948
    %v1127 = vpop.f32.mrb[0].mxu0
    %v1128 = vadd.f32 0.0, %v1127
    %v1129 = vpop.f32.mrb[0].mxu0
    %v1130 = vadd.f32 0.0, %v1129
    %1131 = vmatprep.mubr.f32.mxu0 0.0
    %1132 = vmatmul.mubr.f32.gmra.mrb[0].mxu0 %v951
    %v1133 = vpop.f32.mrb[0].mxu0
    %v1134 = vadd.f32 0.0, %v1133
    %v1135 = vpop.f32.mrb[0].mxu0
    %v1136 = vadd.f32 0.0, %v1135
    %1137 = vdwg.mxu0
    %v1138 = vmax.f32 %v1026, 0.0
    %v1139 = vmax.f32 %v1028, 0.0
    %v1140 = vmax.f32 %v1032, 0.0
    %v1141 = vmax.f32 %v1034, 0.0
    %v1142 = vmax.f32 %v1038, 0.0
    %v1143 = vmax.f32 %v1040, 0.0
    %v1144 = vmax.f32 %v1044, 0.0
    %v1145 = vmax.f32 %v1046, 0.0
    %v1146 = vmax.f32 %v1050, 0.0
    %v1147 = vmax.f32 %v1052, 0.0
    %v1148 = vmax.f32 %v1056, 0.0
    %v1149 = vmax.f32 %v1058, 0.0
    %v1150 = vmax.f32 %v1062, 0.0
    %v1151 = vmax.f32 %v1064, 0.0
    %v1152 = vmax.f32 %v1068, 0.0
    %v1153 = vmax.f32 %v1070, 0.0
    %v1154 = vmax.f32 %v1074, 0.0
    %v1155 = vmax.f32 %v1076, 0.0
    %v1156 = vmax.f32 %v1080, 0.0
    %v1157 = vmax.f32 %v1082, 0.0
    %v1158 = vmax.f32 %v1086, 0.0
    %v1159 = vmax.f32 %v1088, 0.0
    %v1160 = vmax.f32 %v1092, 0.0
    %v1161 = vmax.f32 %v1094, 0.0
    %v1162 = vmax.f32 %v1098, 0.0
    %v1163 = vmax.f32 %v1100, 0.0
    %v1164 = vmax.f32 %v1104, 0.0
    %v1165 = vmax.f32 %v1106, 0.0
    %v1166 = vmax.f32 %v1110, 0.0
    %v1167 = vmax.f32 %v1112, 0.0
    %v1168 = vmax.f32 %v1116, 0.0
    %v1169 = vmax.f32 %v1118, 0.0
    %v1170 = vmax.f32 %v1122, 0.0
    %v1171 = vmax.f32 %v1124, 0.0
    %v1172 = vmax.f32 %v1128, 0.0
    %v1173 = vmax.f32 %v1130, 0.0
    %v1174 = vmax.f32 %v1134, 0.0
    %v1175 = vmax.f32 %v1136, 0.0
    %v1176 = vld [vmem:[%s4] sm:$0x3]
    %v1178 = vlaneseq
    %v1179 = vshrl.u32 %v1178, 7
    %v1180 = vsub.s32 0, %v1179
    %v1181 = vrot.slane %v1176, %v1180
    %v1182 = vlaneseq
    %v1183 = vshrl.u32 %v1182, 7
    %v1184 = vsub.s32 1, %v1183
    %v1185 = vrot.slane %v1176, %v1184
    %v1187 = vsel %vm661, %v1185, 0
    %v1190 = vsel %vm664, %v1174, 0
    %v1193 = vsel %vm664, %v1175, 0
    %1195 = vmatprep.subr.mxu0 %v1139
    %1196 = vmatpush1.msra.mxu0 %v1138
    %1197 = vmatprep.subr.mxu0 %v1141
    %1198 = vmatpush1.msra.mxu0 %v1140
    %1199 = vmatprep.subr.mxu0 %v1143
    %1200 = vmatpush1.msra.mxu0 %v1142
    %1201 = vmatprep.subr.mxu0 %v1145
    %1202 = vmatpush1.msra.mxu0 %v1144
    %1203 = vmatprep.subr.mxu0 %v1147
    %1204 = vmatpush1.msra.mxu0 %v1146
    %1205 = vmatprep.subr.mxu0 %v1149
    %1206 = vmatpush1.msra.mxu0 %v1148
    %1207 = vmatprep.subr.mxu0 %v1151
    %1208 = vmatpush1.msra.mxu0 %v1150
    %1209 = vmatprep.subr.mxu0 %v1153
    %1210 = vmatpush1.msra.mxu0 %v1152
    %1211 = vmatprep.subr.mxu0 %v1155
    %1212 = vmatpush1.msra.mxu0 %v1154
    %1213 = vmatprep.subr.mxu0 %v1157
    %1214 = vmatpush1.msra.mxu0 %v1156
    %1215 = vmatprep.subr.mxu0 %v1159
    %1216 = vmatpush1.msra.mxu0 %v1158
    %1217 = vmatprep.subr.mxu0 %v1161
    %1218 = vmatpush1.msra.mxu0 %v1160
    %1219 = vmatprep.subr.mxu0 %v1163
    %1220 = vmatpush1.msra.mxu0 %v1162
    %1221 = vmatprep.subr.mxu0 %v1165
    %1222 = vmatpush1.msra.mxu0 %v1164
    %1223 = vmatprep.subr.mxu0 %v1167
    %1224 = vmatpush1.msra.mxu0 %v1166
    %1225 = vmatprep.subr.mxu0 %v1169
    %1226 = vmatpush1.msra.mxu0 %v1168
    %1227 = vmatprep.subr.mxu0 %v1171
    %1228 = vmatpush1.msra.mxu0 %v1170
    %1229 = vmatprep.subr.mxu0 %v1173
    %1230 = vmatpush1.msra.mxu0 %v1172
    %1231 = vmatprep.subr.mxu0 %v1193
    %1232 = vmatpush1.msra.mxu0 %v1190
    %1233 = vmatprep.subr.mxu0 0.0
    %1234 = vmatpush1.msra.mxu0 0.0
    %1235 = vmatprep.subr.mxu0 0.0
    %1236 = vmatpush1.msra.mxu0 0.0
    %1237 = vmatprep.subr.mxu0 0.0
    %1238 = vmatpush1.msra.mxu0 0.0
    %1239 = vmatprep.subr.mxu0 0.0
    %1240 = vmatpush1.msra.mxu0 0.0
    %1241 = vmatprep.subr.mxu0 0.0
    %1242 = vmatpush1.msra.mxu0 0.0
    %1243 = vmatprep.subr.mxu0 0.0
    %1244 = vmatpush1.msra.mxu0 0.0
    %1245 = vmatprep.subr.mxu0 0.0
    %1246 = vmatpush1.msra.mxu0 0.0
    %1247 = vmatprep.subr.mxu0 0.0
    %1248 = vmatpush1.msra.mxu0 0.0
    %1249 = vmatprep.subr.mxu0 0.0
    %1250 = vmatpush1.msra.mxu0 0.0
    %1251 = vmatprep.subr.mxu0 0.0
    %1252 = vmatpush1.msra.mxu0 0.0
    %1253 = vmatprep.subr.mxu0 0.0
    %1254 = vmatpush1.msra.mxu0 0.0
    %1255 = vmatprep.subr.mxu0 0.0
    %1256 = vmatpush1.msra.mxu0 0.0
    %1257 = vmatprep.subr.mxu0 0.0
    %1258 = vmatpush1.msra.mxu0 0.0
    %1259 = vmatprep.mubr.f32.mxu0 %v1187
    %1260 = vmatmul.mubr.f32.gmra.mrb[0].mxu0 %v1181
    %v1261 = vpop.f32.mrb[0].mxu0
    %v1262 = vadd.f32 0.0, %v1261
    %v1263 = vpop.f32.mrb[0].mxu0
    %v1264 = vadd.f32 0.0, %v1263
    %1265 = vdwg.mxu0
    %v1266 = vsub.f32 0.0, %v1262
    %v1267 = vsub.f32 0.0, %v1264
    %v1268 = vmul.f32 %v1266, 1.442695
    %v1269 = vpow.pop %v1268
    %v1270 = vmul.f32 %v1267, 1.442695
    %v1271 = vpow.pop %v1270
    %v1272 = vadd.f32 %v1269, 1.0
    %v1273 = vadd.f32 %v1271, 1.0
    %v1274 = vrcp.pop %v1272
    %v1275 = vmul.f32 1.0, %v1274
    %v1276 = vrcp.pop %v1273
    %v1277 = vmul.f32 1.0, %v1276
    %v1280 = vcombine.low %v1275, %v1277
    %v1282 = vunpack.c.l.s4 1966171168
    %v1283 = vunpack.c.0.s8 %v1282
    %v1284 = vlaneseq
    %v1285 = vshrl.u32 %v1284, 7
    %v1286 = vsub.s32 %v1283, %v1285
    %v1287 = vrot.slane %v1280, %v1286
    %v1289 = vunpack.c.l.s4 1966171168
    %v1290 = vunpack.c.0.s8 %v1289
    %v1291 = vlaneseq
    %v1292 = vshrl.u32 %v1291, 7
    %v1293 = vsub.s32 %v1290, %v1292
    %v1294 = vrot.slane %v1287, %v1293
    %s1296 = scalar_lea.vmem [#allocation3], 1
    %1297 = vst.msk [vmem:[%s1296] ss:$8 sm:$0x3] %vm153, %v1294
    %1298 = vst.msk [vmem:[%s1296] ss:$8 sm:$0x0] %vm153, %v1294
    %v1299 = vcombine.high %v173, %v173
    %1301 = vst.msk [vmem:[#allocation2] ss:$8 sm:$0x3] %vm153, %v1299
    %1302 = vst.msk [vmem:[#allocation2] ss:$8 sm:$0x0] %vm153, %v1299
    %v1303 = vcombine.high %v193, %v193
    %1305 = vst.msk [vmem:[%s195] ss:$8 sm:$0x3] %vm153, %v1303
    %1306 = vst.msk [vmem:[%s195] ss:$8 sm:$0x0] %vm153, %v1303
    %v1307 = vcombine.high %v214, %v214
    %1309 = vst.msk [vmem:[%s216] ss:$8 sm:$0x3] %vm153, %v1307
    %1310 = vst.msk [vmem:[%s216] ss:$8 sm:$0x0] %vm153, %v1307
    %v1311 = vcombine.high %v235, %v235
    %1313 = vst.msk [vmem:[%s237] ss:$8 sm:$0x3] %vm153, %v1311
    %1314 = vst.msk [vmem:[%s237] ss:$8 sm:$0x0] %vm153, %v1311
    %v1315 = vcombine.high %v256, %v256
    %1317 = vst.msk [vmem:[%s258] ss:$8 sm:$0x3] %vm153, %v1315
    %1318 = vst.msk [vmem:[%s258] ss:$8 sm:$0x0] %vm153, %v1315
    %v1319 = vcombine.high %v277, %v277
    %1321 = vst.msk [vmem:[%s279] ss:$8 sm:$0x3] %vm153, %v1319
    %1322 = vst.msk [vmem:[%s279] ss:$8 sm:$0x0] %vm153, %v1319
    %v1323 = vcombine.high %v298, %v298
    %1325 = vst.msk [vmem:[%s300] ss:$8 sm:$0x3] %vm153, %v1323
    %1326 = vst.msk [vmem:[%s300] ss:$8 sm:$0x0] %vm153, %v1323
    %v1327 = vcombine.high %v319, %v319
    %1329 = vst.msk [vmem:[%s321] ss:$8 sm:$0x3] %vm153, %v1327
    %1330 = vst.msk [vmem:[%s321] ss:$8 sm:$0x0] %vm153, %v1327
    %v1331 = vcombine.high %v340, %v340
    %1333 = vst.msk [vmem:[%s342] ss:$8 sm:$0x3] %vm153, %v1331
    %1334 = vst.msk [vmem:[%s342] ss:$8 sm:$0x0] %vm153, %v1331
    %v1335 = vld [vmem:[%s3] sm:$0xff]
    %v1336 = vld [vmem:[%s3 + $0x8] sm:$0xff]
    %v1337 = vld [vmem:[%s3 + $0x10] sm:$0xff]
    %v1338 = vld [vmem:[%s3 + $0x18] sm:$0xff]
    %v1339 = vld [vmem:[%s3 + $0x20] sm:$0xff]
    %v1340 = vld [vmem:[%s3 + $0x28] sm:$0xff]
    %v1341 = vld [vmem:[%s3 + $0x30] sm:$0xff]
    %v1342 = vld [vmem:[%s3 + $0x38] sm:$0xff]
    %v1343 = vld [vmem:[%s3 + $0x40] sm:$0xff]
    %v1344 = vld [vmem:[%s3 + $0x48] sm:$0xff]
    %v1345 = vld [vmem:[%s3 + $0x50] sm:$0xff]
    %v1346 = vld [vmem:[%s3 + $0x58] sm:$0xff]
    %v1347 = vld [vmem:[%s3 + $0x60] sm:$0xff]
    %v1348 = vld [vmem:[%s3 + $0x68] sm:$0xff]
    %v1349 = vld [vmem:[%s3 + $0x70] sm:$0xff]
    %v1350 = vld [vmem:[%s3 + $0x78] sm:$0xff]
    %v1351 = vld [vmem:[%s3 + $0x80] sm:$0xff]
    %v1352 = vld [vmem:[%s3 + $0x88] sm:$0xff]
    %v1353 = vld [vmem:[%s3 + $0x90] sm:$0x3f]
    %v1354 = vld [vmem:[#allocation2] sm:$0xff]
    %v1355 = vld [vmem:[#allocation2 + $0x8] sm:$0xff]
    %v1356 = vld [vmem:[#allocation2 + $0x10] sm:$0x3]
    %v1357 = vld [vmem:[#allocation2 + $0x18] sm:$0x3]
    %v1359 = vsel %vm368, %v1335, 0
    %v1362 = vsel %vm368, %v1336, 0
    %v1365 = vsel %vm368, %v1337, 0
    %v1368 = vsel %vm368, %v1338, 0
    %v1371 = vsel %vm368, %v1339, 0
    %v1374 = vsel %vm368, %v1340, 0
    %v1377 = vsel %vm368, %v1341, 0
    %v1380 = vsel %vm368, %v1342, 0
    %v1383 = vsel %vm368, %v1343, 0
    %v1386 = vsel %vm368, %v1344, 0
    %v1389 = vsel %vm368, %v1345, 0
    %v1392 = vsel %vm368, %v1346, 0
    %v1395 = vsel %vm368, %v1347, 0
    %v1398 = vsel %vm368, %v1348, 0
    %v1401 = vsel %vm368, %v1349, 0
    %v1404 = vsel %vm368, %v1350, 0
    %v1407 = vsel %vm368, %v1351, 0
    %v1410 = vsel %vm368, %v1352, 0
    %v1413 = vsel %vm368, %v1353, 0
    %v1416 = vsel %vm426, %v1356, 0
    %v1419 = vsel %vm426, %v1357, 0
    %1421 = vmatprep.subr.mxu0 %v1355
    %1422 = vmatpush1.msra.mxu0 %v1354
    %1423 = vmatprep.subr.mxu0 %v1419
    %1424 = vmatpush1.msra.mxu0 %v1416
    %1425 = vmatprep.subr.mxu0 0.0
    %1426 = vmatpush1.msra.mxu0 0.0
    %1427 = vmatprep.subr.mxu0 0.0
    %1428 = vmatpush1.msra.mxu0 0.0
    %1429 = vmatprep.subr.mxu0 0.0
    %1430 = vmatpush1.msra.mxu0 0.0
    %1431 = vmatprep.subr.mxu0 0.0
    %1432 = vmatpush1.msra.mxu0 0.0
    %1433 = vmatprep.subr.mxu0 0.0
    %1434 = vmatpush1.msra.mxu0 0.0
    %1435 = vmatprep.subr.mxu0 0.0
    %1436 = vmatpush1.msra.mxu0 0.0
    %1437 = vmatprep.subr.mxu0 0.0
    %1438 = vmatpush1.msra.mxu0 0.0
    %1439 = vmatprep.subr.mxu0 0.0
    %1440 = vmatpush1.msra.mxu0 0.0
    %1441 = vmatprep.subr.mxu0 0.0
    %1442 = vmatpush1.msra.mxu0 0.0
    %1443 = vmatprep.subr.mxu0 0.0
    %1444 = vmatpush1.msra.mxu0 0.0
    %1445 = vmatprep.subr.mxu0 0.0
    %1446 = vmatpush1.msra.mxu0 0.0
    %1447 = vmatprep.subr.mxu0 0.0
    %1448 = vmatpush1.msra.mxu0 0.0
    %1449 = vmatprep.subr.mxu0 0.0
    %1450 = vmatpush1.msra.mxu0 0.0
    %1451 = vmatprep.subr.mxu0 0.0
    %1452 = vmatpush1.msra.mxu0 0.0
    %1453 = vmatprep.subr.mxu0 0.0
    %1454 = vmatpush1.msra.mxu0 0.0
    %1455 = vmatprep.subr.mxu0 0.0
    %1456 = vmatpush1.msra.mxu0 0.0
    %1457 = vmatprep.subr.mxu0 0.0
    %1458 = vmatpush1.msra.mxu0 0.0
    %1459 = vmatprep.subr.mxu0 0.0
    %1460 = vmatpush1.msra.mxu0 0.0
    %1461 = vmatprep.subr.mxu0 0.0
    %1462 = vmatpush1.msra.mxu0 0.0
    %1463 = vmatprep.subr.mxu0 0.0
    %1464 = vmatpush1.msra.mxu0 0.0
    %1465 = vmatprep.subr.mxu0 0.0
    %1466 = vmatpush1.msra.mxu0 0.0
    %1467 = vmatprep.subr.mxu0 0.0
    %1468 = vmatpush1.msra.mxu0 0.0
    %1469 = vmatprep.subr.mxu0 0.0
    %1470 = vmatpush1.msra.mxu0 0.0
    %1471 = vmatprep.subr.mxu0 0.0
    %1472 = vmatpush1.msra.mxu0 0.0
    %1473 = vmatprep.subr.mxu0 0.0
    %1474 = vmatpush1.msra.mxu0 0.0
    %1475 = vmatprep.subr.mxu0 0.0
    %1476 = vmatpush1.msra.mxu0 0.0
    %1477 = vmatprep.subr.mxu0 0.0
    %1478 = vmatpush1.msra.mxu0 0.0
    %1479 = vmatprep.subr.mxu0 0.0
    %1480 = vmatpush1.msra.mxu0 0.0
    %1481 = vmatprep.subr.mxu0 0.0
    %1482 = vmatpush1.msra.mxu0 0.0
    %1483 = vmatprep.subr.mxu0 0.0
    %1484 = vmatpush1.msra.mxu0 0.0
    %1485 = vmatprep.mubr.f32.mxu0 0.0
    %1486 = vmatmul.mubr.f32.gmra.mrb[0].mxu0 %v1359
    %v1487 = vpop.f32.mrb[0].mxu0
    %v1488 = vadd.f32 0.0, %v1487
    %v1489 = vpop.f32.mrb[0].mxu0
    %v1490 = vadd.f32 0.0, %v1489
    %1491 = vmatprep.mubr.f32.mxu0 0.0
    %1492 = vmatmul.mubr.f32.gmra.mrb[0].mxu0 %v1362
    %v1493 = vpop.f32.mrb[0].mxu0
    %v1494 = vadd.f32 0.0, %v1493
    %v1495 = vpop.f32.mrb[0].mxu0
    %v1496 = vadd.f32 0.0, %v1495
    %1497 = vmatprep.mubr.f32.mxu0 0.0
    %1498 = vmatmul.mubr.f32.gmra.mrb[0].mxu0 %v1365
    %v1499 = vpop.f32.mrb[0].mxu0
    %v1500 = vadd.f32 0.0, %v1499
    %v1501 = vpop.f32.mrb[0].mxu0
    %v1502 = vadd.f32 0.0, %v1501
    %1503 = vmatprep.mubr.f32.mxu0 0.0
    %1504 = vmatmul.mubr.f32.gmra.mrb[0].mxu0 %v1368
    %v1505 = vpop.f32.mrb[0].mxu0
    %v1506 = vadd.f32 0.0, %v1505
    %v1507 = vpop.f32.mrb[0].mxu0
    %v1508 = vadd.f32 0.0, %v1507
    %1509 = vmatprep.mubr.f32.mxu0 0.0
    %1510 = vmatmul.mubr.f32.gmra.mrb[0].mxu0 %v1371
    %v1511 = vpop.f32.mrb[0].mxu0
    %v1512 = vadd.f32 0.0, %v1511
    %v1513 = vpop.f32.mrb[0].mxu0
    %v1514 = vadd.f32 0.0, %v1513
    %1515 = vmatprep.mubr.f32.mxu0 0.0
    %1516 = vmatmul.mubr.f32.gmra.mrb[0].mxu0 %v1374
    %v1517 = vpop.f32.mrb[0].mxu0
    %v1518 = vadd.f32 0.0, %v1517
    %v1519 = vpop.f32.mrb[0].mxu0
    %v1520 = vadd.f32 0.0, %v1519
    %1521 = vmatprep.mubr.f32.mxu0 0.0
    %1522 = vmatmul.mubr.f32.gmra.mrb[0].mxu0 %v1377
    %v1523 = vpop.f32.mrb[0].mxu0
    %v1524 = vadd.f32 0.0, %v1523
    %v1525 = vpop.f32.mrb[0].mxu0
    %v1526 = vadd.f32 0.0, %v1525
    %1527 = vmatprep.mubr.f32.mxu0 0.0
    %1528 = vmatmul.mubr.f32.gmra.mrb[0].mxu0 %v1380
    %v1529 = vpop.f32.mrb[0].mxu0
    %v1530 = vadd.f32 0.0, %v1529
    %v1531 = vpop.f32.mrb[0].mxu0
    %v1532 = vadd.f32 0.0, %v1531
    %1533 = vmatprep.mubr.f32.mxu0 0.0
    %1534 = vmatmul.mubr.f32.gmra.mrb[0].mxu0 %v1383
    %v1535 = vpop.f32.mrb[0].mxu0
    %v1536 = vadd.f32 0.0, %v1535
    %v1537 = vpop.f32.mrb[0].mxu0
    %v1538 = vadd.f32 0.0, %v1537
    %1539 = vmatprep.mubr.f32.mxu0 0.0
    %1540 = vmatmul.mubr.f32.gmra.mrb[0].mxu0 %v1386
    %v1541 = vpop.f32.mrb[0].mxu0
    %v1542 = vadd.f32 0.0, %v1541
    %v1543 = vpop.f32.mrb[0].mxu0
    %v1544 = vadd.f32 0.0, %v1543
    %1545 = vmatprep.mubr.f32.mxu0 0.0
    %1546 = vmatmul.mubr.f32.gmra.mrb[0].mxu0 %v1389
    %v1547 = vpop.f32.mrb[0].mxu0
    %v1548 = vadd.f32 0.0, %v1547
    %v1549 = vpop.f32.mrb[0].mxu0
    %v1550 = vadd.f32 0.0, %v1549
    %1551 = vmatprep.mubr.f32.mxu0 0.0
    %1552 = vmatmul.mubr.f32.gmra.mrb[0].mxu0 %v1392
    %v1553 = vpop.f32.mrb[0].mxu0
    %v1554 = vadd.f32 0.0, %v1553
    %v1555 = vpop.f32.mrb[0].mxu0
    %v1556 = vadd.f32 0.0, %v1555
    %1557 = vmatprep.mubr.f32.mxu0 0.0
    %1558 = vmatmul.mubr.f32.gmra.mrb[0].mxu0 %v1395
    %v1559 = vpop.f32.mrb[0].mxu0
    %v1560 = vadd.f32 0.0, %v1559
    %v1561 = vpop.f32.mrb[0].mxu0
    %v1562 = vadd.f32 0.0, %v1561
    %1563 = vmatprep.mubr.f32.mxu0 0.0
    %1564 = vmatmul.mubr.f32.gmra.mrb[0].mxu0 %v1398
    %v1565 = vpop.f32.mrb[0].mxu0
    %v1566 = vadd.f32 0.0, %v1565
    %v1567 = vpop.f32.mrb[0].mxu0
    %v1568 = vadd.f32 0.0, %v1567
    %1569 = vmatprep.mubr.f32.mxu0 0.0
    %1570 = vmatmul.mubr.f32.gmra.mrb[0].mxu0 %v1401
    %v1571 = vpop.f32.mrb[0].mxu0
    %v1572 = vadd.f32 0.0, %v1571
    %v1573 = vpop.f32.mrb[0].mxu0
    %v1574 = vadd.f32 0.0, %v1573
    %1575 = vmatprep.mubr.f32.mxu0 0.0
    %1576 = vmatmul.mubr.f32.gmra.mrb[0].mxu0 %v1404
    %v1577 = vpop.f32.mrb[0].mxu0
    %v1578 = vadd.f32 0.0, %v1577
    %v1579 = vpop.f32.mrb[0].mxu0
    %v1580 = vadd.f32 0.0, %v1579
    %1581 = vmatprep.mubr.f32.mxu0 0.0
    %1582 = vmatmul.mubr.f32.gmra.mrb[0].mxu0 %v1407
    %v1583 = vpop.f32.mrb[0].mxu0
    %v1584 = vadd.f32 0.0, %v1583
    %v1585 = vpop.f32.mrb[0].mxu0
    %v1586 = vadd.f32 0.0, %v1585
    %1587 = vmatprep.mubr.f32.mxu0 0.0
    %1588 = vmatmul.mubr.f32.gmra.mrb[0].mxu0 %v1410
    %v1589 = vpop.f32.mrb[0].mxu0
    %v1590 = vadd.f32 0.0, %v1589
    %v1591 = vpop.f32.mrb[0].mxu0
    %v1592 = vadd.f32 0.0, %v1591
    %1593 = vmatprep.mubr.f32.mxu0 0.0
    %1594 = vmatmul.mubr.f32.gmra.mrb[0].mxu0 %v1413
    %v1595 = vpop.f32.mrb[0].mxu0
    %v1596 = vadd.f32 0.0, %v1595
    %v1597 = vpop.f32.mrb[0].mxu0
    %v1598 = vadd.f32 0.0, %v1597
    %1599 = vdwg.mxu0
    %v1600 = vmax.f32 %v1488, 0.0
    %v1601 = vmax.f32 %v1490, 0.0
    %v1602 = vmax.f32 %v1494, 0.0
    %v1603 = vmax.f32 %v1496, 0.0
    %v1604 = vmax.f32 %v1500, 0.0
    %v1605 = vmax.f32 %v1502, 0.0
    %v1606 = vmax.f32 %v1506, 0.0
    %v1607 = vmax.f32 %v1508, 0.0
    %v1608 = vmax.f32 %v1512, 0.0
    %v1609 = vmax.f32 %v1514, 0.0
    %v1610 = vmax.f32 %v1518, 0.0
    %v1611 = vmax.f32 %v1520, 0.0
    %v1612 = vmax.f32 %v1524, 0.0
    %v1613 = vmax.f32 %v1526, 0.0
    %v1614 = vmax.f32 %v1530, 0.0
    %v1615 = vmax.f32 %v1532, 0.0
    %v1616 = vmax.f32 %v1536, 0.0
    %v1617 = vmax.f32 %v1538, 0.0
    %v1618 = vmax.f32 %v1542, 0.0
    %v1619 = vmax.f32 %v1544, 0.0
    %v1620 = vmax.f32 %v1548, 0.0
    %v1621 = vmax.f32 %v1550, 0.0
    %v1622 = vmax.f32 %v1554, 0.0
    %v1623 = vmax.f32 %v1556, 0.0
    %v1624 = vmax.f32 %v1560, 0.0
    %v1625 = vmax.f32 %v1562, 0.0
    %v1626 = vmax.f32 %v1566, 0.0
    %v1627 = vmax.f32 %v1568, 0.0
    %v1628 = vmax.f32 %v1572, 0.0
    %v1629 = vmax.f32 %v1574, 0.0
    %v1630 = vmax.f32 %v1578, 0.0
    %v1631 = vmax.f32 %v1580, 0.0
    %v1632 = vmax.f32 %v1584, 0.0
    %v1633 = vmax.f32 %v1586, 0.0
    %v1634 = vmax.f32 %v1590, 0.0
    %v1635 = vmax.f32 %v1592, 0.0
    %v1636 = vmax.f32 %v1596, 0.0
    %v1637 = vmax.f32 %v1598, 0.0
    %v1638 = vld [vmem:[%s4] sm:$0x3]
    %v1640 = vlaneseq
    %v1641 = vshrl.u32 %v1640, 7
    %v1642 = vsub.s32 0, %v1641
    %v1643 = vrot.slane %v1638, %v1642
    %v1644 = vlaneseq
    %v1645 = vshrl.u32 %v1644, 7
    %v1646 = vsub.s32 1, %v1645
    %v1647 = vrot.slane %v1638, %v1646
    %v1649 = vsel %vm661, %v1647, 0
    %v1652 = vsel %vm664, %v1636, 0
    %v1655 = vsel %vm664, %v1637, 0
    %1657 = vmatprep.subr.mxu0 %v1601
    %1658 = vmatpush1.msra.mxu0 %v1600
    %1659 = vmatprep.subr.mxu0 %v1603
    %1660 = vmatpush1.msra.mxu0 %v1602
    %1661 = vmatprep.subr.mxu0 %v1605
    %1662 = vmatpush1.msra.mxu0 %v1604
    %1663 = vmatprep.subr.mxu0 %v1607
    %1664 = vmatpush1.msra.mxu0 %v1606
    %1665 = vmatprep.subr.mxu0 %v1609
    %1666 = vmatpush1.msra.mxu0 %v1608
    %1667 = vmatprep.subr.mxu0 %v1611
    %1668 = vmatpush1.msra.mxu0 %v1610
    %1669 = vmatprep.subr.mxu0 %v1613
    %1670 = vmatpush1.msra.mxu0 %v1612
    %1671 = vmatprep.subr.mxu0 %v1615
    %1672 = vmatpush1.msra.mxu0 %v1614
    %1673 = vmatprep.subr.mxu0 %v1617
    %1674 = vmatpush1.msra.mxu0 %v1616
    %1675 = vmatprep.subr.mxu0 %v1619
    %1676 = vmatpush1.msra.mxu0 %v1618
    %1677 = vmatprep.subr.mxu0 %v1621
    %1678 = vmatpush1.msra.mxu0 %v1620
    %1679 = vmatprep.subr.mxu0 %v1623
    %1680 = vmatpush1.msra.mxu0 %v1622
    %1681 = vmatprep.subr.mxu0 %v1625
    %1682 = vmatpush1.msra.mxu0 %v1624
    %1683 = vmatprep.subr.mxu0 %v1627
    %1684 = vmatpush1.msra.mxu0 %v1626
    %1685 = vmatprep.subr.mxu0 %v1629
    %1686 = vmatpush1.msra.mxu0 %v1628
    %1687 = vmatprep.subr.mxu0 %v1631
    %1688 = vmatpush1.msra.mxu0 %v1630
    %1689 = vmatprep.subr.mxu0 %v1633
    %1690 = vmatpush1.msra.mxu0 %v1632
    %1691 = vmatprep.subr.mxu0 %v1635
    %1692 = vmatpush1.msra.mxu0 %v1634
    %1693 = vmatprep.subr.mxu0 %v1655
    %1694 = vmatpush1.msra.mxu0 %v1652
    %1695 = vmatprep.subr.mxu0 0.0
    %1696 = vmatpush1.msra.mxu0 0.0
    %1697 = vmatprep.subr.mxu0 0.0
    %1698 = vmatpush1.msra.mxu0 0.0
    %1699 = vmatprep.subr.mxu0 0.0
    %1700 = vmatpush1.msra.mxu0 0.0
    %1701 = vmatprep.subr.mxu0 0.0
    %1702 = vmatpush1.msra.mxu0 0.0
    %1703 = vmatprep.subr.mxu0 0.0
    %1704 = vmatpush1.msra.mxu0 0.0
    %1705 = vmatprep.subr.mxu0 0.0
    %1706 = vmatpush1.msra.mxu0 0.0
    %1707 = vmatprep.subr.mxu0 0.0
    %1708 = vmatpush1.msra.mxu0 0.0
    %1709 = vmatprep.subr.mxu0 0.0
    %1710 = vmatpush1.msra.mxu0 0.0
    %1711 = vmatprep.subr.mxu0 0.0
    %1712 = vmatpush1.msra.mxu0 0.0
    %1713 = vmatprep.subr.mxu0 0.0
    %1714 = vmatpush1.msra.mxu0 0.0
    %1715 = vmatprep.subr.mxu0 0.0
    %1716 = vmatpush1.msra.mxu0 0.0
    %1717 = vmatprep.subr.mxu0 0.0
    %1718 = vmatpush1.msra.mxu0 0.0
    %1719 = vmatprep.subr.mxu0 0.0
    %1720 = vmatpush1.msra.mxu0 0.0
    %1721 = vmatprep.mubr.f32.mxu0 %v1649
    %1722 = vmatmul.mubr.f32.gmra.mrb[0].mxu0 %v1643
    %v1723 = vpop.f32.mrb[0].mxu0
    %v1724 = vadd.f32 0.0, %v1723
    %v1725 = vpop.f32.mrb[0].mxu0
    %v1726 = vadd.f32 0.0, %v1725
    %1727 = vdwg.mxu0
    %v1728 = vsub.f32 0.0, %v1724
    %v1729 = vsub.f32 0.0, %v1726
    %v1730 = vmul.f32 %v1728, 1.442695
    %v1731 = vpow.pop %v1730
    %v1732 = vmul.f32 %v1729, 1.442695
    %v1733 = vpow.pop %v1732
    %v1734 = vadd.f32 %v1731, 1.0
    %v1735 = vadd.f32 %v1733, 1.0
    %v1736 = vrcp.pop %v1734
    %v1737 = vmul.f32 1.0, %v1736
    %v1738 = vrcp.pop %v1735
    %v1739 = vmul.f32 1.0, %v1738
    %v1742 = vcombine.low %v1737, %v1739
    %v1744 = vunpack.c.l.s4 1966171168
    %v1745 = vunpack.c.0.s8 %v1744
    %v1746 = vlaneseq
    %v1747 = vshrl.u32 %v1746, 7
    %v1748 = vsub.s32 %v1745, %v1747
    %v1749 = vrot.slane %v1742, %v1748
    %v1751 = vunpack.c.l.s4 1966171168
    %v1752 = vunpack.c.0.s8 %v1751
    %v1753 = vlaneseq
    %v1754 = vshrl.u32 %v1753, 7
    %v1755 = vsub.s32 %v1752, %v1754
    %v1756 = vrot.slane %v1749, %v1755
    %s1758 = scalar_lea.vmem [#allocation3], 2
    %1759 = vst.msk [vmem:[%s1758] ss:$8 sm:$0x3] %vm153, %v1756
    %1760 = vst.msk [vmem:[%s1758] ss:$8 sm:$0x0] %vm153, %v1756
    %v1761 = vcombine.high %v781, %v781
    %1763 = vst.msk [vmem:[#allocation2] ss:$8 sm:$0x3] %vm153, %v1761
    %1764 = vst.msk [vmem:[#allocation2] ss:$8 sm:$0x0] %vm153, %v1761
    %v1765 = vcombine.high %v792, %v792
    %1767 = vst.msk [vmem:[%s195] ss:$8 sm:$0x3] %vm153, %v1765
    %1768 = vst.msk [vmem:[%s195] ss:$8 sm:$0x0] %vm153, %v1765
    %v1769 = vcombine.high %v803, %v803
    %1771 = vst.msk [vmem:[%s216] ss:$8 sm:$0x3] %vm153, %v1769
    %1772 = vst.msk [vmem:[%s216] ss:$8 sm:$0x0] %vm153, %v1769
    %v1773 = vcombine.high %v814, %v814
    %1775 = vst.msk [vmem:[%s237] ss:$8 sm:$0x3] %vm153, %v1773
    %1776 = vst.msk [vmem:[%s237] ss:$8 sm:$0x0] %vm153, %v1773
    %v1777 = vcombine.high %v825, %v825
    %1779 = vst.msk [vmem:[%s258] ss:$8 sm:$0x3] %vm153, %v1777
    %1780 = vst.msk [vmem:[%s258] ss:$8 sm:$0x0] %vm153, %v1777
    %v1781 = vcombine.high %v836, %v836
    %1783 = vst.msk [vmem:[%s279] ss:$8 sm:$0x3] %vm153, %v1781
    %1784 = vst.msk [vmem:[%s279] ss:$8 sm:$0x0] %vm153, %v1781
    %v1785 = vcombine.high %v847, %v847
    %1787 = vst.msk [vmem:[%s300] ss:$8 sm:$0x3] %vm153, %v1785
    %1788 = vst.msk [vmem:[%s300] ss:$8 sm:$0x0] %vm153, %v1785
    %v1789 = vcombine.high %v858, %v858
    %1791 = vst.msk [vmem:[%s321] ss:$8 sm:$0x3] %vm153, %v1789
    %1792 = vst.msk [vmem:[%s321] ss:$8 sm:$0x0] %vm153, %v1789
    %v1793 = vcombine.high %v869, %v869
    %1795 = vst.msk [vmem:[%s342] ss:$8 sm:$0x3] %vm153, %v1793
    %1796 = vst.msk [vmem:[%s342] ss:$8 sm:$0x0] %vm153, %v1793
    %v1797 = vld [vmem:[%s3] sm:$0xff]
    %v1798 = vld [vmem:[%s3 + $0x8] sm:$0xff]
    %v1799 = vld [vmem:[%s3 + $0x10] sm:$0xff]
    %v1800 = vld [vmem:[%s3 + $0x18] sm:$0xff]
    %v1801 = vld [vmem:[%s3 + $0x20] sm:$0xff]
    %v1802 = vld [vmem:[%s3 + $0x28] sm:$0xff]
    %v1803 = vld [vmem:[%s3 + $0x30] sm:$0xff]
    %v1804 = vld [vmem:[%s3 + $0x38] sm:$0xff]
    %v1805 = vld [vmem:[%s3 + $0x40] sm:$0xff]
    %v1806 = vld [vmem:[%s3 + $0x48] sm:$0xff]
    %v1807 = vld [vmem:[%s3 + $0x50] sm:$0xff]
    %v1808 = vld [vmem:[%s3 + $0x58] sm:$0xff]
    %v1809 = vld [vmem:[%s3 + $0x60] sm:$0xff]
    %v1810 = vld [vmem:[%s3 + $0x68] sm:$0xff]
    %v1811 = vld [vmem:[%s3 + $0x70] sm:$0xff]
    %v1812 = vld [vmem:[%s3 + $0x78] sm:$0xff]
    %v1813 = vld [vmem:[%s3 + $0x80] sm:$0xff]
    %v1814 = vld [vmem:[%s3 + $0x88] sm:$0xff]
    %v1815 = vld [vmem:[%s3 + $0x90] sm:$0x3f]
    %v1816 = vld [vmem:[#allocation2] sm:$0xff]
    %v1817 = vld [vmem:[#allocation2 + $0x8] sm:$0xff]
    %v1818 = vld [vmem:[#allocation2 + $0x10] sm:$0x3]
    %v1819 = vld [vmem:[#allocation2 + $0x18] sm:$0x3]
    %v1821 = vsel %vm368, %v1797, 0
    %v1824 = vsel %vm368, %v1798, 0
    %v1827 = vsel %vm368, %v1799, 0
    %v1830 = vsel %vm368, %v1800, 0
    %v1833 = vsel %vm368, %v1801, 0
    %v1836 = vsel %vm368, %v1802, 0
    %v1839 = vsel %vm368, %v1803, 0
    %v1842 = vsel %vm368, %v1804, 0
    %v1845 = vsel %vm368, %v1805, 0
    %v1848 = vsel %vm368, %v1806, 0
    %v1851 = vsel %vm368, %v1807, 0
    %v1854 = vsel %vm368, %v1808, 0
    %v1857 = vsel %vm368, %v1809, 0
    %v1860 = vsel %vm368, %v1810, 0
    %v1863 = vsel %vm368, %v1811, 0
    %v1866 = vsel %vm368, %v1812, 0
    %v1869 = vsel %vm368, %v1813, 0
    %v1872 = vsel %vm368, %v1814, 0
    %v1875 = vsel %vm368, %v1815, 0
    %v1878 = vsel %vm426, %v1818, 0
    %v1881 = vsel %vm426, %v1819, 0
    %1883 = vmatprep.subr.mxu0 %v1817
    %1884 = vmatpush1.msra.mxu0 %v1816
    %1885 = vmatprep.subr.mxu0 %v1881
    %1886 = vmatpush1.msra.mxu0 %v1878
    %1887 = vmatprep.subr.mxu0 0.0
    %1888 = vmatpush1.msra.mxu0 0.0
    %1889 = vmatprep.subr.mxu0 0.0
    %1890 = vmatpush1.msra.mxu0 0.0
    %1891 = vmatprep.subr.mxu0 0.0
    %1892 = vmatpush1.msra.mxu0 0.0
    %1893 = vmatprep.subr.mxu0 0.0
    %1894 = vmatpush1.msra.mxu0 0.0
    %1895 = vmatprep.subr.mxu0 0.0
    %1896 = vmatpush1.msra.mxu0 0.0
    %1897 = vmatprep.subr.mxu0 0.0
    %1898 = vmatpush1.msra.mxu0 0.0
    %1899 = vmatprep.subr.mxu0 0.0
    %1900 = vmatpush1.msra.mxu0 0.0
    %1901 = vmatprep.subr.mxu0 0.0
    %1902 = vmatpush1.msra.mxu0 0.0
    %1903 = vmatprep.subr.mxu0 0.0
    %1904 = vmatpush1.msra.mxu0 0.0
    %1905 = vmatprep.subr.mxu0 0.0
    %1906 = vmatpush1.msra.mxu0 0.0
    %1907 = vmatprep.subr.mxu0 0.0
    %1908 = vmatpush1.msra.mxu0 0.0
    %1909 = vmatprep.subr.mxu0 0.0
    %1910 = vmatpush1.msra.mxu0 0.0
    %1911 = vmatprep.subr.mxu0 0.0
    %1912 = vmatpush1.msra.mxu0 0.0
    %1913 = vmatprep.subr.mxu0 0.0
    %1914 = vmatpush1.msra.mxu0 0.0
    %1915 = vmatprep.subr.mxu0 0.0
    %1916 = vmatpush1.msra.mxu0 0.0
    %1917 = vmatprep.subr.mxu0 0.0
    %1918 = vmatpush1.msra.mxu0 0.0
    %1919 = vmatprep.subr.mxu0 0.0
    %1920 = vmatpush1.msra.mxu0 0.0
    %1921 = vmatprep.subr.mxu0 0.0
    %1922 = vmatpush1.msra.mxu0 0.0
    %1923 = vmatprep.subr.mxu0 0.0
    %1924 = vmatpush1.msra.mxu0 0.0
    %1925 = vmatprep.subr.mxu0 0.0
    %1926 = vmatpush1.msra.mxu0 0.0
    %1927 = vmatprep.subr.mxu0 0.0
    %1928 = vmatpush1.msra.mxu0 0.0
    %1929 = vmatprep.subr.mxu0 0.0
    %1930 = vmatpush1.msra.mxu0 0.0
    %1931 = vmatprep.subr.mxu0 0.0
    %1932 = vmatpush1.msra.mxu0 0.0
    %1933 = vmatprep.subr.mxu0 0.0
    %1934 = vmatpush1.msra.mxu0 0.0
    %1935 = vmatprep.subr.mxu0 0.0
    %1936 = vmatpush1.msra.mxu0 0.0
    %1937 = vmatprep.subr.mxu0 0.0
    %1938 = vmatpush1.msra.mxu0 0.0
    %1939 = vmatprep.subr.mxu0 0.0
    %1940 = vmatpush1.msra.mxu0 0.0
    %1941 = vmatprep.subr.mxu0 0.0
    %1942 = vmatpush1.msra.mxu0 0.0
    %1943 = vmatprep.subr.mxu0 0.0
    %1944 = vmatpush1.msra.mxu0 0.0
    %1945 = vmatprep.subr.mxu0 0.0
    %1946 = vmatpush1.msra.mxu0 0.0
    %1947 = vmatprep.mubr.f32.mxu0 0.0
    %1948 = vmatmul.mubr.f32.gmra.mrb[0].mxu0 %v1821
    %v1949 = vpop.f32.mrb[0].mxu0
    %v1950 = vadd.f32 0.0, %v1949
    %v1951 = vpop.f32.mrb[0].mxu0
    %v1952 = vadd.f32 0.0, %v1951
    %1953 = vmatprep.mubr.f32.mxu0 0.0
    %1954 = vmatmul.mubr.f32.gmra.mrb[0].mxu0 %v1824
    %v1955 = vpop.f32.mrb[0].mxu0
    %v1956 = vadd.f32 0.0, %v1955
    %v1957 = vpop.f32.mrb[0].mxu0
    %v1958 = vadd.f32 0.0, %v1957
    %1959 = vmatprep.mubr.f32.mxu0 0.0
    %1960 = vmatmul.mubr.f32.gmra.mrb[0].mxu0 %v1827
    %v1961 = vpop.f32.mrb[0].mxu0
    %v1962 = vadd.f32 0.0, %v1961
    %v1963 = vpop.f32.mrb[0].mxu0
    %v1964 = vadd.f32 0.0, %v1963
    %1965 = vmatprep.mubr.f32.mxu0 0.0
    %1966 = vmatmul.mubr.f32.gmra.mrb[0].mxu0 %v1830
    %v1967 = vpop.f32.mrb[0].mxu0
    %v1968 = vadd.f32 0.0, %v1967
    %v1969 = vpop.f32.mrb[0].mxu0
    %v1970 = vadd.f32 0.0, %v1969
    %1971 = vmatprep.mubr.f32.mxu0 0.0
    %1972 = vmatmul.mubr.f32.gmra.mrb[0].mxu0 %v1833
    %v1973 = vpop.f32.mrb[0].mxu0
    %v1974 = vadd.f32 0.0, %v1973
    %v1975 = vpop.f32.mrb[0].mxu0
    %v1976 = vadd.f32 0.0, %v1975
    %1977 = vmatprep.mubr.f32.mxu0 0.0
    %1978 = vmatmul.mubr.f32.gmra.mrb[0].mxu0 %v1836
    %v1979 = vpop.f32.mrb[0].mxu0
    %v1980 = vadd.f32 0.0, %v1979
    %v1981 = vpop.f32.mrb[0].mxu0
    %v1982 = vadd.f32 0.0, %v1981
    %1983 = vmatprep.mubr.f32.mxu0 0.0
    %1984 = vmatmul.mubr.f32.gmra.mrb[0].mxu0 %v1839
    %v1985 = vpop.f32.mrb[0].mxu0
    %v1986 = vadd.f32 0.0, %v1985
    %v1987 = vpop.f32.mrb[0].mxu0
    %v1988 = vadd.f32 0.0, %v1987
    %1989 = vmatprep.mubr.f32.mxu0 0.0
    %1990 = vmatmul.mubr.f32.gmra.mrb[0].mxu0 %v1842
    %v1991 = vpop.f32.mrb[0].mxu0
    %v1992 = vadd.f32 0.0, %v1991
    %v1993 = vpop.f32.mrb[0].mxu0
    %v1994 = vadd.f32 0.0, %v1993
    %1995 = vmatprep.mubr.f32.mxu0 0.0
    %1996 = vmatmul.mubr.f32.gmra.mrb[0].mxu0 %v1845
    %v1997 = vpop.f32.mrb[0].mxu0
    %v1998 = vadd.f32 0.0, %v1997
    %v1999 = vpop.f32.mrb[0].mxu0
    %v2000 = vadd.f32 0.0, %v1999
    %2001 = vmatprep.mubr.f32.mxu0 0.0
    %2002 = vmatmul.mubr.f32.gmra.mrb[0].mxu0 %v1848
    %v2003 = vpop.f32.mrb[0].mxu0
    %v2004 = vadd.f32 0.0, %v2003
    %v2005 = vpop.f32.mrb[0].mxu0
    %v2006 = vadd.f32 0.0, %v2005
    %2007 = vmatprep.mubr.f32.mxu0 0.0
    %2008 = vmatmul.mubr.f32.gmra.mrb[0].mxu0 %v1851
    %v2009 = vpop.f32.mrb[0].mxu0
    %v2010 = vadd.f32 0.0, %v2009
    %v2011 = vpop.f32.mrb[0].mxu0
    %v2012 = vadd.f32 0.0, %v2011
    %2013 = vmatprep.mubr.f32.mxu0 0.0
    %2014 = vmatmul.mubr.f32.gmra.mrb[0].mxu0 %v1854
    %v2015 = vpop.f32.mrb[0].mxu0
    %v2016 = vadd.f32 0.0, %v2015
    %v2017 = vpop.f32.mrb[0].mxu0
    %v2018 = vadd.f32 0.0, %v2017
    %2019 = vmatprep.mubr.f32.mxu0 0.0
    %2020 = vmatmul.mubr.f32.gmra.mrb[0].mxu0 %v1857
    %v2021 = vpop.f32.mrb[0].mxu0
    %v2022 = vadd.f32 0.0, %v2021
    %v2023 = vpop.f32.mrb[0].mxu0
    %v2024 = vadd.f32 0.0, %v2023
    %2025 = vmatprep.mubr.f32.mxu0 0.0
    %2026 = vmatmul.mubr.f32.gmra.mrb[0].mxu0 %v1860
    %v2027 = vpop.f32.mrb[0].mxu0
    %v2028 = vadd.f32 0.0, %v2027
    %v2029 = vpop.f32.mrb[0].mxu0
    %v2030 = vadd.f32 0.0, %v2029
    %2031 = vmatprep.mubr.f32.mxu0 0.0
    %2032 = vmatmul.mubr.f32.gmra.mrb[0].mxu0 %v1863
    %v2033 = vpop.f32.mrb[0].mxu0
    %v2034 = vadd.f32 0.0, %v2033
    %v2035 = vpop.f32.mrb[0].mxu0
    %v2036 = vadd.f32 0.0, %v2035
    %2037 = vmatprep.mubr.f32.mxu0 0.0
    %2038 = vmatmul.mubr.f32.gmra.mrb[0].mxu0 %v1866
    %v2039 = vpop.f32.mrb[0].mxu0
    %v2040 = vadd.f32 0.0, %v2039
    %v2041 = vpop.f32.mrb[0].mxu0
    %v2042 = vadd.f32 0.0, %v2041
    %2043 = vmatprep.mubr.f32.mxu0 0.0
    %2044 = vmatmul.mubr.f32.gmra.mrb[0].mxu0 %v1869
    %v2045 = vpop.f32.mrb[0].mxu0
    %v2046 = vadd.f32 0.0, %v2045
    %v2047 = vpop.f32.mrb[0].mxu0
    %v2048 = vadd.f32 0.0, %v2047
    %2049 = vmatprep.mubr.f32.mxu0 0.0
    %2050 = vmatmul.mubr.f32.gmra.mrb[0].mxu0 %v1872
    %v2051 = vpop.f32.mrb[0].mxu0
    %v2052 = vadd.f32 0.0, %v2051
    %v2053 = vpop.f32.mrb[0].mxu0
    %v2054 = vadd.f32 0.0, %v2053
    %2055 = vmatprep.mubr.f32.mxu0 0.0
    %2056 = vmatmul.mubr.f32.gmra.mrb[0].mxu0 %v1875
    %v2057 = vpop.f32.mrb[0].mxu0
    %v2058 = vadd.f32 0.0, %v2057
    %v2059 = vpop.f32.mrb[0].mxu0
    %v2060 = vadd.f32 0.0, %v2059
    %2061 = vdwg.mxu0
    %v2062 = vmax.f32 %v1950, 0.0
    %v2063 = vmax.f32 %v1952, 0.0
    %v2064 = vmax.f32 %v1956, 0.0
    %v2065 = vmax.f32 %v1958, 0.0
    %v2066 = vmax.f32 %v1962, 0.0
    %v2067 = vmax.f32 %v1964, 0.0
    %v2068 = vmax.f32 %v1968, 0.0
    %v2069 = vmax.f32 %v1970, 0.0
    %v2070 = vmax.f32 %v1974, 0.0
    %v2071 = vmax.f32 %v1976, 0.0
    %v2072 = vmax.f32 %v1980, 0.0
    %v2073 = vmax.f32 %v1982, 0.0
    %v2074 = vmax.f32 %v1986, 0.0
    %v2075 = vmax.f32 %v1988, 0.0
    %v2076 = vmax.f32 %v1992, 0.0
    %v2077 = vmax.f32 %v1994, 0.0
    %v2078 = vmax.f32 %v1998, 0.0
    %v2079 = vmax.f32 %v2000, 0.0
    %v2080 = vmax.f32 %v2004, 0.0
    %v2081 = vmax.f32 %v2006, 0.0
    %v2082 = vmax.f32 %v2010, 0.0
    %v2083 = vmax.f32 %v2012, 0.0
    %v2084 = vmax.f32 %v2016, 0.0
    %v2085 = vmax.f32 %v2018, 0.0
    %v2086 = vmax.f32 %v2022, 0.0
    %v2087 = vmax.f32 %v2024, 0.0
    %v2088 = vmax.f32 %v2028, 0.0
    %v2089 = vmax.f32 %v2030, 0.0
    %v2090 = vmax.f32 %v2034, 0.0
    %v2091 = vmax.f32 %v2036, 0.0
    %v2092 = vmax.f32 %v2040, 0.0
    %v2093 = vmax.f32 %v2042, 0.0
    %v2094 = vmax.f32 %v2046, 0.0
    %v2095 = vmax.f32 %v2048, 0.0
    %v2096 = vmax.f32 %v2052, 0.0
    %v2097 = vmax.f32 %v2054, 0.0
    %v2098 = vmax.f32 %v2058, 0.0
    %v2099 = vmax.f32 %v2060, 0.0
    %v2100 = vld [vmem:[%s4] sm:$0x3]
    %v2102 = vlaneseq
    %v2103 = vshrl.u32 %v2102, 7
    %v2104 = vsub.s32 0, %v2103
    %v2105 = vrot.slane %v2100, %v2104
    %v2106 = vlaneseq
    %v2107 = vshrl.u32 %v2106, 7
    %v2108 = vsub.s32 1, %v2107
    %v2109 = vrot.slane %v2100, %v2108
    %v2111 = vsel %vm661, %v2109, 0
    %v2114 = vsel %vm664, %v2098, 0
    %v2117 = vsel %vm664, %v2099, 0
    %2119 = vmatprep.subr.mxu0 %v2063
    %2120 = vmatpush1.msra.mxu0 %v2062
    %2121 = vmatprep.subr.mxu0 %v2065
    %2122 = vmatpush1.msra.mxu0 %v2064
    %2123 = vmatprep.subr.mxu0 %v2067
    %2124 = vmatpush1.msra.mxu0 %v2066
    %2125 = vmatprep.subr.mxu0 %v2069
    %2126 = vmatpush1.msra.mxu0 %v2068
    %2127 = vmatprep.subr.mxu0 %v2071
    %2128 = vmatpush1.msra.mxu0 %v2070
    %2129 = vmatprep.subr.mxu0 %v2073
    %2130 = vmatpush1.msra.mxu0 %v2072
    %2131 = vmatprep.subr.mxu0 %v2075
    %2132 = vmatpush1.msra.mxu0 %v2074
    %2133 = vmatprep.subr.mxu0 %v2077
    %2134 = vmatpush1.msra.mxu0 %v2076
    %2135 = vmatprep.subr.mxu0 %v2079
    %2136 = vmatpush1.msra.mxu0 %v2078
    %2137 = vmatprep.subr.mxu0 %v2081
    %2138 = vmatpush1.msra.mxu0 %v2080
    %2139 = vmatprep.subr.mxu0 %v2083
    %2140 = vmatpush1.msra.mxu0 %v2082
    %2141 = vmatprep.subr.mxu0 %v2085
    %2142 = vmatpush1.msra.mxu0 %v2084
    %2143 = vmatprep.subr.mxu0 %v2087
    %2144 = vmatpush1.msra.mxu0 %v2086
    %2145 = vmatprep.subr.mxu0 %v2089
    %2146 = vmatpush1.msra.mxu0 %v2088
    %2147 = vmatprep.subr.mxu0 %v2091
    %2148 = vmatpush1.msra.mxu0 %v2090
    %2149 = vmatprep.subr.mxu0 %v2093
    %2150 = vmatpush1.msra.mxu0 %v2092
    %2151 = vmatprep.subr.mxu0 %v2095
    %2152 = vmatpush1.msra.mxu0 %v2094
    %2153 = vmatprep.subr.mxu0 %v2097
    %2154 = vmatpush1.msra.mxu0 %v2096
    %2155 = vmatprep.subr.mxu0 %v2117
    %2156 = vmatpush1.msra.mxu0 %v2114
    %2157 = vmatprep.subr.mxu0 0.0
    %2158 = vmatpush1.msra.mxu0 0.0
    %2159 = vmatprep.subr.mxu0 0.0
    %2160 = vmatpush1.msra.mxu0 0.0
    %2161 = vmatprep.subr.mxu0 0.0
    %2162 = vmatpush1.msra.mxu0 0.0
    %2163 = vmatprep.subr.mxu0 0.0
    %2164 = vmatpush1.msra.mxu0 0.0
    %2165 = vmatprep.subr.mxu0 0.0
    %2166 = vmatpush1.msra.mxu0 0.0
    %2167 = vmatprep.subr.mxu0 0.0
    %2168 = vmatpush1.msra.mxu0 0.0
    %2169 = vmatprep.subr.mxu0 0.0
    %2170 = vmatpush1.msra.mxu0 0.0
    %2171 = vmatprep.subr.mxu0 0.0
    %2172 = vmatpush1.msra.mxu0 0.0
    %2173 = vmatprep.subr.mxu0 0.0
    %2174 = vmatpush1.msra.mxu0 0.0
    %2175 = vmatprep.subr.mxu0 0.0
    %2176 = vmatpush1.msra.mxu0 0.0
    %2177 = vmatprep.subr.mxu0 0.0
    %2178 = vmatpush1.msra.mxu0 0.0
    %2179 = vmatprep.subr.mxu0 0.0
    %2180 = vmatpush1.msra.mxu0 0.0
    %2181 = vmatprep.subr.mxu0 0.0
    %2182 = vmatpush1.msra.mxu0 0.0
    %2183 = vmatprep.mubr.f32.mxu0 %v2111
    %2184 = vmatmul.mubr.f32.gmra.mrb[0].mxu0 %v2105
    %v2185 = vpop.f32.mrb[0].mxu0
    %v2186 = vadd.f32 0.0, %v2185
    %v2187 = vpop.f32.mrb[0].mxu0
    %v2188 = vadd.f32 0.0, %v2187
    %2189 = vdwg.mxu0
    %v2190 = vsub.f32 0.0, %v2186
    %v2191 = vsub.f32 0.0, %v2188
    %v2192 = vmul.f32 %v2190, 1.442695
    %v2193 = vpow.pop %v2192
    %v2194 = vmul.f32 %v2191, 1.442695
    %v2195 = vpow.pop %v2194
    %v2196 = vadd.f32 %v2193, 1.0
    %v2197 = vadd.f32 %v2195, 1.0
    %v2198 = vrcp.pop %v2196
    %v2199 = vmul.f32 1.0, %v2198
    %v2200 = vrcp.pop %v2197
    %v2201 = vmul.f32 1.0, %v2200
    %v2204 = vcombine.low %v2199, %v2201
    %v2206 = vunpack.c.l.s4 1966171168
    %v2207 = vunpack.c.0.s8 %v2206
    %v2208 = vlaneseq
    %v2209 = vshrl.u32 %v2208, 7
    %v2210 = vsub.s32 %v2207, %v2209
    %v2211 = vrot.slane %v2204, %v2210
    %v2213 = vunpack.c.l.s4 1966171168
    %v2214 = vunpack.c.0.s8 %v2213
    %v2215 = vlaneseq
    %v2216 = vshrl.u32 %v2215, 7
    %v2217 = vsub.s32 %v2214, %v2216
    %v2218 = vrot.slane %v2211, %v2217
    %s2220 = scalar_lea.vmem [#allocation3], 3
    %2221 = vst.msk [vmem:[%s2220] ss:$8 sm:$0x3] %vm153, %v2218
    %2222 = vst.msk [vmem:[%s2220] ss:$8 sm:$0x0] %vm153, %v2218
    %v2223 = vcombine.high %v98, %v99
    %v2225 = vunpack.c.l.s4 1966171168
    %v2226 = vunpack.c.0.s8 %v2225
    %v2227 = vlaneseq
    %v2228 = vshrl.u32 %v2227, 7
    %v2229 = vsub.s32 %v2226, %v2228
    %v2230 = vrot.slane %v2223, %v2229
    %v2232 = vunpack.c.l.s4 1966171168
    %v2233 = vunpack.c.0.s8 %v2232
    %v2234 = vlaneseq
    %v2235 = vshrl.u32 %v2234, 7
    %v2236 = vsub.s32 %v2233, %v2235
    %v2237 = vrot.slane %v2230, %v2236
    %2239 = vst.msk [vmem:[#allocation2] ss:$8 sm:$0x3] %vm153, %v2237
    %2240 = vst.msk [vmem:[#allocation2] ss:$8 sm:$0x0] %vm153, %v2237
    %v2241 = vcombine.high %v89, %v90
    %v2243 = vunpack.c.l.s4 1966171168
    %v2244 = vunpack.c.0.s8 %v2243
    %v2245 = vlaneseq
    %v2246 = vshrl.u32 %v2245, 7
    %v2247 = vsub.s32 %v2244, %v2246
    %v2248 = vrot.slane %v2241, %v2247
    %v2250 = vunpack.c.l.s4 1966171168
    %v2251 = vunpack.c.0.s8 %v2250
    %v2252 = vlaneseq
    %v2253 = vshrl.u32 %v2252, 7
    %v2254 = vsub.s32 %v2251, %v2253
    %v2255 = vrot.slane %v2248, %v2254
    %2257 = vst.msk [vmem:[%s195] ss:$8 sm:$0x3] %vm153, %v2255
    %2258 = vst.msk [vmem:[%s195] ss:$8 sm:$0x0] %vm153, %v2255
    %v2259 = vcombine.high %v107, %v108
    %v2261 = vunpack.c.l.s4 1966171168
    %v2262 = vunpack.c.0.s8 %v2261
    %v2263 = vlaneseq
    %v2264 = vshrl.u32 %v2263, 7
    %v2265 = vsub.s32 %v2262, %v2264
    %v2266 = vrot.slane %v2259, %v2265
    %v2268 = vunpack.c.l.s4 1966171168
    %v2269 = vunpack.c.0.s8 %v2268
    %v2270 = vlaneseq
    %v2271 = vshrl.u32 %v2270, 7
    %v2272 = vsub.s32 %v2269, %v2271
    %v2273 = vrot.slane %v2266, %v2272
    %2275 = vst.msk [vmem:[%s216] ss:$8 sm:$0x3] %vm153, %v2273
    %2276 = vst.msk [vmem:[%s216] ss:$8 sm:$0x0] %vm153, %v2273
    %v2277 = vcombine.high %v115, %v116
    %v2279 = vunpack.c.l.s4 1966171168
    %v2280 = vunpack.c.0.s8 %v2279
    %v2281 = vlaneseq
    %v2282 = vshrl.u32 %v2281, 7
    %v2283 = vsub.s32 %v2280, %v2282
    %v2284 = vrot.slane %v2277, %v2283
    %v2286 = vunpack.c.l.s4 1966171168
    %v2287 = vunpack.c.0.s8 %v2286
    %v2288 = vlaneseq
    %v2289 = vshrl.u32 %v2288, 7
    %v2290 = vsub.s32 %v2287, %v2289
    %v2291 = vrot.slane %v2284, %v2290
    %2293 = vst.msk [vmem:[%s237] ss:$8 sm:$0x3] %vm153, %v2291
    %2294 = vst.msk [vmem:[%s237] ss:$8 sm:$0x0] %vm153, %v2291
    %v2295 = vcombine.high %v21, %v22
    %v2297 = vunpack.c.l.s4 1966171168
    %v2298 = vunpack.c.0.s8 %v2297
    %v2299 = vlaneseq
    %v2300 = vshrl.u32 %v2299, 7
    %v2301 = vsub.s32 %v2298, %v2300
    %v2302 = vrot.slane %v2295, %v2301
    %v2304 = vunpack.c.l.s4 1966171168
    %v2305 = vunpack.c.0.s8 %v2304
    %v2306 = vlaneseq
    %v2307 = vshrl.u32 %v2306, 7
    %v2308 = vsub.s32 %v2305, %v2307
    %v2309 = vrot.slane %v2302, %v2308
    %2311 = vst.msk [vmem:[%s258] ss:$8 sm:$0x3] %vm153, %v2309
    %2312 = vst.msk [vmem:[%s258] ss:$8 sm:$0x0] %vm153, %v2309
    %v2313 = vcombine.high %v123, %v124
    %v2315 = vunpack.c.l.s4 1966171168
    %v2316 = vunpack.c.0.s8 %v2315
    %v2317 = vlaneseq
    %v2318 = vshrl.u32 %v2317, 7
    %v2319 = vsub.s32 %v2316, %v2318
    %v2320 = vrot.slane %v2313, %v2319
    %v2322 = vunpack.c.l.s4 1966171168
    %v2323 = vunpack.c.0.s8 %v2322
    %v2324 = vlaneseq
    %v2325 = vshrl.u32 %v2324, 7
    %v2326 = vsub.s32 %v2323, %v2325
    %v2327 = vrot.slane %v2320, %v2326
    %2329 = vst.msk [vmem:[%s279] ss:$8 sm:$0x3] %vm153, %v2327
    %2330 = vst.msk [vmem:[%s279] ss:$8 sm:$0x0] %vm153, %v2327
    %v2331 = vcombine.high %v140, %v141
    %v2333 = vunpack.c.l.s4 1966171168
    %v2334 = vunpack.c.0.s8 %v2333
    %v2335 = vlaneseq
    %v2336 = vshrl.u32 %v2335, 7
    %v2337 = vsub.s32 %v2334, %v2336
    %v2338 = vrot.slane %v2331, %v2337
    %v2340 = vunpack.c.l.s4 1966171168
    %v2341 = vunpack.c.0.s8 %v2340
    %v2342 = vlaneseq
    %v2343 = vshrl.u32 %v2342, 7
    %v2344 = vsub.s32 %v2341, %v2343
    %v2345 = vrot.slane %v2338, %v2344
    %2347 = vst.msk [vmem:[%s300] ss:$8 sm:$0x3] %vm153, %v2345
    %2348 = vst.msk [vmem:[%s300] ss:$8 sm:$0x0] %vm153, %v2345
    %v2349 = vcombine.high %v132, %v133
    %v2351 = vunpack.c.l.s4 1966171168
    %v2352 = vunpack.c.0.s8 %v2351
    %v2353 = vlaneseq
    %v2354 = vshrl.u32 %v2353, 7
    %v2355 = vsub.s32 %v2352, %v2354
    %v2356 = vrot.slane %v2349, %v2355
    %v2358 = vunpack.c.l.s4 1966171168
    %v2359 = vunpack.c.0.s8 %v2358
    %v2360 = vlaneseq
    %v2361 = vshrl.u32 %v2360, 7
    %v2362 = vsub.s32 %v2359, %v2361
    %v2363 = vrot.slane %v2356, %v2362
    %2365 = vst.msk [vmem:[%s321] ss:$8 sm:$0x3] %vm153, %v2363
    %2366 = vst.msk [vmem:[%s321] ss:$8 sm:$0x0] %vm153, %v2363
    %v2367 = vcombine.high %v148, %v149
    %v2369 = vunpack.c.l.s4 1966171168
    %v2370 = vunpack.c.0.s8 %v2369
    %v2371 = vlaneseq
    %v2372 = vshrl.u32 %v2371, 7
    %v2373 = vsub.s32 %v2370, %v2372
    %v2374 = vrot.slane %v2367, %v2373
    %v2376 = vunpack.c.l.s4 1966171168
    %v2377 = vunpack.c.0.s8 %v2376
    %v2378 = vlaneseq
    %v2379 = vshrl.u32 %v2378, 7
    %v2380 = vsub.s32 %v2377, %v2379
    %v2381 = vrot.slane %v2374, %v2380
    %2383 = vst.msk [vmem:[%s342] ss:$8 sm:$0x3] %vm153, %v2381
    %2384 = vst.msk [vmem:[%s342] ss:$8 sm:$0x0] %vm153, %v2381
    %v2385 = vld [vmem:[%s3] sm:$0xff]
    %v2386 = vld [vmem:[%s3 + $0x8] sm:$0xff]
    %v2387 = vld [vmem:[%s3 + $0x10] sm:$0xff]
    %v2388 = vld [vmem:[%s3 + $0x18] sm:$0xff]
    %v2389 = vld [vmem:[%s3 + $0x20] sm:$0xff]
    %v2390 = vld [vmem:[%s3 + $0x28] sm:$0xff]
    %v2391 = vld [vmem:[%s3 + $0x30] sm:$0xff]
    %v2392 = vld [vmem:[%s3 + $0x38] sm:$0xff]
    %v2393 = vld [vmem:[%s3 + $0x40] sm:$0xff]
    %v2394 = vld [vmem:[%s3 + $0x48] sm:$0xff]
    %v2395 = vld [vmem:[%s3 + $0x50] sm:$0xff]
    %v2396 = vld [vmem:[%s3 + $0x58] sm:$0xff]
    %v2397 = vld [vmem:[%s3 + $0x60] sm:$0xff]
    %v2398 = vld [vmem:[%s3 + $0x68] sm:$0xff]
    %v2399 = vld [vmem:[%s3 + $0x70] sm:$0xff]
    %v2400 = vld [vmem:[%s3 + $0x78] sm:$0xff]
    %v2401 = vld [vmem:[%s3 + $0x80] sm:$0xff]
    %v2402 = vld [vmem:[%s3 + $0x88] sm:$0xff]
    %v2403 = vld [vmem:[%s3 + $0x90] sm:$0x3f]
    %v2404 = vld [vmem:[#allocation2] sm:$0xff]
    %v2405 = vld [vmem:[#allocation2 + $0x8] sm:$0xff]
    %v2406 = vld [vmem:[#allocation2 + $0x10] sm:$0x3]
    %v2407 = vld [vmem:[#allocation2 + $0x18] sm:$0x3]
    %v2409 = vsel %vm368, %v2385, 0
    %v2412 = vsel %vm368, %v2386, 0
    %v2415 = vsel %vm368, %v2387, 0
    %v2418 = vsel %vm368, %v2388, 0
    %v2421 = vsel %vm368, %v2389, 0
    %v2424 = vsel %vm368, %v2390, 0
    %v2427 = vsel %vm368, %v2391, 0
    %v2430 = vsel %vm368, %v2392, 0
    %v2433 = vsel %vm368, %v2393, 0
    %v2436 = vsel %vm368, %v2394, 0
    %v2439 = vsel %vm368, %v2395, 0
    %v2442 = vsel %vm368, %v2396, 0
    %v2445 = vsel %vm368, %v2397, 0
    %v2448 = vsel %vm368, %v2398, 0
    %v2451 = vsel %vm368, %v2399, 0
    %v2454 = vsel %vm368, %v2400, 0
    %v2457 = vsel %vm368, %v2401, 0
    %v2460 = vsel %vm368, %v2402, 0
    %v2463 = vsel %vm368, %v2403, 0
    %v2466 = vsel %vm426, %v2406, 0
    %v2469 = vsel %vm426, %v2407, 0
    %2471 = vmatprep.subr.mxu0 %v2405
    %2472 = vmatpush1.msra.mxu0 %v2404
    %2473 = vmatprep.subr.mxu0 %v2469
    %2474 = vmatpush1.msra.mxu0 %v2466
    %2475 = vmatprep.subr.mxu0 0.0
    %2476 = vmatpush1.msra.mxu0 0.0
    %2477 = vmatprep.subr.mxu0 0.0
    %2478 = vmatpush1.msra.mxu0 0.0
    %2479 = vmatprep.subr.mxu0 0.0
    %2480 = vmatpush1.msra.mxu0 0.0
    %2481 = vmatprep.subr.mxu0 0.0
    %2482 = vmatpush1.msra.mxu0 0.0
    %2483 = vmatprep.subr.mxu0 0.0
    %2484 = vmatpush1.msra.mxu0 0.0
    %2485 = vmatprep.subr.mxu0 0.0
    %2486 = vmatpush1.msra.mxu0 0.0
    %2487 = vmatprep.subr.mxu0 0.0
    %2488 = vmatpush1.msra.mxu0 0.0
    %2489 = vmatprep.subr.mxu0 0.0
    %2490 = vmatpush1.msra.mxu0 0.0
    %2491 = vmatprep.subr.mxu0 0.0
    %2492 = vmatpush1.msra.mxu0 0.0
    %2493 = vmatprep.subr.mxu0 0.0
    %2494 = vmatpush1.msra.mxu0 0.0
    %2495 = vmatprep.subr.mxu0 0.0
    %2496 = vmatpush1.msra.mxu0 0.0
    %2497 = vmatprep.subr.mxu0 0.0
    %2498 = vmatpush1.msra.mxu0 0.0
    %2499 = vmatprep.subr.mxu0 0.0
    %2500 = vmatpush1.msra.mxu0 0.0
    %2501 = vmatprep.subr.mxu0 0.0
    %2502 = vmatpush1.msra.mxu0 0.0
    %2503 = vmatprep.subr.mxu0 0.0
    %2504 = vmatpush1.msra.mxu0 0.0
    %2505 = vmatprep.subr.mxu0 0.0
    %2506 = vmatpush1.msra.mxu0 0.0
    %2507 = vmatprep.subr.mxu0 0.0
    %2508 = vmatpush1.msra.mxu0 0.0
    %2509 = vmatprep.subr.mxu0 0.0
    %2510 = vmatpush1.msra.mxu0 0.0
    %2511 = vmatprep.subr.mxu0 0.0
    %2512 = vmatpush1.msra.mxu0 0.0
    %2513 = vmatprep.subr.mxu0 0.0
    %2514 = vmatpush1.msra.mxu0 0.0
    %2515 = vmatprep.subr.mxu0 0.0
    %2516 = vmatpush1.msra.mxu0 0.0
    %2517 = vmatprep.subr.mxu0 0.0
    %2518 = vmatpush1.msra.mxu0 0.0
    %2519 = vmatprep.subr.mxu0 0.0
    %2520 = vmatpush1.msra.mxu0 0.0
    %2521 = vmatprep.subr.mxu0 0.0
    %2522 = vmatpush1.msra.mxu0 0.0
    %2523 = vmatprep.subr.mxu0 0.0
    %2524 = vmatpush1.msra.mxu0 0.0
    %2525 = vmatprep.subr.mxu0 0.0
    %2526 = vmatpush1.msra.mxu0 0.0
    %2527 = vmatprep.subr.mxu0 0.0
    %2528 = vmatpush1.msra.mxu0 0.0
    %2529 = vmatprep.subr.mxu0 0.0
    %2530 = vmatpush1.msra.mxu0 0.0
    %2531 = vmatprep.subr.mxu0 0.0
    %2532 = vmatpush1.msra.mxu0 0.0
    %2533 = vmatprep.subr.mxu0 0.0
    %2534 = vmatpush1.msra.mxu0 0.0
    %2535 = vmatprep.mubr.f32.mxu0 0.0
    %2536 = vmatmul.mubr.f32.gmra.mrb[0].mxu0 %v2409
    %v2537 = vpop.f32.mrb[0].mxu0
    %v2538 = vadd.f32 0.0, %v2537
    %v2539 = vpop.f32.mrb[0].mxu0
    %v2540 = vadd.f32 0.0, %v2539
    %2541 = vmatprep.mubr.f32.mxu0 0.0
    %2542 = vmatmul.mubr.f32.gmra.mrb[0].mxu0 %v2412
    %v2543 = vpop.f32.mrb[0].mxu0
    %v2544 = vadd.f32 0.0, %v2543
    %v2545 = vpop.f32.mrb[0].mxu0
    %v2546 = vadd.f32 0.0, %v2545
    %2547 = vmatprep.mubr.f32.mxu0 0.0
    %2548 = vmatmul.mubr.f32.gmra.mrb[0].mxu0 %v2415
    %v2549 = vpop.f32.mrb[0].mxu0
    %v2550 = vadd.f32 0.0, %v2549
    %v2551 = vpop.f32.mrb[0].mxu0
    %v2552 = vadd.f32 0.0, %v2551
    %2553 = vmatprep.mubr.f32.mxu0 0.0
    %2554 = vmatmul.mubr.f32.gmra.mrb[0].mxu0 %v2418
    %v2555 = vpop.f32.mrb[0].mxu0
    %v2556 = vadd.f32 0.0, %v2555
    %v2557 = vpop.f32.mrb[0].mxu0
    %v2558 = vadd.f32 0.0, %v2557
    %2559 = vmatprep.mubr.f32.mxu0 0.0
    %2560 = vmatmul.mubr.f32.gmra.mrb[0].mxu0 %v2421
    %v2561 = vpop.f32.mrb[0].mxu0
    %v2562 = vadd.f32 0.0, %v2561
    %v2563 = vpop.f32.mrb[0].mxu0
    %v2564 = vadd.f32 0.0, %v2563
    %2565 = vmatprep.mubr.f32.mxu0 0.0
    %2566 = vmatmul.mubr.f32.gmra.mrb[0].mxu0 %v2424
    %v2567 = vpop.f32.mrb[0].mxu0
    %v2568 = vadd.f32 0.0, %v2567
    %v2569 = vpop.f32.mrb[0].mxu0
    %v2570 = vadd.f32 0.0, %v2569
    %2571 = vmatprep.mubr.f32.mxu0 0.0
    %2572 = vmatmul.mubr.f32.gmra.mrb[0].mxu0 %v2427
    %v2573 = vpop.f32.mrb[0].mxu0
    %v2574 = vadd.f32 0.0, %v2573
    %v2575 = vpop.f32.mrb[0].mxu0
    %v2576 = vadd.f32 0.0, %v2575
    %2577 = vmatprep.mubr.f32.mxu0 0.0
    %2578 = vmatmul.mubr.f32.gmra.mrb[0].mxu0 %v2430
    %v2579 = vpop.f32.mrb[0].mxu0
    %v2580 = vadd.f32 0.0, %v2579
    %v2581 = vpop.f32.mrb[0].mxu0
    %v2582 = vadd.f32 0.0, %v2581
    %2583 = vmatprep.mubr.f32.mxu0 0.0
    %2584 = vmatmul.mubr.f32.gmra.mrb[0].mxu0 %v2433
    %v2585 = vpop.f32.mrb[0].mxu0
    %v2586 = vadd.f32 0.0, %v2585
    %v2587 = vpop.f32.mrb[0].mxu0
    %v2588 = vadd.f32 0.0, %v2587
    %2589 = vmatprep.mubr.f32.mxu0 0.0
    %2590 = vmatmul.mubr.f32.gmra.mrb[0].mxu0 %v2436
    %v2591 = vpop.f32.mrb[0].mxu0
    %v2592 = vadd.f32 0.0, %v2591
    %v2593 = vpop.f32.mrb[0].mxu0
    %v2594 = vadd.f32 0.0, %v2593
    %2595 = vmatprep.mubr.f32.mxu0 0.0
    %2596 = vmatmul.mubr.f32.gmra.mrb[0].mxu0 %v2439
    %v2597 = vpop.f32.mrb[0].mxu0
    %v2598 = vadd.f32 0.0, %v2597
    %v2599 = vpop.f32.mrb[0].mxu0
    %v2600 = vadd.f32 0.0, %v2599
    %2601 = vmatprep.mubr.f32.mxu0 0.0
    %2602 = vmatmul.mubr.f32.gmra.mrb[0].mxu0 %v2442
    %v2603 = vpop.f32.mrb[0].mxu0
    %v2604 = vadd.f32 0.0, %v2603
    %v2605 = vpop.f32.mrb[0].mxu0
    %v2606 = vadd.f32 0.0, %v2605
    %2607 = vmatprep.mubr.f32.mxu0 0.0
    %2608 = vmatmul.mubr.f32.gmra.mrb[0].mxu0 %v2445
    %v2609 = vpop.f32.mrb[0].mxu0
    %v2610 = vadd.f32 0.0, %v2609
    %v2611 = vpop.f32.mrb[0].mxu0
    %v2612 = vadd.f32 0.0, %v2611
    %2613 = vmatprep.mubr.f32.mxu0 0.0
    %2614 = vmatmul.mubr.f32.gmra.mrb[0].mxu0 %v2448
    %v2615 = vpop.f32.mrb[0].mxu0
    %v2616 = vadd.f32 0.0, %v2615
    %v2617 = vpop.f32.mrb[0].mxu0
    %v2618 = vadd.f32 0.0, %v2617
    %2619 = vmatprep.mubr.f32.mxu0 0.0
    %2620 = vmatmul.mubr.f32.gmra.mrb[0].mxu0 %v2451
    %v2621 = vpop.f32.mrb[0].mxu0
    %v2622 = vadd.f32 0.0, %v2621
    %v2623 = vpop.f32.mrb[0].mxu0
    %v2624 = vadd.f32 0.0, %v2623
    %2625 = vmatprep.mubr.f32.mxu0 0.0
    %2626 = vmatmul.mubr.f32.gmra.mrb[0].mxu0 %v2454
    %v2627 = vpop.f32.mrb[0].mxu0
    %v2628 = vadd.f32 0.0, %v2627
    %v2629 = vpop.f32.mrb[0].mxu0
    %v2630 = vadd.f32 0.0, %v2629
    %2631 = vmatprep.mubr.f32.mxu0 0.0
    %2632 = vmatmul.mubr.f32.gmra.mrb[0].mxu0 %v2457
    %v2633 = vpop.f32.mrb[0].mxu0
    %v2634 = vadd.f32 0.0, %v2633
    %v2635 = vpop.f32.mrb[0].mxu0
    %v2636 = vadd.f32 0.0, %v2635
    %2637 = vmatprep.mubr.f32.mxu0 0.0
    %2638 = vmatmul.mubr.f32.gmra.mrb[0].mxu0 %v2460
    %v2639 = vpop.f32.mrb[0].mxu0
    %v2640 = vadd.f32 0.0, %v2639
    %v2641 = vpop.f32.mrb[0].mxu0
    %v2642 = vadd.f32 0.0, %v2641
    %2643 = vmatprep.mubr.f32.mxu0 0.0
    %2644 = vmatmul.mubr.f32.gmra.mrb[0].mxu0 %v2463
    %v2645 = vpop.f32.mrb[0].mxu0
    %v2646 = vadd.f32 0.0, %v2645
    %v2647 = vpop.f32.mrb[0].mxu0
    %v2648 = vadd.f32 0.0, %v2647
    %2649 = vdwg.mxu0
    %v2650 = vmax.f32 %v2538, 0.0
    %v2651 = vmax.f32 %v2540, 0.0
    %v2652 = vmax.f32 %v2544, 0.0
    %v2653 = vmax.f32 %v2546, 0.0
    %v2654 = vmax.f32 %v2550, 0.0
    %v2655 = vmax.f32 %v2552, 0.0
    %v2656 = vmax.f32 %v2556, 0.0
    %v2657 = vmax.f32 %v2558, 0.0
    %v2658 = vmax.f32 %v2562, 0.0
    %v2659 = vmax.f32 %v2564, 0.0
    %v2660 = vmax.f32 %v2568, 0.0
    %v2661 = vmax.f32 %v2570, 0.0
    %v2662 = vmax.f32 %v2574, 0.0
    %v2663 = vmax.f32 %v2576, 0.0
    %v2664 = vmax.f32 %v2580, 0.0
    %v2665 = vmax.f32 %v2582, 0.0
    %v2666 = vmax.f32 %v2586, 0.0
    %v2667 = vmax.f32 %v2588, 0.0
    %v2668 = vmax.f32 %v2592, 0.0
    %v2669 = vmax.f32 %v2594, 0.0
    %v2670 = vmax.f32 %v2598, 0.0
    %v2671 = vmax.f32 %v2600, 0.0
    %v2672 = vmax.f32 %v2604, 0.0
    %v2673 = vmax.f32 %v2606, 0.0
    %v2674 = vmax.f32 %v2610, 0.0
    %v2675 = vmax.f32 %v2612, 0.0
    %v2676 = vmax.f32 %v2616, 0.0
    %v2677 = vmax.f32 %v2618, 0.0
    %v2678 = vmax.f32 %v2622, 0.0
    %v2679 = vmax.f32 %v2624, 0.0
    %v2680 = vmax.f32 %v2628, 0.0
    %v2681 = vmax.f32 %v2630, 0.0
    %v2682 = vmax.f32 %v2634, 0.0
    %v2683 = vmax.f32 %v2636, 0.0
    %v2684 = vmax.f32 %v2640, 0.0
    %v2685 = vmax.f32 %v2642, 0.0
    %v2686 = vmax.f32 %v2646, 0.0
    %v2687 = vmax.f32 %v2648, 0.0
    %v2688 = vld [vmem:[%s4] sm:$0x3]
    %v2690 = vlaneseq
    %v2691 = vshrl.u32 %v2690, 7
    %v2692 = vsub.s32 0, %v2691
    %v2693 = vrot.slane %v2688, %v2692
    %v2694 = vlaneseq
    %v2695 = vshrl.u32 %v2694, 7
    %v2696 = vsub.s32 1, %v2695
    %v2697 = vrot.slane %v2688, %v2696
    %v2699 = vsel %vm661, %v2697, 0
    %v2702 = vsel %vm664, %v2686, 0
    %v2705 = vsel %vm664, %v2687, 0
    %2707 = vmatprep.subr.mxu0 %v2651
    %2708 = vmatpush1.msra.mxu0 %v2650
    %2709 = vmatprep.subr.mxu0 %v2653
    %2710 = vmatpush1.msra.mxu0 %v2652
    %2711 = vmatprep.subr.mxu0 %v2655
    %2712 = vmatpush1.msra.mxu0 %v2654
    %2713 = vmatprep.subr.mxu0 %v2657
    %2714 = vmatpush1.msra.mxu0 %v2656
    %2715 = vmatprep.subr.mxu0 %v2659
    %2716 = vmatpush1.msra.mxu0 %v2658
    %2717 = vmatprep.subr.mxu0 %v2661
    %2718 = vmatpush1.msra.mxu0 %v2660
    %2719 = vmatprep.subr.mxu0 %v2663
    %2720 = vmatpush1.msra.mxu0 %v2662
    %2721 = vmatprep.subr.mxu0 %v2665
    %2722 = vmatpush1.msra.mxu0 %v2664
    %2723 = vmatprep.subr.mxu0 %v2667
    %2724 = vmatpush1.msra.mxu0 %v2666
    %2725 = vmatprep.subr.mxu0 %v2669
    %2726 = vmatpush1.msra.mxu0 %v2668
    %2727 = vmatprep.subr.mxu0 %v2671
    %2728 = vmatpush1.msra.mxu0 %v2670
    %2729 = vmatprep.subr.mxu0 %v2673
    %2730 = vmatpush1.msra.mxu0 %v2672
    %2731 = vmatprep.subr.mxu0 %v2675
    %2732 = vmatpush1.msra.mxu0 %v2674
    %2733 = vmatprep.subr.mxu0 %v2677
    %2734 = vmatpush1.msra.mxu0 %v2676
    %2735 = vmatprep.subr.mxu0 %v2679
    %2736 = vmatpush1.msra.mxu0 %v2678
    %2737 = vmatprep.subr.mxu0 %v2681
    %2738 = vmatpush1.msra.mxu0 %v2680
    %2739 = vmatprep.subr.mxu0 %v2683
    %2740 = vmatpush1.msra.mxu0 %v2682
    %2741 = vmatprep.subr.mxu0 %v2685
    %2742 = vmatpush1.msra.mxu0 %v2684
    %2743 = vmatprep.subr.mxu0 %v2705
    %2744 = vmatpush1.msra.mxu0 %v2702
    %2745 = vmatprep.subr.mxu0 0.0
    %2746 = vmatpush1.msra.mxu0 0.0
    %2747 = vmatprep.subr.mxu0 0.0
    %2748 = vmatpush1.msra.mxu0 0.0
    %2749 = vmatprep.subr.mxu0 0.0
    %2750 = vmatpush1.msra.mxu0 0.0
    %2751 = vmatprep.subr.mxu0 0.0
    %2752 = vmatpush1.msra.mxu0 0.0
    %2753 = vmatprep.subr.mxu0 0.0
    %2754 = vmatpush1.msra.mxu0 0.0
    %2755 = vmatprep.subr.mxu0 0.0
    %2756 = vmatpush1.msra.mxu0 0.0
    %2757 = vmatprep.subr.mxu0 0.0
    %2758 = vmatpush1.msra.mxu0 0.0
    %2759 = vmatprep.subr.mxu0 0.0
    %2760 = vmatpush1.msra.mxu0 0.0
    %2761 = vmatprep.subr.mxu0 0.0
    %2762 = vmatpush1.msra.mxu0 0.0
    %2763 = vmatprep.subr.mxu0 0.0
    %2764 = vmatpush1.msra.mxu0 0.0
    %2765 = vmatprep.subr.mxu0 0.0
    %2766 = vmatpush1.msra.mxu0 0.0
    %2767 = vmatprep.subr.mxu0 0.0
    %2768 = vmatpush1.msra.mxu0 0.0
    %2769 = vmatprep.subr.mxu0 0.0
    %2770 = vmatpush1.msra.mxu0 0.0
    %2771 = vmatprep.mubr.f32.mxu0 %v2699
    %2772 = vmatmul.mubr.f32.gmra.mrb[0].mxu0 %v2693
    %v2773 = vpop.f32.mrb[0].mxu0
    %v2774 = vadd.f32 0.0, %v2773
    %v2775 = vpop.f32.mrb[0].mxu0
    %v2776 = vadd.f32 0.0, %v2775
    %2777 = vdwg.mxu0
    %v2778 = vsub.f32 0.0, %v2774
    %v2779 = vsub.f32 0.0, %v2776
    %v2780 = vmul.f32 %v2778, 1.442695
    %v2781 = vpow.pop %v2780
    %v2782 = vmul.f32 %v2779, 1.442695
    %v2783 = vpow.pop %v2782
    %v2784 = vadd.f32 %v2781, 1.0
    %v2785 = vadd.f32 %v2783, 1.0
    %v2786 = vrcp.pop %v2784
    %v2787 = vmul.f32 1.0, %v2786
    %v2788 = vrcp.pop %v2785
    %v2789 = vmul.f32 1.0, %v2788
    %v2792 = vcombine.low %v2787, %v2789
    %v2794 = vunpack.c.l.s4 1966171168
    %v2795 = vunpack.c.0.s8 %v2794
    %v2796 = vlaneseq
    %v2797 = vshrl.u32 %v2796, 7
    %v2798 = vsub.s32 %v2795, %v2797
    %v2799 = vrot.slane %v2792, %v2798
    %v2801 = vunpack.c.l.s4 1966171168
    %v2802 = vunpack.c.0.s8 %v2801
    %v2803 = vlaneseq
    %v2804 = vshrl.u32 %v2803, 7
    %v2805 = vsub.s32 %v2802, %v2804
    %v2806 = vrot.slane %v2799, %v2805
    %s2808 = scalar_lea.vmem [#allocation3], 4
    %2809 = vst.msk [vmem:[%s2808] ss:$8 sm:$0x3] %vm153, %v2806
    %2810 = vst.msk [vmem:[%s2808] ss:$8 sm:$0x0] %vm153, %v2806
    %v2811 = vcombine.high %v2230, %v2230
    %v2813 = vunpack.c.l.s4 1966171168
    %v2814 = vunpack.c.0.s8 %v2813
    %v2815 = vlaneseq
    %v2816 = vshrl.u32 %v2815, 7
    %v2817 = vsub.s32 %v2814, %v2816
    %v2818 = vrot.slane %v2811, %v2817
    %2820 = vst.msk [vmem:[#allocation2] ss:$8 sm:$0x3] %vm153, %v2818
    %2821 = vst.msk [vmem:[#allocation2] ss:$8 sm:$0x0] %vm153, %v2818
    %v2822 = vcombine.high %v2248, %v2248
    %v2824 = vunpack.c.l.s4 1966171168
    %v2825 = vunpack.c.0.s8 %v2824
    %v2826 = vlaneseq
    %v2827 = vshrl.u32 %v2826, 7
    %v2828 = vsub.s32 %v2825, %v2827
    %v2829 = vrot.slane %v2822, %v2828
    %2831 = vst.msk [vmem:[%s195] ss:$8 sm:$0x3] %vm153, %v2829
    %2832 = vst.msk [vmem:[%s195] ss:$8 sm:$0x0] %vm153, %v2829
    %v2833 = vcombine.high %v2266, %v2266
    %v2835 = vunpack.c.l.s4 1966171168
    %v2836 = vunpack.c.0.s8 %v2835
    %v2837 = vlaneseq
    %v2838 = vshrl.u32 %v2837, 7
    %v2839 = vsub.s32 %v2836, %v2838
    %v2840 = vrot.slane %v2833, %v2839
    %2842 = vst.msk [vmem:[%s216] ss:$8 sm:$0x3] %vm153, %v2840
    %2843 = vst.msk [vmem:[%s216] ss:$8 sm:$0x0] %vm153, %v2840
    %v2844 = vcombine.high %v2284, %v2284
    %v2846 = vunpack.c.l.s4 1966171168
    %v2847 = vunpack.c.0.s8 %v2846
    %v2848 = vlaneseq
    %v2849 = vshrl.u32 %v2848, 7
    %v2850 = vsub.s32 %v2847, %v2849
    %v2851 = vrot.slane %v2844, %v2850
    %2853 = vst.msk [vmem:[%s237] ss:$8 sm:$0x3] %vm153, %v2851
    %2854 = vst.msk [vmem:[%s237] ss:$8 sm:$0x0] %vm153, %v2851
    %v2855 = vcombine.high %v2302, %v2302
    %v2857 = vunpack.c.l.s4 1966171168
    %v2858 = vunpack.c.0.s8 %v2857
    %v2859 = vlaneseq
    %v2860 = vshrl.u32 %v2859, 7
    %v2861 = vsub.s32 %v2858, %v2860
    %v2862 = vrot.slane %v2855, %v2861
    %2864 = vst.msk [vmem:[%s258] ss:$8 sm:$0x3] %vm153, %v2862
    %2865 = vst.msk [vmem:[%s258] ss:$8 sm:$0x0] %vm153, %v2862
    %v2866 = vcombine.high %v2320, %v2320
    %v2868 = vunpack.c.l.s4 1966171168
    %v2869 = vunpack.c.0.s8 %v2868
    %v2870 = vlaneseq
    %v2871 = vshrl.u32 %v2870, 7
    %v2872 = vsub.s32 %v2869, %v2871
    %v2873 = vrot.slane %v2866, %v2872
    %2875 = vst.msk [vmem:[%s279] ss:$8 sm:$0x3] %vm153, %v2873
    %2876 = vst.msk [vmem:[%s279] ss:$8 sm:$0x0] %vm153, %v2873
    %v2877 = vcombine.high %v2338, %v2338
    %v2879 = vunpack.c.l.s4 1966171168
    %v2880 = vunpack.c.0.s8 %v2879
    %v2881 = vlaneseq
    %v2882 = vshrl.u32 %v2881, 7
    %v2883 = vsub.s32 %v2880, %v2882
    %v2884 = vrot.slane %v2877, %v2883
    %2886 = vst.msk [vmem:[%s300] ss:$8 sm:$0x3] %vm153, %v2884
    %2887 = vst.msk [vmem:[%s300] ss:$8 sm:$0x0] %vm153, %v2884
    %v2888 = vcombine.high %v2356, %v2356
    %v2890 = vunpack.c.l.s4 1966171168
    %v2891 = vunpack.c.0.s8 %v2890
    %v2892 = vlaneseq
    %v2893 = vshrl.u32 %v2892, 7
    %v2894 = vsub.s32 %v2891, %v2893
    %v2895 = vrot.slane %v2888, %v2894
    %2897 = vst.msk [vmem:[%s321] ss:$8 sm:$0x3] %vm153, %v2895
    %2898 = vst.msk [vmem:[%s321] ss:$8 sm:$0x0] %vm153, %v2895
    %v2899 = vcombine.high %v2374, %v2374
    %v2901 = vunpack.c.l.s4 1966171168
    %v2902 = vunpack.c.0.s8 %v2901
    %v2903 = vlaneseq
    %v2904 = vshrl.u32 %v2903, 7
    %v2905 = vsub.s32 %v2902, %v2904
    %v2906 = vrot.slane %v2899, %v2905
    %2908 = vst.msk [vmem:[%s342] ss:$8 sm:$0x3] %vm153, %v2906
    %2909 = vst.msk [vmem:[%s342] ss:$8 sm:$0x0] %vm153, %v2906
    %v2910 = vld [vmem:[%s3] sm:$0xff]
    %v2911 = vld [vmem:[%s3 + $0x8] sm:$0xff]
    %v2912 = vld [vmem:[%s3 + $0x10] sm:$0xff]
    %v2913 = vld [vmem:[%s3 + $0x18] sm:$0xff]
    %v2914 = vld [vmem:[%s3 + $0x20] sm:$0xff]
    %v2915 = vld [vmem:[%s3 + $0x28] sm:$0xff]
    %v2916 = vld [vmem:[%s3 + $0x30] sm:$0xff]
    %v2917 = vld [vmem:[%s3 + $0x38] sm:$0xff]
    %v2918 = vld [vmem:[%s3 + $0x40] sm:$0xff]
    %v2919 = vld [vmem:[%s3 + $0x48] sm:$0xff]
    %v2920 = vld [vmem:[%s3 + $0x50] sm:$0xff]
    %v2921 = vld [vmem:[%s3 + $0x58] sm:$0xff]
    %v2922 = vld [vmem:[%s3 + $0x60] sm:$0xff]
    %v2923 = vld [vmem:[%s3 + $0x68] sm:$0xff]
    %v2924 = vld [vmem:[%s3 + $0x70] sm:$0xff]
    %v2925 = vld [vmem:[%s3 + $0x78] sm:$0xff]
    %v2926 = vld [vmem:[%s3 + $0x80] sm:$0xff]
    %v2927 = vld [vmem:[%s3 + $0x88] sm:$0xff]
    %v2928 = vld [vmem:[%s3 + $0x90] sm:$0x3f]
    %v2929 = vld [vmem:[#allocation2] sm:$0xff]
    %v2930 = vld [vmem:[#allocation2 + $0x8] sm:$0xff]
    %v2931 = vld [vmem:[#allocation2 + $0x10] sm:$0x3]
    %v2932 = vld [vmem:[#allocation2 + $0x18] sm:$0x3]
    %v2934 = vsel %vm368, %v2910, 0
    %v2937 = vsel %vm368, %v2911, 0
    %v2940 = vsel %vm368, %v2912, 0
    %v2943 = vsel %vm368, %v2913, 0
    %v2946 = vsel %vm368, %v2914, 0
    %v2949 = vsel %vm368, %v2915, 0
    %v2952 = vsel %vm368, %v2916, 0
    %v2955 = vsel %vm368, %v2917, 0
    %v2958 = vsel %vm368, %v2918, 0
    %v2961 = vsel %vm368, %v2919, 0
    %v2964 = vsel %vm368, %v2920, 0
    %v2967 = vsel %vm368, %v2921, 0
    %v2970 = vsel %vm368, %v2922, 0
    %v2973 = vsel %vm368, %v2923, 0
    %v2976 = vsel %vm368, %v2924, 0
    %v2979 = vsel %vm368, %v2925, 0
    %v2982 = vsel %vm368, %v2926, 0
    %v2985 = vsel %vm368, %v2927, 0
    %v2988 = vsel %vm368, %v2928, 0
    %v2991 = vsel %vm426, %v2931, 0
    %v2994 = vsel %vm426, %v2932, 0
    %2996 = vmatprep.subr.mxu0 %v2930
    %2997 = vmatpush1.msra.mxu0 %v2929
    %2998 = vmatprep.subr.mxu0 %v2994
    %2999 = vmatpush1.msra.mxu0 %v2991
    %3000 = vmatprep.subr.mxu0 0.0
    %3001 = vmatpush1.msra.mxu0 0.0
    %3002 = vmatprep.subr.mxu0 0.0
    %3003 = vmatpush1.msra.mxu0 0.0
    %3004 = vmatprep.subr.mxu0 0.0
    %3005 = vmatpush1.msra.mxu0 0.0
    %3006 = vmatprep.subr.mxu0 0.0
    %3007 = vmatpush1.msra.mxu0 0.0
    %3008 = vmatprep.subr.mxu0 0.0
    %3009 = vmatpush1.msra.mxu0 0.0
    %3010 = vmatprep.subr.mxu0 0.0
    %3011 = vmatpush1.msra.mxu0 0.0
    %3012 = vmatprep.subr.mxu0 0.0
    %3013 = vmatpush1.msra.mxu0 0.0
    %3014 = vmatprep.subr.mxu0 0.0
    %3015 = vmatpush1.msra.mxu0 0.0
    %3016 = vmatprep.subr.mxu0 0.0
    %3017 = vmatpush1.msra.mxu0 0.0
    %3018 = vmatprep.subr.mxu0 0.0
    %3019 = vmatpush1.msra.mxu0 0.0
    %3020 = vmatprep.subr.mxu0 0.0
    %3021 = vmatpush1.msra.mxu0 0.0
    %3022 = vmatprep.subr.mxu0 0.0
    %3023 = vmatpush1.msra.mxu0 0.0
    %3024 = vmatprep.subr.mxu0 0.0
    %3025 = vmatpush1.msra.mxu0 0.0
    %3026 = vmatprep.subr.mxu0 0.0
    %3027 = vmatpush1.msra.mxu0 0.0
    %3028 = vmatprep.subr.mxu0 0.0
    %3029 = vmatpush1.msra.mxu0 0.0
    %3030 = vmatprep.subr.mxu0 0.0
    %3031 = vmatpush1.msra.mxu0 0.0
    %3032 = vmatprep.subr.mxu0 0.0
    %3033 = vmatpush1.msra.mxu0 0.0
    %3034 = vmatprep.subr.mxu0 0.0
    %3035 = vmatpush1.msra.mxu0 0.0
    %3036 = vmatprep.subr.mxu0 0.0
    %3037 = vmatpush1.msra.mxu0 0.0
    %3038 = vmatprep.subr.mxu0 0.0
    %3039 = vmatpush1.msra.mxu0 0.0
    %3040 = vmatprep.subr.mxu0 0.0
    %3041 = vmatpush1.msra.mxu0 0.0
    %3042 = vmatprep.subr.mxu0 0.0
    %3043 = vmatpush1.msra.mxu0 0.0
    %3044 = vmatprep.subr.mxu0 0.0
    %3045 = vmatpush1.msra.mxu0 0.0
    %3046 = vmatprep.subr.mxu0 0.0
    %3047 = vmatpush1.msra.mxu0 0.0
    %3048 = vmatprep.subr.mxu0 0.0
    %3049 = vmatpush1.msra.mxu0 0.0
    %3050 = vmatprep.subr.mxu0 0.0
    %3051 = vmatpush1.msra.mxu0 0.0
    %3052 = vmatprep.subr.mxu0 0.0
    %3053 = vmatpush1.msra.mxu0 0.0
    %3054 = vmatprep.subr.mxu0 0.0
    %3055 = vmatpush1.msra.mxu0 0.0
    %3056 = vmatprep.subr.mxu0 0.0
    %3057 = vmatpush1.msra.mxu0 0.0
    %3058 = vmatprep.subr.mxu0 0.0
    %3059 = vmatpush1.msra.mxu0 0.0
    %3060 = vmatprep.mubr.f32.mxu0 0.0
    %3061 = vmatmul.mubr.f32.gmra.mrb[0].mxu0 %v2934
    %v3062 = vpop.f32.mrb[0].mxu0
    %v3063 = vadd.f32 0.0, %v3062
    %v3064 = vpop.f32.mrb[0].mxu0
    %v3065 = vadd.f32 0.0, %v3064
    %3066 = vmatprep.mubr.f32.mxu0 0.0
    %3067 = vmatmul.mubr.f32.gmra.mrb[0].mxu0 %v2937
    %v3068 = vpop.f32.mrb[0].mxu0
    %v3069 = vadd.f32 0.0, %v3068
    %v3070 = vpop.f32.mrb[0].mxu0
    %v3071 = vadd.f32 0.0, %v3070
    %3072 = vmatprep.mubr.f32.mxu0 0.0
    %3073 = vmatmul.mubr.f32.gmra.mrb[0].mxu0 %v2940
    %v3074 = vpop.f32.mrb[0].mxu0
    %v3075 = vadd.f32 0.0, %v3074
    %v3076 = vpop.f32.mrb[0].mxu0
    %v3077 = vadd.f32 0.0, %v3076
    %3078 = vmatprep.mubr.f32.mxu0 0.0
    %3079 = vmatmul.mubr.f32.gmra.mrb[0].mxu0 %v2943
    %v3080 = vpop.f32.mrb[0].mxu0
    %v3081 = vadd.f32 0.0, %v3080
    %v3082 = vpop.f32.mrb[0].mxu0
    %v3083 = vadd.f32 0.0, %v3082
    %3084 = vmatprep.mubr.f32.mxu0 0.0
    %3085 = vmatmul.mubr.f32.gmra.mrb[0].mxu0 %v2946
    %v3086 = vpop.f32.mrb[0].mxu0
    %v3087 = vadd.f32 0.0, %v3086
    %v3088 = vpop.f32.mrb[0].mxu0
    %v3089 = vadd.f32 0.0, %v3088
    %3090 = vmatprep.mubr.f32.mxu0 0.0
    %3091 = vmatmul.mubr.f32.gmra.mrb[0].mxu0 %v2949
    %v3092 = vpop.f32.mrb[0].mxu0
    %v3093 = vadd.f32 0.0, %v3092
    %v3094 = vpop.f32.mrb[0].mxu0
    %v3095 = vadd.f32 0.0, %v3094
    %3096 = vmatprep.mubr.f32.mxu0 0.0
    %3097 = vmatmul.mubr.f32.gmra.mrb[0].mxu0 %v2952
    %v3098 = vpop.f32.mrb[0].mxu0
    %v3099 = vadd.f32 0.0, %v3098
    %v3100 = vpop.f32.mrb[0].mxu0
    %v3101 = vadd.f32 0.0, %v3100
    %3102 = vmatprep.mubr.f32.mxu0 0.0
    %3103 = vmatmul.mubr.f32.gmra.mrb[0].mxu0 %v2955
    %v3104 = vpop.f32.mrb[0].mxu0
    %v3105 = vadd.f32 0.0, %v3104
    %v3106 = vpop.f32.mrb[0].mxu0
    %v3107 = vadd.f32 0.0, %v3106
    %3108 = vmatprep.mubr.f32.mxu0 0.0
    %3109 = vmatmul.mubr.f32.gmra.mrb[0].mxu0 %v2958
    %v3110 = vpop.f32.mrb[0].mxu0
    %v3111 = vadd.f32 0.0, %v3110
    %v3112 = vpop.f32.mrb[0].mxu0
    %v3113 = vadd.f32 0.0, %v3112
    %3114 = vmatprep.mubr.f32.mxu0 0.0
    %3115 = vmatmul.mubr.f32.gmra.mrb[0].mxu0 %v2961
    %v3116 = vpop.f32.mrb[0].mxu0
    %v3117 = vadd.f32 0.0, %v3116
    %v3118 = vpop.f32.mrb[0].mxu0
    %v3119 = vadd.f32 0.0, %v3118
    %3120 = vmatprep.mubr.f32.mxu0 0.0
    %3121 = vmatmul.mubr.f32.gmra.mrb[0].mxu0 %v2964
    %v3122 = vpop.f32.mrb[0].mxu0
    %v3123 = vadd.f32 0.0, %v3122
    %v3124 = vpop.f32.mrb[0].mxu0
    %v3125 = vadd.f32 0.0, %v3124
    %3126 = vmatprep.mubr.f32.mxu0 0.0
    %3127 = vmatmul.mubr.f32.gmra.mrb[0].mxu0 %v2967
    %v3128 = vpop.f32.mrb[0].mxu0
    %v3129 = vadd.f32 0.0, %v3128
    %v3130 = vpop.f32.mrb[0].mxu0
    %v3131 = vadd.f32 0.0, %v3130
    %3132 = vmatprep.mubr.f32.mxu0 0.0
    %3133 = vmatmul.mubr.f32.gmra.mrb[0].mxu0 %v2970
    %v3134 = vpop.f32.mrb[0].mxu0
    %v3135 = vadd.f32 0.0, %v3134
    %v3136 = vpop.f32.mrb[0].mxu0
    %v3137 = vadd.f32 0.0, %v3136
    %3138 = vmatprep.mubr.f32.mxu0 0.0
    %3139 = vmatmul.mubr.f32.gmra.mrb[0].mxu0 %v2973
    %v3140 = vpop.f32.mrb[0].mxu0
    %v3141 = vadd.f32 0.0, %v3140
    %v3142 = vpop.f32.mrb[0].mxu0
    %v3143 = vadd.f32 0.0, %v3142
    %3144 = vmatprep.mubr.f32.mxu0 0.0
    %3145 = vmatmul.mubr.f32.gmra.mrb[0].mxu0 %v2976
    %v3146 = vpop.f32.mrb[0].mxu0
    %v3147 = vadd.f32 0.0, %v3146
    %v3148 = vpop.f32.mrb[0].mxu0
    %v3149 = vadd.f32 0.0, %v3148
    %3150 = vmatprep.mubr.f32.mxu0 0.0
    %3151 = vmatmul.mubr.f32.gmra.mrb[0].mxu0 %v2979
    %v3152 = vpop.f32.mrb[0].mxu0
    %v3153 = vadd.f32 0.0, %v3152
    %v3154 = vpop.f32.mrb[0].mxu0
    %v3155 = vadd.f32 0.0, %v3154
    %3156 = vmatprep.mubr.f32.mxu0 0.0
    %3157 = vmatmul.mubr.f32.gmra.mrb[0].mxu0 %v2982
    %v3158 = vpop.f32.mrb[0].mxu0
    %v3159 = vadd.f32 0.0, %v3158
    %v3160 = vpop.f32.mrb[0].mxu0
    %v3161 = vadd.f32 0.0, %v3160
    %3162 = vmatprep.mubr.f32.mxu0 0.0
    %3163 = vmatmul.mubr.f32.gmra.mrb[0].mxu0 %v2985
    %v3164 = vpop.f32.mrb[0].mxu0
    %v3165 = vadd.f32 0.0, %v3164
    %v3166 = vpop.f32.mrb[0].mxu0
    %v3167 = vadd.f32 0.0, %v3166
    %3168 = vmatprep.mubr.f32.mxu0 0.0
    %3169 = vmatmul.mubr.f32.gmra.mrb[0].mxu0 %v2988
    %v3170 = vpop.f32.mrb[0].mxu0
    %v3171 = vadd.f32 0.0, %v3170
    %v3172 = vpop.f32.mrb[0].mxu0
    %v3173 = vadd.f32 0.0, %v3172
    %3174 = vdwg.mxu0
    %v3175 = vmax.f32 %v3063, 0.0
    %v3176 = vmax.f32 %v3065, 0.0
    %v3177 = vmax.f32 %v3069, 0.0
    %v3178 = vmax.f32 %v3071, 0.0
    %v3179 = vmax.f32 %v3075, 0.0
    %v3180 = vmax.f32 %v3077, 0.0
    %v3181 = vmax.f32 %v3081, 0.0
    %v3182 = vmax.f32 %v3083, 0.0
    %v3183 = vmax.f32 %v3087, 0.0
    %v3184 = vmax.f32 %v3089, 0.0
    %v3185 = vmax.f32 %v3093, 0.0
    %v3186 = vmax.f32 %v3095, 0.0
    %v3187 = vmax.f32 %v3099, 0.0
    %v3188 = vmax.f32 %v3101, 0.0
    %v3189 = vmax.f32 %v3105, 0.0
    %v3190 = vmax.f32 %v3107, 0.0
    %v3191 = vmax.f32 %v3111, 0.0
    %v3192 = vmax.f32 %v3113, 0.0
    %v3193 = vmax.f32 %v3117, 0.0
    %v3194 = vmax.f32 %v3119, 0.0
    %v3195 = vmax.f32 %v3123, 0.0
    %v3196 = vmax.f32 %v3125, 0.0
    %v3197 = vmax.f32 %v3129, 0.0
    %v3198 = vmax.f32 %v3131, 0.0
    %v3199 = vmax.f32 %v3135, 0.0
    %v3200 = vmax.f32 %v3137, 0.0
    %v3201 = vmax.f32 %v3141, 0.0
    %v3202 = vmax.f32 %v3143, 0.0
    %v3203 = vmax.f32 %v3147, 0.0
    %v3204 = vmax.f32 %v3149, 0.0
    %v3205 = vmax.f32 %v3153, 0.0
    %v3206 = vmax.f32 %v3155, 0.0
    %v3207 = vmax.f32 %v3159, 0.0
    %v3208 = vmax.f32 %v3161, 0.0
    %v3209 = vmax.f32 %v3165, 0.0
    %v3210 = vmax.f32 %v3167, 0.0
    %v3211 = vmax.f32 %v3171, 0.0
    %v3212 = vmax.f32 %v3173, 0.0
    %v3213 = vld [vmem:[%s4] sm:$0x3]
    %v3215 = vlaneseq
    %v3216 = vshrl.u32 %v3215, 7
    %v3217 = vsub.s32 0, %v3216
    %v3218 = vrot.slane %v3213, %v3217
    %v3219 = vlaneseq
    %v3220 = vshrl.u32 %v3219, 7
    %v3221 = vsub.s32 1, %v3220
    %v3222 = vrot.slane %v3213, %v3221
    %v3224 = vsel %vm661, %v3222, 0
    %v3227 = vsel %vm664, %v3211, 0
    %v3230 = vsel %vm664, %v3212, 0
    %3232 = vmatprep.subr.mxu0 %v3176
    %3233 = vmatpush1.msra.mxu0 %v3175
    %3234 = vmatprep.subr.mxu0 %v3178
    %3235 = vmatpush1.msra.mxu0 %v3177
    %3236 = vmatprep.subr.mxu0 %v3180
    %3237 = vmatpush1.msra.mxu0 %v3179
    %3238 = vmatprep.subr.mxu0 %v3182
    %3239 = vmatpush1.msra.mxu0 %v3181
    %3240 = vmatprep.subr.mxu0 %v3184
    %3241 = vmatpush1.msra.mxu0 %v3183
    %3242 = vmatprep.subr.mxu0 %v3186
    %3243 = vmatpush1.msra.mxu0 %v3185
    %3244 = vmatprep.subr.mxu0 %v3188
    %3245 = vmatpush1.msra.mxu0 %v3187
    %3246 = vmatprep.subr.mxu0 %v3190
    %3247 = vmatpush1.msra.mxu0 %v3189
    %3248 = vmatprep.subr.mxu0 %v3192
    %3249 = vmatpush1.msra.mxu0 %v3191
    %3250 = vmatprep.subr.mxu0 %v3194
    %3251 = vmatpush1.msra.mxu0 %v3193
    %3252 = vmatprep.subr.mxu0 %v3196
    %3253 = vmatpush1.msra.mxu0 %v3195
    %3254 = vmatprep.subr.mxu0 %v3198
    %3255 = vmatpush1.msra.mxu0 %v3197
    %3256 = vmatprep.subr.mxu0 %v3200
    %3257 = vmatpush1.msra.mxu0 %v3199
    %3258 = vmatprep.subr.mxu0 %v3202
    %3259 = vmatpush1.msra.mxu0 %v3201
    %3260 = vmatprep.subr.mxu0 %v3204
    %3261 = vmatpush1.msra.mxu0 %v3203
    %3262 = vmatprep.subr.mxu0 %v3206
    %3263 = vmatpush1.msra.mxu0 %v3205
    %3264 = vmatprep.subr.mxu0 %v3208
    %3265 = vmatpush1.msra.mxu0 %v3207
    %3266 = vmatprep.subr.mxu0 %v3210
    %3267 = vmatpush1.msra.mxu0 %v3209
    %3268 = vmatprep.subr.mxu0 %v3230
    %3269 = vmatpush1.msra.mxu0 %v3227
    %3270 = vmatprep.subr.mxu0 0.0
    %3271 = vmatpush1.msra.mxu0 0.0
    %3272 = vmatprep.subr.mxu0 0.0
    %3273 = vmatpush1.msra.mxu0 0.0
    %3274 = vmatprep.subr.mxu0 0.0
    %3275 = vmatpush1.msra.mxu0 0.0
    %3276 = vmatprep.subr.mxu0 0.0
    %3277 = vmatpush1.msra.mxu0 0.0
    %3278 = vmatprep.subr.mxu0 0.0
    %3279 = vmatpush1.msra.mxu0 0.0
    %3280 = vmatprep.subr.mxu0 0.0
    %3281 = vmatpush1.msra.mxu0 0.0
    %3282 = vmatprep.subr.mxu0 0.0
    %3283 = vmatpush1.msra.mxu0 0.0
    %3284 = vmatprep.subr.mxu0 0.0
    %3285 = vmatpush1.msra.mxu0 0.0
    %3286 = vmatprep.subr.mxu0 0.0
    %3287 = vmatpush1.msra.mxu0 0.0
    %3288 = vmatprep.subr.mxu0 0.0
    %3289 = vmatpush1.msra.mxu0 0.0
    %3290 = vmatprep.subr.mxu0 0.0
    %3291 = vmatpush1.msra.mxu0 0.0
    %3292 = vmatprep.subr.mxu0 0.0
    %3293 = vmatpush1.msra.mxu0 0.0
    %3294 = vmatprep.subr.mxu0 0.0
    %3295 = vmatpush1.msra.mxu0 0.0
    %3296 = vmatprep.mubr.f32.mxu0 %v3224
    %3297 = vmatmul.mubr.f32.gmra.mrb[0].mxu0 %v3218
    %v3298 = vpop.f32.mrb[0].mxu0
    %v3299 = vadd.f32 0.0, %v3298
    %v3300 = vpop.f32.mrb[0].mxu0
    %v3301 = vadd.f32 0.0, %v3300
    %3302 = vdwg.mxu0
    %v3303 = vsub.f32 0.0, %v3299
    %v3304 = vsub.f32 0.0, %v3301
    %v3305 = vmul.f32 %v3303, 1.442695
    %v3306 = vpow.pop %v3305
    %v3307 = vmul.f32 %v3304, 1.442695
    %v3308 = vpow.pop %v3307
    %v3309 = vadd.f32 %v3306, 1.0
    %v3310 = vadd.f32 %v3308, 1.0
    %v3311 = vrcp.pop %v3309
    %v3312 = vmul.f32 1.0, %v3311
    %v3313 = vrcp.pop %v3310
    %v3314 = vmul.f32 1.0, %v3313
    %v3317 = vcombine.low %v3312, %v3314
    %v3319 = vunpack.c.l.s4 1966171168
    %v3320 = vunpack.c.0.s8 %v3319
    %v3321 = vlaneseq
    %v3322 = vshrl.u32 %v3321, 7
    %v3323 = vsub.s32 %v3320, %v3322
    %v3324 = vrot.slane %v3317, %v3323
    %v3326 = vunpack.c.l.s4 1966171168
    %v3327 = vunpack.c.0.s8 %v3326
    %v3328 = vlaneseq
    %v3329 = vshrl.u32 %v3328, 7
    %v3330 = vsub.s32 %v3327, %v3329
    %v3331 = vrot.slane %v3324, %v3330
    %s3333 = scalar_lea.vmem [#allocation3], 5
    %3334 = vst.msk [vmem:[%s3333] ss:$8 sm:$0x3] %vm153, %v3331
    %3335 = vst.msk [vmem:[%s3333] ss:$8 sm:$0x0] %vm153, %v3331
    %v3336 = vcombine.high %v2237, %v2237
    %3338 = vst.msk [vmem:[#allocation2] ss:$8 sm:$0x3] %vm153, %v3336
    %3339 = vst.msk [vmem:[#allocation2] ss:$8 sm:$0x0] %vm153, %v3336
    %v3340 = vcombine.high %v2255, %v2255
    %3342 = vst.msk [vmem:[%s195] ss:$8 sm:$0x3] %vm153, %v3340
    %3343 = vst.msk [vmem:[%s195] ss:$8 sm:$0x0] %vm153, %v3340
    %v3344 = vcombine.high %v2273, %v2273
    %3346 = vst.msk [vmem:[%s216] ss:$8 sm:$0x3] %vm153, %v3344
    %3347 = vst.msk [vmem:[%s216] ss:$8 sm:$0x0] %vm153, %v3344
    %v3348 = vcombine.high %v2291, %v2291
    %3350 = vst.msk [vmem:[%s237] ss:$8 sm:$0x3] %vm153, %v3348
    %3351 = vst.msk [vmem:[%s237] ss:$8 sm:$0x0] %vm153, %v3348
    %v3352 = vcombine.high %v2309, %v2309
    %3354 = vst.msk [vmem:[%s258] ss:$8 sm:$0x3] %vm153, %v3352
    %3355 = vst.msk [vmem:[%s258] ss:$8 sm:$0x0] %vm153, %v3352
    %v3356 = vcombine.high %v2327, %v2327
    %3358 = vst.msk [vmem:[%s279] ss:$8 sm:$0x3] %vm153, %v3356
    %3359 = vst.msk [vmem:[%s279] ss:$8 sm:$0x0] %vm153, %v3356
    %v3360 = vcombine.high %v2345, %v2345
    %3362 = vst.msk [vmem:[%s300] ss:$8 sm:$0x3] %vm153, %v3360
    %3363 = vst.msk [vmem:[%s300] ss:$8 sm:$0x0] %vm153, %v3360
    %v3364 = vcombine.high %v2363, %v2363
    %3366 = vst.msk [vmem:[%s321] ss:$8 sm:$0x3] %vm153, %v3364
    %3367 = vst.msk [vmem:[%s321] ss:$8 sm:$0x0] %vm153, %v3364
    %v3368 = vcombine.high %v2381, %v2381
    %3370 = vst.msk [vmem:[%s342] ss:$8 sm:$0x3] %vm153, %v3368
    %3371 = vst.msk [vmem:[%s342] ss:$8 sm:$0x0] %vm153, %v3368
    %v3372 = vld [vmem:[%s3] sm:$0xff]
    %v3373 = vld [vmem:[%s3 + $0x8] sm:$0xff]
    %v3374 = vld [vmem:[%s3 + $0x10] sm:$0xff]
    %v3375 = vld [vmem:[%s3 + $0x18] sm:$0xff]
    %v3376 = vld [vmem:[%s3 + $0x20] sm:$0xff]
    %v3377 = vld [vmem:[%s3 + $0x28] sm:$0xff]
    %v3378 = vld [vmem:[%s3 + $0x30] sm:$0xff]
    %v3379 = vld [vmem:[%s3 + $0x38] sm:$0xff]
    %v3380 = vld [vmem:[%s3 + $0x40] sm:$0xff]
    %v3381 = vld [vmem:[%s3 + $0x48] sm:$0xff]
    %v3382 = vld [vmem:[%s3 + $0x50] sm:$0xff]
    %v3383 = vld [vmem:[%s3 + $0x58] sm:$0xff]
    %v3384 = vld [vmem:[%s3 + $0x60] sm:$0xff]
    %v3385 = vld [vmem:[%s3 + $0x68] sm:$0xff]
    %v3386 = vld [vmem:[%s3 + $0x70] sm:$0xff]
    %v3387 = vld [vmem:[%s3 + $0x78] sm:$0xff]
    %v3388 = vld [vmem:[%s3 + $0x80] sm:$0xff]
    %v3389 = vld [vmem:[%s3 + $0x88] sm:$0xff]
    %v3390 = vld [vmem:[%s3 + $0x90] sm:$0x3f]
    %v3391 = vld [vmem:[#allocation2] sm:$0xff]
    %v3392 = vld [vmem:[#allocation2 + $0x8] sm:$0xff]
    %v3393 = vld [vmem:[#allocation2 + $0x10] sm:$0x3]
    %v3394 = vld [vmem:[#allocation2 + $0x18] sm:$0x3]
    %v3396 = vsel %vm368, %v3372, 0
    %v3399 = vsel %vm368, %v3373, 0
    %v3402 = vsel %vm368, %v3374, 0
    %v3405 = vsel %vm368, %v3375, 0
    %v3408 = vsel %vm368, %v3376, 0
    %v3411 = vsel %vm368, %v3377, 0
    %v3414 = vsel %vm368, %v3378, 0
    %v3417 = vsel %vm368, %v3379, 0
    %v3420 = vsel %vm368, %v3380, 0
    %v3423 = vsel %vm368, %v3381, 0
    %v3426 = vsel %vm368, %v3382, 0
    %v3429 = vsel %vm368, %v3383, 0
    %v3432 = vsel %vm368, %v3384, 0
    %v3435 = vsel %vm368, %v3385, 0
    %v3438 = vsel %vm368, %v3386, 0
    %v3441 = vsel %vm368, %v3387, 0
    %v3444 = vsel %vm368, %v3388, 0
    %v3447 = vsel %vm368, %v3389, 0
    %v3450 = vsel %vm368, %v3390, 0
    %v3453 = vsel %vm426, %v3393, 0
    %v3456 = vsel %vm426, %v3394, 0
    %3458 = vmatprep.subr.mxu0 %v3392
    %3459 = vmatpush1.msra.mxu0 %v3391
    %3460 = vmatprep.subr.mxu0 %v3456
    %3461 = vmatpush1.msra.mxu0 %v3453
    %3462 = vmatprep.subr.mxu0 0.0
    %3463 = vmatpush1.msra.mxu0 0.0
    %3464 = vmatprep.subr.mxu0 0.0
    %3465 = vmatpush1.msra.mxu0 0.0
    %3466 = vmatprep.subr.mxu0 0.0
    %3467 = vmatpush1.msra.mxu0 0.0
    %3468 = vmatprep.subr.mxu0 0.0
    %3469 = vmatpush1.msra.mxu0 0.0
    %3470 = vmatprep.subr.mxu0 0.0
    %3471 = vmatpush1.msra.mxu0 0.0
    %3472 = vmatprep.subr.mxu0 0.0
    %3473 = vmatpush1.msra.mxu0 0.0
    %3474 = vmatprep.subr.mxu0 0.0
    %3475 = vmatpush1.msra.mxu0 0.0
    %3476 = vmatprep.subr.mxu0 0.0
    %3477 = vmatpush1.msra.mxu0 0.0
    %3478 = vmatprep.subr.mxu0 0.0
    %3479 = vmatpush1.msra.mxu0 0.0
    %3480 = vmatprep.subr.mxu0 0.0
    %3481 = vmatpush1.msra.mxu0 0.0
    %3482 = vmatprep.subr.mxu0 0.0
    %3483 = vmatpush1.msra.mxu0 0.0
    %3484 = vmatprep.subr.mxu0 0.0
    %3485 = vmatpush1.msra.mxu0 0.0
    %3486 = vmatprep.subr.mxu0 0.0
    %3487 = vmatpush1.msra.mxu0 0.0
    %3488 = vmatprep.subr.mxu0 0.0
    %3489 = vmatpush1.msra.mxu0 0.0
    %3490 = vmatprep.subr.mxu0 0.0
    %3491 = vmatpush1.msra.mxu0 0.0
    %3492 = vmatprep.subr.mxu0 0.0
    %3493 = vmatpush1.msra.mxu0 0.0
    %3494 = vmatprep.subr.mxu0 0.0
    %3495 = vmatpush1.msra.mxu0 0.0
    %3496 = vmatprep.subr.mxu0 0.0
    %3497 = vmatpush1.msra.mxu0 0.0
    %3498 = vmatprep.subr.mxu0 0.0
    %3499 = vmatpush1.msra.mxu0 0.0
    %3500 = vmatprep.subr.mxu0 0.0
    %3501 = vmatpush1.msra.mxu0 0.0
    %3502 = vmatprep.subr.mxu0 0.0
    %3503 = vmatpush1.msra.mxu0 0.0
    %3504 = vmatprep.subr.mxu0 0.0
    %3505 = vmatpush1.msra.mxu0 0.0
    %3506 = vmatprep.subr.mxu0 0.0
    %3507 = vmatpush1.msra.mxu0 0.0
    %3508 = vmatprep.subr.mxu0 0.0
    %3509 = vmatpush1.msra.mxu0 0.0
    %3510 = vmatprep.subr.mxu0 0.0
    %3511 = vmatpush1.msra.mxu0 0.0
    %3512 = vmatprep.subr.mxu0 0.0
    %3513 = vmatpush1.msra.mxu0 0.0
    %3514 = vmatprep.subr.mxu0 0.0
    %3515 = vmatpush1.msra.mxu0 0.0
    %3516 = vmatprep.subr.mxu0 0.0
    %3517 = vmatpush1.msra.mxu0 0.0
    %3518 = vmatprep.subr.mxu0 0.0
    %3519 = vmatpush1.msra.mxu0 0.0
    %3520 = vmatprep.subr.mxu0 0.0
    %3521 = vmatpush1.msra.mxu0 0.0
    %3522 = vmatprep.mubr.f32.mxu0 0.0
    %3523 = vmatmul.mubr.f32.gmra.mrb[0].mxu0 %v3396
    %v3524 = vpop.f32.mrb[0].mxu0
    %v3525 = vadd.f32 0.0, %v3524
    %v3526 = vpop.f32.mrb[0].mxu0
    %v3527 = vadd.f32 0.0, %v3526
    %3528 = vmatprep.mubr.f32.mxu0 0.0
    %3529 = vmatmul.mubr.f32.gmra.mrb[0].mxu0 %v3399
    %v3530 = vpop.f32.mrb[0].mxu0
    %v3531 = vadd.f32 0.0, %v3530
    %v3532 = vpop.f32.mrb[0].mxu0
    %v3533 = vadd.f32 0.0, %v3532
    %3534 = vmatprep.mubr.f32.mxu0 0.0
    %3535 = vmatmul.mubr.f32.gmra.mrb[0].mxu0 %v3402
    %v3536 = vpop.f32.mrb[0].mxu0
    %v3537 = vadd.f32 0.0, %v3536
    %v3538 = vpop.f32.mrb[0].mxu0
    %v3539 = vadd.f32 0.0, %v3538
    %3540 = vmatprep.mubr.f32.mxu0 0.0
    %3541 = vmatmul.mubr.f32.gmra.mrb[0].mxu0 %v3405
    %v3542 = vpop.f32.mrb[0].mxu0
    %v3543 = vadd.f32 0.0, %v3542
    %v3544 = vpop.f32.mrb[0].mxu0
    %v3545 = vadd.f32 0.0, %v3544
    %3546 = vmatprep.mubr.f32.mxu0 0.0
    %3547 = vmatmul.mubr.f32.gmra.mrb[0].mxu0 %v3408
    %v3548 = vpop.f32.mrb[0].mxu0
    %v3549 = vadd.f32 0.0, %v3548
    %v3550 = vpop.f32.mrb[0].mxu0
    %v3551 = vadd.f32 0.0, %v3550
    %3552 = vmatprep.mubr.f32.mxu0 0.0
    %3553 = vmatmul.mubr.f32.gmra.mrb[0].mxu0 %v3411
    %v3554 = vpop.f32.mrb[0].mxu0
    %v3555 = vadd.f32 0.0, %v3554
    %v3556 = vpop.f32.mrb[0].mxu0
    %v3557 = vadd.f32 0.0, %v3556
    %3558 = vmatprep.mubr.f32.mxu0 0.0
    %3559 = vmatmul.mubr.f32.gmra.mrb[0].mxu0 %v3414
    %v3560 = vpop.f32.mrb[0].mxu0
    %v3561 = vadd.f32 0.0, %v3560
    %v3562 = vpop.f32.mrb[0].mxu0
    %v3563 = vadd.f32 0.0, %v3562
    %3564 = vmatprep.mubr.f32.mxu0 0.0
    %3565 = vmatmul.mubr.f32.gmra.mrb[0].mxu0 %v3417
    %v3566 = vpop.f32.mrb[0].mxu0
    %v3567 = vadd.f32 0.0, %v3566
    %v3568 = vpop.f32.mrb[0].mxu0
    %v3569 = vadd.f32 0.0, %v3568
    %3570 = vmatprep.mubr.f32.mxu0 0.0
    %3571 = vmatmul.mubr.f32.gmra.mrb[0].mxu0 %v3420
    %v3572 = vpop.f32.mrb[0].mxu0
    %v3573 = vadd.f32 0.0, %v3572
    %v3574 = vpop.f32.mrb[0].mxu0
    %v3575 = vadd.f32 0.0, %v3574
    %3576 = vmatprep.mubr.f32.mxu0 0.0
    %3577 = vmatmul.mubr.f32.gmra.mrb[0].mxu0 %v3423
    %v3578 = vpop.f32.mrb[0].mxu0
    %v3579 = vadd.f32 0.0, %v3578
    %v3580 = vpop.f32.mrb[0].mxu0
    %v3581 = vadd.f32 0.0, %v3580
    %3582 = vmatprep.mubr.f32.mxu0 0.0
    %3583 = vmatmul.mubr.f32.gmra.mrb[0].mxu0 %v3426
    %v3584 = vpop.f32.mrb[0].mxu0
    %v3585 = vadd.f32 0.0, %v3584
    %v3586 = vpop.f32.mrb[0].mxu0
    %v3587 = vadd.f32 0.0, %v3586
    %3588 = vmatprep.mubr.f32.mxu0 0.0
    %3589 = vmatmul.mubr.f32.gmra.mrb[0].mxu0 %v3429
    %v3590 = vpop.f32.mrb[0].mxu0
    %v3591 = vadd.f32 0.0, %v3590
    %v3592 = vpop.f32.mrb[0].mxu0
    %v3593 = vadd.f32 0.0, %v3592
    %3594 = vmatprep.mubr.f32.mxu0 0.0
    %3595 = vmatmul.mubr.f32.gmra.mrb[0].mxu0 %v3432
    %v3596 = vpop.f32.mrb[0].mxu0
    %v3597 = vadd.f32 0.0, %v3596
    %v3598 = vpop.f32.mrb[0].mxu0
    %v3599 = vadd.f32 0.0, %v3598
    %3600 = vmatprep.mubr.f32.mxu0 0.0
    %3601 = vmatmul.mubr.f32.gmra.mrb[0].mxu0 %v3435
    %v3602 = vpop.f32.mrb[0].mxu0
    %v3603 = vadd.f32 0.0, %v3602
    %v3604 = vpop.f32.mrb[0].mxu0
    %v3605 = vadd.f32 0.0, %v3604
    %3606 = vmatprep.mubr.f32.mxu0 0.0
    %3607 = vmatmul.mubr.f32.gmra.mrb[0].mxu0 %v3438
    %v3608 = vpop.f32.mrb[0].mxu0
    %v3609 = vadd.f32 0.0, %v3608
    %v3610 = vpop.f32.mrb[0].mxu0
    %v3611 = vadd.f32 0.0, %v3610
    %3612 = vmatprep.mubr.f32.mxu0 0.0
    %3613 = vmatmul.mubr.f32.gmra.mrb[0].mxu0 %v3441
    %v3614 = vpop.f32.mrb[0].mxu0
    %v3615 = vadd.f32 0.0, %v3614
    %v3616 = vpop.f32.mrb[0].mxu0
    %v3617 = vadd.f32 0.0, %v3616
    %3618 = vmatprep.mubr.f32.mxu0 0.0
    %3619 = vmatmul.mubr.f32.gmra.mrb[0].mxu0 %v3444
    %v3620 = vpop.f32.mrb[0].mxu0
    %v3621 = vadd.f32 0.0, %v3620
    %v3622 = vpop.f32.mrb[0].mxu0
    %v3623 = vadd.f32 0.0, %v3622
    %3624 = vmatprep.mubr.f32.mxu0 0.0
    %3625 = vmatmul.mubr.f32.gmra.mrb[0].mxu0 %v3447
    %v3626 = vpop.f32.mrb[0].mxu0
    %v3627 = vadd.f32 0.0, %v3626
    %v3628 = vpop.f32.mrb[0].mxu0
    %v3629 = vadd.f32 0.0, %v3628
    %3630 = vmatprep.mubr.f32.mxu0 0.0
    %3631 = vmatmul.mubr.f32.gmra.mrb[0].mxu0 %v3450
    %v3632 = vpop.f32.mrb[0].mxu0
    %v3633 = vadd.f32 0.0, %v3632
    %v3634 = vpop.f32.mrb[0].mxu0
    %v3635 = vadd.f32 0.0, %v3634
    %3636 = vdwg.mxu0
    %v3637 = vmax.f32 %v3525, 0.0
    %v3638 = vmax.f32 %v3527, 0.0
    %v3639 = vmax.f32 %v3531, 0.0
    %v3640 = vmax.f32 %v3533, 0.0
    %v3641 = vmax.f32 %v3537, 0.0
    %v3642 = vmax.f32 %v3539, 0.0
    %v3643 = vmax.f32 %v3543, 0.0
    %v3644 = vmax.f32 %v3545, 0.0
    %v3645 = vmax.f32 %v3549, 0.0
    %v3646 = vmax.f32 %v3551, 0.0
    %v3647 = vmax.f32 %v3555, 0.0
    %v3648 = vmax.f32 %v3557, 0.0
    %v3649 = vmax.f32 %v3561, 0.0
    %v3650 = vmax.f32 %v3563, 0.0
    %v3651 = vmax.f32 %v3567, 0.0
    %v3652 = vmax.f32 %v3569, 0.0
    %v3653 = vmax.f32 %v3573, 0.0
    %v3654 = vmax.f32 %v3575, 0.0
    %v3655 = vmax.f32 %v3579, 0.0
    %v3656 = vmax.f32 %v3581, 0.0
    %v3657 = vmax.f32 %v3585, 0.0
    %v3658 = vmax.f32 %v3587, 0.0
    %v3659 = vmax.f32 %v3591, 0.0
    %v3660 = vmax.f32 %v3593, 0.0
    %v3661 = vmax.f32 %v3597, 0.0
    %v3662 = vmax.f32 %v3599, 0.0
    %v3663 = vmax.f32 %v3603, 0.0
    %v3664 = vmax.f32 %v3605, 0.0
    %v3665 = vmax.f32 %v3609, 0.0
    %v3666 = vmax.f32 %v3611, 0.0
    %v3667 = vmax.f32 %v3615, 0.0
    %v3668 = vmax.f32 %v3617, 0.0
    %v3669 = vmax.f32 %v3621, 0.0
    %v3670 = vmax.f32 %v3623, 0.0
    %v3671 = vmax.f32 %v3627, 0.0
    %v3672 = vmax.f32 %v3629, 0.0
    %v3673 = vmax.f32 %v3633, 0.0
    %v3674 = vmax.f32 %v3635, 0.0
    %v3675 = vld [vmem:[%s4] sm:$0x3]
    %v3677 = vlaneseq
    %v3678 = vshrl.u32 %v3677, 7
    %v3679 = vsub.s32 0, %v3678
    %v3680 = vrot.slane %v3675, %v3679
    %v3681 = vlaneseq
    %v3682 = vshrl.u32 %v3681, 7
    %v3683 = vsub.s32 1, %v3682
    %v3684 = vrot.slane %v3675, %v3683
    %v3686 = vsel %vm661, %v3684, 0
    %v3689 = vsel %vm664, %v3673, 0
    %v3692 = vsel %vm664, %v3674, 0
    %3694 = vmatprep.subr.mxu0 %v3638
    %3695 = vmatpush1.msra.mxu0 %v3637
    %3696 = vmatprep.subr.mxu0 %v3640
    %3697 = vmatpush1.msra.mxu0 %v3639
    %3698 = vmatprep.subr.mxu0 %v3642
    %3699 = vmatpush1.msra.mxu0 %v3641
    %3700 = vmatprep.subr.mxu0 %v3644
    %3701 = vmatpush1.msra.mxu0 %v3643
    %3702 = vmatprep.subr.mxu0 %v3646
    %3703 = vmatpush1.msra.mxu0 %v3645
    %3704 = vmatprep.subr.mxu0 %v3648
    %3705 = vmatpush1.msra.mxu0 %v3647
    %3706 = vmatprep.subr.mxu0 %v3650
    %3707 = vmatpush1.msra.mxu0 %v3649
    %3708 = vmatprep.subr.mxu0 %v3652
    %3709 = vmatpush1.msra.mxu0 %v3651
    %3710 = vmatprep.subr.mxu0 %v3654
    %3711 = vmatpush1.msra.mxu0 %v3653
    %3712 = vmatprep.subr.mxu0 %v3656
    %3713 = vmatpush1.msra.mxu0 %v3655
    %3714 = vmatprep.subr.mxu0 %v3658
    %3715 = vmatpush1.msra.mxu0 %v3657
    %3716 = vmatprep.subr.mxu0 %v3660
    %3717 = vmatpush1.msra.mxu0 %v3659
    %3718 = vmatprep.subr.mxu0 %v3662
    %3719 = vmatpush1.msra.mxu0 %v3661
    %3720 = vmatprep.subr.mxu0 %v3664
    %3721 = vmatpush1.msra.mxu0 %v3663
    %3722 = vmatprep.subr.mxu0 %v3666
    %3723 = vmatpush1.msra.mxu0 %v3665
    %3724 = vmatprep.subr.mxu0 %v3668
    %3725 = vmatpush1.msra.mxu0 %v3667
    %3726 = vmatprep.subr.mxu0 %v3670
    %3727 = vmatpush1.msra.mxu0 %v3669
    %3728 = vmatprep.subr.mxu0 %v3672
    %3729 = vmatpush1.msra.mxu0 %v3671
    %3730 = vmatprep.subr.mxu0 %v3692
    %3731 = vmatpush1.msra.mxu0 %v3689
    %3732 = vmatprep.subr.mxu0 0.0
    %3733 = vmatpush1.msra.mxu0 0.0
    %3734 = vmatprep.subr.mxu0 0.0
    %3735 = vmatpush1.msra.mxu0 0.0
    %3736 = vmatprep.subr.mxu0 0.0
    %3737 = vmatpush1.msra.mxu0 0.0
    %3738 = vmatprep.subr.mxu0 0.0
    %3739 = vmatpush1.msra.mxu0 0.0
    %3740 = vmatprep.subr.mxu0 0.0
    %3741 = vmatpush1.msra.mxu0 0.0
    %3742 = vmatprep.subr.mxu0 0.0
    %3743 = vmatpush1.msra.mxu0 0.0
    %3744 = vmatprep.subr.mxu0 0.0
    %3745 = vmatpush1.msra.mxu0 0.0
    %3746 = vmatprep.subr.mxu0 0.0
    %3747 = vmatpush1.msra.mxu0 0.0
    %3748 = vmatprep.subr.mxu0 0.0
    %3749 = vmatpush1.msra.mxu0 0.0
    %3750 = vmatprep.subr.mxu0 0.0
    %3751 = vmatpush1.msra.mxu0 0.0
    %3752 = vmatprep.subr.mxu0 0.0
    %3753 = vmatpush1.msra.mxu0 0.0
    %3754 = vmatprep.subr.mxu0 0.0
    %3755 = vmatpush1.msra.mxu0 0.0
    %3756 = vmatprep.subr.mxu0 0.0
    %3757 = vmatpush1.msra.mxu0 0.0
    %3758 = vmatprep.mubr.f32.mxu0 %v3686
    %3759 = vmatmul.mubr.f32.gmra.mrb[0].mxu0 %v3680
    %v3760 = vpop.f32.mrb[0].mxu0
    %v3761 = vadd.f32 0.0, %v3760
    %v3762 = vpop.f32.mrb[0].mxu0
    %v3763 = vadd.f32 0.0, %v3762
    %3764 = vdwg.mxu0
    %v3765 = vsub.f32 0.0, %v3761
    %v3766 = vsub.f32 0.0, %v3763
    %v3767 = vmul.f32 %v3765, 1.442695
    %v3768 = vpow.pop %v3767
    %v3769 = vmul.f32 %v3766, 1.442695
    %v3770 = vpow.pop %v3769
    %v3771 = vadd.f32 %v3768, 1.0
    %v3772 = vadd.f32 %v3770, 1.0
    %v3773 = vrcp.pop %v3771
    %v3774 = vmul.f32 1.0, %v3773
    %v3775 = vrcp.pop %v3772
    %v3776 = vmul.f32 1.0, %v3775
    %v3779 = vcombine.low %v3774, %v3776
    %v3781 = vunpack.c.l.s4 1966171168
    %v3782 = vunpack.c.0.s8 %v3781
    %v3783 = vlaneseq
    %v3784 = vshrl.u32 %v3783, 7
    %v3785 = vsub.s32 %v3782, %v3784
    %v3786 = vrot.slane %v3779, %v3785
    %v3788 = vunpack.c.l.s4 1966171168
    %v3789 = vunpack.c.0.s8 %v3788
    %v3790 = vlaneseq
    %v3791 = vshrl.u32 %v3790, 7
    %v3792 = vsub.s32 %v3789, %v3791
    %v3793 = vrot.slane %v3786, %v3792
    %s3795 = scalar_lea.vmem [#allocation3], 6
    %3796 = vst.msk [vmem:[%s3795] ss:$8 sm:$0x3] %vm153, %v3793
    %3797 = vst.msk [vmem:[%s3795] ss:$8 sm:$0x0] %vm153, %v3793
    %v3798 = vcombine.high %v2818, %v2818
    %3800 = vst.msk [vmem:[#allocation2] ss:$8 sm:$0x3] %vm153, %v3798
    %3801 = vst.msk [vmem:[#allocation2] ss:$8 sm:$0x0] %vm153, %v3798
    %v3802 = vcombine.high %v2829, %v2829
    %3804 = vst.msk [vmem:[%s195] ss:$8 sm:$0x3] %vm153, %v3802
    %3805 = vst.msk [vmem:[%s195] ss:$8 sm:$0x0] %vm153, %v3802
    %v3806 = vcombine.high %v2840, %v2840
    %3808 = vst.msk [vmem:[%s216] ss:$8 sm:$0x3] %vm153, %v3806
    %3809 = vst.msk [vmem:[%s216] ss:$8 sm:$0x0] %vm153, %v3806
    %v3810 = vcombine.high %v2851, %v2851
    %3812 = vst.msk [vmem:[%s237] ss:$8 sm:$0x3] %vm153, %v3810
    %3813 = vst.msk [vmem:[%s237] ss:$8 sm:$0x0] %vm153, %v3810
    %v3814 = vcombine.high %v2862, %v2862
    %3816 = vst.msk [vmem:[%s258] ss:$8 sm:$0x3] %vm153, %v3814
    %3817 = vst.msk [vmem:[%s258] ss:$8 sm:$0x0] %vm153, %v3814
    %v3818 = vcombine.high %v2873, %v2873
    %3820 = vst.msk [vmem:[%s279] ss:$8 sm:$0x3] %vm153, %v3818
    %3821 = vst.msk [vmem:[%s279] ss:$8 sm:$0x0] %vm153, %v3818
    %v3822 = vcombine.high %v2884, %v2884
    %3824 = vst.msk [vmem:[%s300] ss:$8 sm:$0x3] %vm153, %v3822
    %3825 = vst.msk [vmem:[%s300] ss:$8 sm:$0x0] %vm153, %v3822
    %v3826 = vcombine.high %v2895, %v2895
    %3828 = vst.msk [vmem:[%s321] ss:$8 sm:$0x3] %vm153, %v3826
    %3829 = vst.msk [vmem:[%s321] ss:$8 sm:$0x0] %vm153, %v3826
    %v3830 = vcombine.high %v2906, %v2906
    %3832 = vst.msk [vmem:[%s342] ss:$8 sm:$0x3] %vm153, %v3830
    %3833 = vst.msk [vmem:[%s342] ss:$8 sm:$0x0] %vm153, %v3830
    %v3834 = vld [vmem:[%s3] sm:$0xff]
    %v3835 = vld [vmem:[%s3 + $0x8] sm:$0xff]
    %v3836 = vld [vmem:[%s3 + $0x10] sm:$0xff]
    %v3837 = vld [vmem:[%s3 + $0x18] sm:$0xff]
    %v3838 = vld [vmem:[%s3 + $0x20] sm:$0xff]
    %v3839 = vld [vmem:[%s3 + $0x28] sm:$0xff]
    %v3840 = vld [vmem:[%s3 + $0x30] sm:$0xff]
    %v3841 = vld [vmem:[%s3 + $0x38] sm:$0xff]
    %v3842 = vld [vmem:[%s3 + $0x40] sm:$0xff]
    %v3843 = vld [vmem:[%s3 + $0x48] sm:$0xff]
    %v3844 = vld [vmem:[%s3 + $0x50] sm:$0xff]
    %v3845 = vld [vmem:[%s3 + $0x58] sm:$0xff]
    %v3846 = vld [vmem:[%s3 + $0x60] sm:$0xff]
    %v3847 = vld [vmem:[%s3 + $0x68] sm:$0xff]
    %v3848 = vld [vmem:[%s3 + $0x70] sm:$0xff]
    %v3849 = vld [vmem:[%s3 + $0x78] sm:$0xff]
    %v3850 = vld [vmem:[%s3 + $0x80] sm:$0xff]
    %v3851 = vld [vmem:[%s3 + $0x88] sm:$0xff]
    %v3852 = vld [vmem:[%s3 + $0x90] sm:$0x3f]
    %v3853 = vld [vmem:[#allocation2] sm:$0xff]
    %v3854 = vld [vmem:[#allocation2 + $0x8] sm:$0xff]
    %v3855 = vld [vmem:[#allocation2 + $0x10] sm:$0x3]
    %v3856 = vld [vmem:[#allocation2 + $0x18] sm:$0x3]
    %v3858 = vsel %vm368, %v3834, 0
    %v3861 = vsel %vm368, %v3835, 0
    %v3864 = vsel %vm368, %v3836, 0
    %v3867 = vsel %vm368, %v3837, 0
    %v3870 = vsel %vm368, %v3838, 0
    %v3873 = vsel %vm368, %v3839, 0
    %v3876 = vsel %vm368, %v3840, 0
    %v3879 = vsel %vm368, %v3841, 0
    %v3882 = vsel %vm368, %v3842, 0
    %v3885 = vsel %vm368, %v3843, 0
    %v3888 = vsel %vm368, %v3844, 0
    %v3891 = vsel %vm368, %v3845, 0
    %v3894 = vsel %vm368, %v3846, 0
    %v3897 = vsel %vm368, %v3847, 0
    %v3900 = vsel %vm368, %v3848, 0
    %v3903 = vsel %vm368, %v3849, 0
    %v3906 = vsel %vm368, %v3850, 0
    %v3909 = vsel %vm368, %v3851, 0
    %v3912 = vsel %vm368, %v3852, 0
    %v3915 = vsel %vm426, %v3855, 0
    %v3918 = vsel %vm426, %v3856, 0
    %3920 = vmatprep.subr.mxu0 %v3854
    %3921 = vmatpush1.msra.mxu0 %v3853
    %3922 = vmatprep.subr.mxu0 %v3918
    %3923 = vmatpush1.msra.mxu0 %v3915
    %3924 = vmatprep.subr.mxu0 0.0
    %3925 = vmatpush1.msra.mxu0 0.0
    %3926 = vmatprep.subr.mxu0 0.0
    %3927 = vmatpush1.msra.mxu0 0.0
    %3928 = vmatprep.subr.mxu0 0.0
    %3929 = vmatpush1.msra.mxu0 0.0
    %3930 = vmatprep.subr.mxu0 0.0
    %3931 = vmatpush1.msra.mxu0 0.0
    %3932 = vmatprep.subr.mxu0 0.0
    %3933 = vmatpush1.msra.mxu0 0.0
    %3934 = vmatprep.subr.mxu0 0.0
    %3935 = vmatpush1.msra.mxu0 0.0
    %3936 = vmatprep.subr.mxu0 0.0
    %3937 = vmatpush1.msra.mxu0 0.0
    %3938 = vmatprep.subr.mxu0 0.0
    %3939 = vmatpush1.msra.mxu0 0.0
    %3940 = vmatprep.subr.mxu0 0.0
    %3941 = vmatpush1.msra.mxu0 0.0
    %3942 = vmatprep.subr.mxu0 0.0
    %3943 = vmatpush1.msra.mxu0 0.0
    %3944 = vmatprep.subr.mxu0 0.0
    %3945 = vmatpush1.msra.mxu0 0.0
    %3946 = vmatprep.subr.mxu0 0.0
    %3947 = vmatpush1.msra.mxu0 0.0
    %3948 = vmatprep.subr.mxu0 0.0
    %3949 = vmatpush1.msra.mxu0 0.0
    %3950 = vmatprep.subr.mxu0 0.0
    %3951 = vmatpush1.msra.mxu0 0.0
    %3952 = vmatprep.subr.mxu0 0.0
    %3953 = vmatpush1.msra.mxu0 0.0
    %3954 = vmatprep.subr.mxu0 0.0
    %3955 = vmatpush1.msra.mxu0 0.0
    %3956 = vmatprep.subr.mxu0 0.0
    %3957 = vmatpush1.msra.mxu0 0.0
    %3958 = vmatprep.subr.mxu0 0.0
    %3959 = vmatpush1.msra.mxu0 0.0
    %3960 = vmatprep.subr.mxu0 0.0
    %3961 = vmatpush1.msra.mxu0 0.0
    %3962 = vmatprep.subr.mxu0 0.0
    %3963 = vmatpush1.msra.mxu0 0.0
    %3964 = vmatprep.subr.mxu0 0.0
    %3965 = vmatpush1.msra.mxu0 0.0
    %3966 = vmatprep.subr.mxu0 0.0
    %3967 = vmatpush1.msra.mxu0 0.0
    %3968 = vmatprep.subr.mxu0 0.0
    %3969 = vmatpush1.msra.mxu0 0.0
    %3970 = vmatprep.subr.mxu0 0.0
    %3971 = vmatpush1.msra.mxu0 0.0
    %3972 = vmatprep.subr.mxu0 0.0
    %3973 = vmatpush1.msra.mxu0 0.0
    %3974 = vmatprep.subr.mxu0 0.0
    %3975 = vmatpush1.msra.mxu0 0.0
    %3976 = vmatprep.subr.mxu0 0.0
    %3977 = vmatpush1.msra.mxu0 0.0
    %3978 = vmatprep.subr.mxu0 0.0
    %3979 = vmatpush1.msra.mxu0 0.0
    %3980 = vmatprep.subr.mxu0 0.0
    %3981 = vmatpush1.msra.mxu0 0.0
    %3982 = vmatprep.subr.mxu0 0.0
    %3983 = vmatpush1.msra.mxu0 0.0
    %3984 = vmatprep.mubr.f32.mxu0 0.0
    %3985 = vmatmul.mubr.f32.gmra.mrb[0].mxu0 %v3858
    %v3986 = vpop.f32.mrb[0].mxu0
    %v3987 = vadd.f32 0.0, %v3986
    %v3988 = vpop.f32.mrb[0].mxu0
    %v3989 = vadd.f32 0.0, %v3988
    %3990 = vmatprep.mubr.f32.mxu0 0.0
    %3991 = vmatmul.mubr.f32.gmra.mrb[0].mxu0 %v3861
    %v3992 = vpop.f32.mrb[0].mxu0
    %v3993 = vadd.f32 0.0, %v3992
    %v3994 = vpop.f32.mrb[0].mxu0
    %v3995 = vadd.f32 0.0, %v3994
    %3996 = vmatprep.mubr.f32.mxu0 0.0
    %3997 = vmatmul.mubr.f32.gmra.mrb[0].mxu0 %v3864
    %v3998 = vpop.f32.mrb[0].mxu0
    %v3999 = vadd.f32 0.0, %v3998
    %v4000 = vpop.f32.mrb[0].mxu0
    %v4001 = vadd.f32 0.0, %v4000
    %4002 = vmatprep.mubr.f32.mxu0 0.0
    %4003 = vmatmul.mubr.f32.gmra.mrb[0].mxu0 %v3867
    %v4004 = vpop.f32.mrb[0].mxu0
    %v4005 = vadd.f32 0.0, %v4004
    %v4006 = vpop.f32.mrb[0].mxu0
    %v4007 = vadd.f32 0.0, %v4006
    %4008 = vmatprep.mubr.f32.mxu0 0.0
    %4009 = vmatmul.mubr.f32.gmra.mrb[0].mxu0 %v3870
    %v4010 = vpop.f32.mrb[0].mxu0
    %v4011 = vadd.f32 0.0, %v4010
    %v4012 = vpop.f32.mrb[0].mxu0
    %v4013 = vadd.f32 0.0, %v4012
    %4014 = vmatprep.mubr.f32.mxu0 0.0
    %4015 = vmatmul.mubr.f32.gmra.mrb[0].mxu0 %v3873
    %v4016 = vpop.f32.mrb[0].mxu0
    %v4017 = vadd.f32 0.0, %v4016
    %v4018 = vpop.f32.mrb[0].mxu0
    %v4019 = vadd.f32 0.0, %v4018
    %4020 = vmatprep.mubr.f32.mxu0 0.0
    %4021 = vmatmul.mubr.f32.gmra.mrb[0].mxu0 %v3876
    %v4022 = vpop.f32.mrb[0].mxu0
    %v4023 = vadd.f32 0.0, %v4022
    %v4024 = vpop.f32.mrb[0].mxu0
    %v4025 = vadd.f32 0.0, %v4024
    %4026 = vmatprep.mubr.f32.mxu0 0.0
    %4027 = vmatmul.mubr.f32.gmra.mrb[0].mxu0 %v3879
    %v4028 = vpop.f32.mrb[0].mxu0
    %v4029 = vadd.f32 0.0, %v4028
    %v4030 = vpop.f32.mrb[0].mxu0
    %v4031 = vadd.f32 0.0, %v4030
    %4032 = vmatprep.mubr.f32.mxu0 0.0
    %4033 = vmatmul.mubr.f32.gmra.mrb[0].mxu0 %v3882
    %v4034 = vpop.f32.mrb[0].mxu0
    %v4035 = vadd.f32 0.0, %v4034
    %v4036 = vpop.f32.mrb[0].mxu0
    %v4037 = vadd.f32 0.0, %v4036
    %4038 = vmatprep.mubr.f32.mxu0 0.0
    %4039 = vmatmul.mubr.f32.gmra.mrb[0].mxu0 %v3885
    %v4040 = vpop.f32.mrb[0].mxu0
    %v4041 = vadd.f32 0.0, %v4040
    %v4042 = vpop.f32.mrb[0].mxu0
    %v4043 = vadd.f32 0.0, %v4042
    %4044 = vmatprep.mubr.f32.mxu0 0.0
    %4045 = vmatmul.mubr.f32.gmra.mrb[0].mxu0 %v3888
    %v4046 = vpop.f32.mrb[0].mxu0
    %v4047 = vadd.f32 0.0, %v4046
    %v4048 = vpop.f32.mrb[0].mxu0
    %v4049 = vadd.f32 0.0, %v4048
    %4050 = vmatprep.mubr.f32.mxu0 0.0
    %4051 = vmatmul.mubr.f32.gmra.mrb[0].mxu0 %v3891
    %v4052 = vpop.f32.mrb[0].mxu0
    %v4053 = vadd.f32 0.0, %v4052
    %v4054 = vpop.f32.mrb[0].mxu0
    %v4055 = vadd.f32 0.0, %v4054
    %4056 = vmatprep.mubr.f32.mxu0 0.0
    %4057 = vmatmul.mubr.f32.gmra.mrb[0].mxu0 %v3894
    %v4058 = vpop.f32.mrb[0].mxu0
    %v4059 = vadd.f32 0.0, %v4058
    %v4060 = vpop.f32.mrb[0].mxu0
    %v4061 = vadd.f32 0.0, %v4060
    %4062 = vmatprep.mubr.f32.mxu0 0.0
    %4063 = vmatmul.mubr.f32.gmra.mrb[0].mxu0 %v3897
    %v4064 = vpop.f32.mrb[0].mxu0
    %v4065 = vadd.f32 0.0, %v4064
    %v4066 = vpop.f32.mrb[0].mxu0
    %v4067 = vadd.f32 0.0, %v4066
    %4068 = vmatprep.mubr.f32.mxu0 0.0
    %4069 = vmatmul.mubr.f32.gmra.mrb[0].mxu0 %v3900
    %v4070 = vpop.f32.mrb[0].mxu0
    %v4071 = vadd.f32 0.0, %v4070
    %v4072 = vpop.f32.mrb[0].mxu0
    %v4073 = vadd.f32 0.0, %v4072
    %4074 = vmatprep.mubr.f32.mxu0 0.0
    %4075 = vmatmul.mubr.f32.gmra.mrb[0].mxu0 %v3903
    %v4076 = vpop.f32.mrb[0].mxu0
    %v4077 = vadd.f32 0.0, %v4076
    %v4078 = vpop.f32.mrb[0].mxu0
    %v4079 = vadd.f32 0.0, %v4078
    %4080 = vmatprep.mubr.f32.mxu0 0.0
    %4081 = vmatmul.mubr.f32.gmra.mrb[0].mxu0 %v3906
    %v4082 = vpop.f32.mrb[0].mxu0
    %v4083 = vadd.f32 0.0, %v4082
    %v4084 = vpop.f32.mrb[0].mxu0
    %v4085 = vadd.f32 0.0, %v4084
    %4086 = vmatprep.mubr.f32.mxu0 0.0
    %4087 = vmatmul.mubr.f32.gmra.mrb[0].mxu0 %v3909
    %v4088 = vpop.f32.mrb[0].mxu0
    %v4089 = vadd.f32 0.0, %v4088
    %v4090 = vpop.f32.mrb[0].mxu0
    %v4091 = vadd.f32 0.0, %v4090
    %4092 = vmatprep.mubr.f32.mxu0 0.0
    %4093 = vmatmul.mubr.f32.gmra.mrb[0].mxu0 %v3912
    %v4094 = vpop.f32.mrb[0].mxu0
    %v4095 = vadd.f32 0.0, %v4094
    %v4096 = vpop.f32.mrb[0].mxu0
    %v4097 = vadd.f32 0.0, %v4096
    %4098 = vdwg.mxu0
    %v4099 = vmax.f32 %v3987, 0.0
    %v4100 = vmax.f32 %v3989, 0.0
    %v4101 = vmax.f32 %v3993, 0.0
    %v4102 = vmax.f32 %v3995, 0.0
    %v4103 = vmax.f32 %v3999, 0.0
    %v4104 = vmax.f32 %v4001, 0.0
    %v4105 = vmax.f32 %v4005, 0.0
    %v4106 = vmax.f32 %v4007, 0.0
    %v4107 = vmax.f32 %v4011, 0.0
    %v4108 = vmax.f32 %v4013, 0.0
    %v4109 = vmax.f32 %v4017, 0.0
    %v4110 = vmax.f32 %v4019, 0.0
    %v4111 = vmax.f32 %v4023, 0.0
    %v4112 = vmax.f32 %v4025, 0.0
    %v4113 = vmax.f32 %v4029, 0.0
    %v4114 = vmax.f32 %v4031, 0.0
    %v4115 = vmax.f32 %v4035, 0.0
    %v4116 = vmax.f32 %v4037, 0.0
    %v4117 = vmax.f32 %v4041, 0.0
    %v4118 = vmax.f32 %v4043, 0.0
    %v4119 = vmax.f32 %v4047, 0.0
    %v4120 = vmax.f32 %v4049, 0.0
    %v4121 = vmax.f32 %v4053, 0.0
    %v4122 = vmax.f32 %v4055, 0.0
    %v4123 = vmax.f32 %v4059, 0.0
    %v4124 = vmax.f32 %v4061, 0.0
    %v4125 = vmax.f32 %v4065, 0.0
    %v4126 = vmax.f32 %v4067, 0.0
    %v4127 = vmax.f32 %v4071, 0.0
    %v4128 = vmax.f32 %v4073, 0.0
    %v4129 = vmax.f32 %v4077, 0.0
    %v4130 = vmax.f32 %v4079, 0.0
    %v4131 = vmax.f32 %v4083, 0.0
    %v4132 = vmax.f32 %v4085, 0.0
    %v4133 = vmax.f32 %v4089, 0.0
    %v4134 = vmax.f32 %v4091, 0.0
    %v4135 = vmax.f32 %v4095, 0.0
    %v4136 = vmax.f32 %v4097, 0.0
    %v4137 = vld [vmem:[%s4] sm:$0x3]
    %v4139 = vlaneseq
    %v4140 = vshrl.u32 %v4139, 7
    %v4141 = vsub.s32 0, %v4140
    %v4142 = vrot.slane %v4137, %v4141
    %v4143 = vlaneseq
    %v4144 = vshrl.u32 %v4143, 7
    %v4145 = vsub.s32 1, %v4144
    %v4146 = vrot.slane %v4137, %v4145
    %v4148 = vsel %vm661, %v4146, 0
    %v4151 = vsel %vm664, %v4135, 0
    %v4154 = vsel %vm664, %v4136, 0
    %4156 = vmatprep.subr.mxu0 %v4100
    %4157 = vmatpush1.msra.mxu0 %v4099
    %4158 = vmatprep.subr.mxu0 %v4102
    %4159 = vmatpush1.msra.mxu0 %v4101
    %4160 = vmatprep.subr.mxu0 %v4104
    %4161 = vmatpush1.msra.mxu0 %v4103
    %4162 = vmatprep.subr.mxu0 %v4106
    %4163 = vmatpush1.msra.mxu0 %v4105
    %4164 = vmatprep.subr.mxu0 %v4108
    %4165 = vmatpush1.msra.mxu0 %v4107
    %4166 = vmatprep.subr.mxu0 %v4110
    %4167 = vmatpush1.msra.mxu0 %v4109
    %4168 = vmatprep.subr.mxu0 %v4112
    %4169 = vmatpush1.msra.mxu0 %v4111
    %4170 = vmatprep.subr.mxu0 %v4114
    %4171 = vmatpush1.msra.mxu0 %v4113
    %4172 = vmatprep.subr.mxu0 %v4116
    %4173 = vmatpush1.msra.mxu0 %v4115
    %4174 = vmatprep.subr.mxu0 %v4118
    %4175 = vmatpush1.msra.mxu0 %v4117
    %4176 = vmatprep.subr.mxu0 %v4120
    %4177 = vmatpush1.msra.mxu0 %v4119
    %4178 = vmatprep.subr.mxu0 %v4122
    %4179 = vmatpush1.msra.mxu0 %v4121
    %4180 = vmatprep.subr.mxu0 %v4124
    %4181 = vmatpush1.msra.mxu0 %v4123
    %4182 = vmatprep.subr.mxu0 %v4126
    %4183 = vmatpush1.msra.mxu0 %v4125
    %4184 = vmatprep.subr.mxu0 %v4128
    %4185 = vmatpush1.msra.mxu0 %v4127
    %4186 = vmatprep.subr.mxu0 %v4130
    %4187 = vmatpush1.msra.mxu0 %v4129
    %4188 = vmatprep.subr.mxu0 %v4132
    %4189 = vmatpush1.msra.mxu0 %v4131
    %4190 = vmatprep.subr.mxu0 %v4134
    %4191 = vmatpush1.msra.mxu0 %v4133
    %4192 = vmatprep.subr.mxu0 %v4154
    %4193 = vmatpush1.msra.mxu0 %v4151
    %4194 = vmatprep.subr.mxu0 0.0
    %4195 = vmatpush1.msra.mxu0 0.0
    %4196 = vmatprep.subr.mxu0 0.0
    %4197 = vmatpush1.msra.mxu0 0.0
    %4198 = vmatprep.subr.mxu0 0.0
    %4199 = vmatpush1.msra.mxu0 0.0
    %4200 = vmatprep.subr.mxu0 0.0
    %4201 = vmatpush1.msra.mxu0 0.0
    %4202 = vmatprep.subr.mxu0 0.0
    %4203 = vmatpush1.msra.mxu0 0.0
    %4204 = vmatprep.subr.mxu0 0.0
    %4205 = vmatpush1.msra.mxu0 0.0
    %4206 = vmatprep.subr.mxu0 0.0
    %4207 = vmatpush1.msra.mxu0 0.0
    %4208 = vmatprep.subr.mxu0 0.0
    %4209 = vmatpush1.msra.mxu0 0.0
    %4210 = vmatprep.subr.mxu0 0.0
    %4211 = vmatpush1.msra.mxu0 0.0
    %4212 = vmatprep.subr.mxu0 0.0
    %4213 = vmatpush1.msra.mxu0 0.0
    %4214 = vmatprep.subr.mxu0 0.0
    %4215 = vmatpush1.msra.mxu0 0.0
    %4216 = vmatprep.subr.mxu0 0.0
    %4217 = vmatpush1.msra.mxu0 0.0
    %4218 = vmatprep.subr.mxu0 0.0
    %4219 = vmatpush1.msra.mxu0 0.0
    %4220 = vmatprep.mubr.f32.mxu0 %v4148
    %4221 = vmatmul.mubr.f32.gmra.mrb[0].mxu0 %v4142
    %v4222 = vpop.f32.mrb[0].mxu0
    %v4223 = vadd.f32 0.0, %v4222
    %v4224 = vpop.f32.mrb[0].mxu0
    %v4225 = vadd.f32 0.0, %v4224
    %4226 = vdwg.mxu0
    %v4227 = vsub.f32 0.0, %v4223
    %v4228 = vsub.f32 0.0, %v4225
    %v4229 = vmul.f32 %v4227, 1.442695
    %v4230 = vpow.pop %v4229
    %v4231 = vmul.f32 %v4228, 1.442695
    %v4232 = vpow.pop %v4231
    %v4233 = vadd.f32 %v4230, 1.0
    %v4234 = vadd.f32 %v4232, 1.0
    %v4235 = vrcp.pop %v4233
    %v4236 = vmul.f32 1.0, %v4235
    %v4237 = vrcp.pop %v4234
    %v4238 = vmul.f32 1.0, %v4237
    %v4241 = vcombine.low %v4236, %v4238
    %v4243 = vunpack.c.l.s4 1966171168
    %v4244 = vunpack.c.0.s8 %v4243
    %v4245 = vlaneseq
    %v4246 = vshrl.u32 %v4245, 7
    %v4247 = vsub.s32 %v4244, %v4246
    %v4248 = vrot.slane %v4241, %v4247
    %v4250 = vunpack.c.l.s4 1966171168
    %v4251 = vunpack.c.0.s8 %v4250
    %v4252 = vlaneseq
    %v4253 = vshrl.u32 %v4252, 7
    %v4254 = vsub.s32 %v4251, %v4253
    %v4255 = vrot.slane %v4248, %v4254
    %s4257 = scalar_lea.vmem [#allocation3], 7
    %4258 = vst.msk [vmem:[%s4257] ss:$8 sm:$0x3] %vm153, %v4255
    %4259 = vst.msk [vmem:[%s4257] ss:$8 sm:$0x0] %vm153, %v4255
    %v4260 = vld [vmem:[#allocation3] sm:$0xff]
    %v4261 = vld [vmem:[#allocation3 + $0x8] sm:$0xff]
    %4262 = vrot.lane.b32.xlu0 %v23, 16
    %v4263 = vpop.permute.xlu0 %4262
    %4264 = vrot.lane.b32.xlu0 %v24, 16
    %v4265 = vpop.permute.xlu0 %4264
    %v4266 = vsel %vm86, %v4263, %v4265
    %v4267 = vsel %vm86, %v4265, %v4263
    %v4268 = vsel %vm36, -1e+30, %v4267
    %v4269 = vsel %vm37, -1e+30, %v4266
    %v4270 = vmax.f32 %v23, %v4268
    %v4271 = vmax.f32 %v24, %v4269
    %4272 = vrot.lane.b32.xlu0 %v23, 112
    %v4273 = vpop.permute.xlu0 %4272
    %4274 = vrot.lane.b32.xlu0 %v24, 112
    %v4275 = vpop.permute.xlu0 %4274
    %v4276 = vsel %vm129, %v4273, %v4275
    %v4277 = vsel %vm129, %v4275, %v4273
    %v4278 = vsel %vm50, -1e+30, %v4276
    %v4279 = vsel %vm51, -1e+30, %v4277
    %v4280 = vmax.f32 %v4270, %v4278
    %v4281 = vmax.f32 %v4271, %v4279
    %4282 = vrot.lane.b32.xlu0 %v4280, 1
    %v4283 = vpop.permute.xlu0 %4282
    %4284 = vrot.lane.b32.xlu0 %v4281, 1
    %v4285 = vpop.permute.xlu0 %4284
    %v4286 = vsel %vm95, %v4283, %v4285
    %v4287 = vsel %vm95, %v4285, %v4283
    %v4288 = vsel %vm64, -1e+30, %v4287
    %v4289 = vsel %vm65, -1e+30, %v4286
    %v4290 = vmax.f32 %v4280, %v4288
    %v4291 = vmax.f32 %v4281, %v4289
    %4292 = vrot.lane.b32.xlu0 %v4280, 127
    %v4293 = vpop.permute.xlu0 %4292
    %4294 = vrot.lane.b32.xlu0 %v4281, 127
    %v4295 = vpop.permute.xlu0 %4294
    %v4296 = vsel %vm104, %v4293, %v4295
    %v4297 = vsel %vm104, %v4295, %v4293
    %v4298 = vsel %vm78, -1e+30, %v4296
    %v4299 = vsel %vm79, -1e+30, %v4297
    %v4300 = vmax.f32 %v4290, %v4298
    %v4301 = vmax.f32 %v4291, %v4299
    %v4302 = vsub.f32 %v4300, %v23
    %v4303 = vsub.f32 %v4301, %v24
    %v4304 = vmul.f32 %v4260, %v4302
    %v4305 = vmul.f32 %v4261, %v4303
    %v4306 = vadd.f32 %v23, %v4304
    %v4307 = vadd.f32 %v24, %v4305
    %v4308 = vmax.f32 %v23, %v4306
    %v4309 = vmax.f32 %v24, %v4307
    %4310 = vrot.lane.b32.xlu0 %v4308, 16
    %v4311 = vpop.permute.xlu0 %4310
    %4312 = vrot.lane.b32.xlu0 %v4309, 16
    %v4313 = vpop.permute.xlu0 %4312
    %v4314 = vsel %vm86, %v4311, %v4313
    %v4315 = vsel %vm86, %v4313, %v4311
    %v4316 = vsel %vm36, -1e+30, %v4315
    %v4317 = vsel %vm37, -1e+30, %v4314
    %v4318 = vmax.f32 %v4308, %v4316
    %v4319 = vmax.f32 %v4309, %v4317
    %4320 = vrot.lane.b32.xlu0 %v4308, 112
    %v4321 = vpop.permute.xlu0 %4320
    %4322 = vrot.lane.b32.xlu0 %v4309, 112
    %v4323 = vpop.permute.xlu0 %4322
    %v4324 = vsel %vm129, %v4321, %v4323
    %v4325 = vsel %vm129, %v4323, %v4321
    %v4326 = vsel %vm50, -1e+30, %v4324
    %v4327 = vsel %vm51, -1e+30, %v4325
    %v4328 = vmax.f32 %v4318, %v4326
    %v4329 = vmax.f32 %v4319, %v4327
    %4330 = vrot.lane.b32.xlu0 %v4328, 1
    %v4331 = vpop.permute.xlu0 %4330
    %4332 = vrot.lane.b32.xlu0 %v4329, 1
    %v4333 = vpop.permute.xlu0 %4332
    %v4334 = vsel %vm95, %v4331, %v4333
    %v4335 = vsel %vm95, %v4333, %v4331
    %v4336 = vsel %vm64, -1e+30, %v4335
    %v4337 = vsel %vm65, -1e+30, %v4334
    %v4338 = vmax.f32 %v4328, %v4336
    %v4339 = vmax.f32 %v4329, %v4337
    %4340 = vrot.lane.b32.xlu0 %v4328, 127
    %v4341 = vpop.permute.xlu0 %4340
    %4342 = vrot.lane.b32.xlu0 %v4329, 127
    %v4343 = vpop.permute.xlu0 %4342
    %v4344 = vsel %vm104, %v4341, %v4343
    %v4345 = vsel %vm104, %v4343, %v4341
    %v4346 = vsel %vm78, -1e+30, %v4344
    %v4347 = vsel %vm79, -1e+30, %v4345
    %v4348 = vmax.f32 %v4338, %v4346
    %v4349 = vmax.f32 %v4339, %v4347
    %v4350 = vsub.f32 %v4348, %v23
    %v4351 = vsub.f32 %v4349, %v24
    %v4352 = vmul.f32 %v4260, %v4350
    %v4353 = vmul.f32 %v4261, %v4351
    %v4354 = vadd.f32 %v23, %v4352
    %v4355 = vadd.f32 %v24, %v4353
    %v4356 = vmax.f32 %v4308, %v4354
    %v4357 = vmax.f32 %v4309, %v4355
    %4358 = vrot.lane.b32.xlu0 %v4356, 16
    %v4359 = vpop.permute.xlu0 %4358
    %4360 = vrot.lane.b32.xlu0 %v4357, 16
    %v4361 = vpop.permute.xlu0 %4360
    %v4362 = vsel %vm86, %v4359, %v4361
    %v4363 = vsel %vm86, %v4361, %v4359
    %v4364 = vsel %vm36, -1e+30, %v4363
    %v4365 = vsel %vm37, -1e+30, %v4362
    %v4366 = vmax.f32 %v4356, %v4364
    %v4367 = vmax.f32 %v4357, %v4365
    %4368 = vrot.lane.b32.xlu0 %v4356, 112
    %v4369 = vpop.permute.xlu0 %4368
    %4370 = vrot.lane.b32.xlu0 %v4357, 112
    %v4371 = vpop.permute.xlu0 %4370
    %v4372 = vsel %vm129, %v4369, %v4371
    %v4373 = vsel %vm129, %v4371, %v4369
    %v4374 = vsel %vm50, -1e+30, %v4372
    %v4375 = vsel %vm51, -1e+30, %v4373
    %v4376 = vmax.f32 %v4366, %v4374
    %v4377 = vmax.f32 %v4367, %v4375
    %4378 = vrot.lane.b32.xlu0 %v4376, 1
    %v4379 = vpop.permute.xlu0 %4378
    %4380 = vrot.lane.b32.xlu0 %v4377, 1
    %v4381 = vpop.permute.xlu0 %4380
    %v4382 = vsel %vm95, %v4379, %v4381
    %v4383 = vsel %vm95, %v4381, %v4379
    %v4384 = vsel %vm64, -1e+30, %v4383
    %v4385 = vsel %vm65, -1e+30, %v4382
    %v4386 = vmax.f32 %v4376, %v4384
    %v4387 = vmax.f32 %v4377, %v4385
    %4388 = vrot.lane.b32.xlu0 %v4376, 127
    %v4389 = vpop.permute.xlu0 %4388
    %4390 = vrot.lane.b32.xlu0 %v4377, 127
    %v4391 = vpop.permute.xlu0 %4390
    %v4392 = vsel %vm104, %v4389, %v4391
    %v4393 = vsel %vm104, %v4391, %v4389
    %v4394 = vsel %vm78, -1e+30, %v4392
    %v4395 = vsel %vm79, -1e+30, %v4393
    %v4396 = vmax.f32 %v4386, %v4394
    %v4397 = vmax.f32 %v4387, %v4395
    %v4398 = vsub.f32 %v4396, %v23
    %v4399 = vsub.f32 %v4397, %v24
    %v4400 = vmul.f32 %v4260, %v4398
    %v4401 = vmul.f32 %v4261, %v4399
    %v4402 = vadd.f32 %v23, %v4400
    %v4403 = vadd.f32 %v24, %v4401
    %v4404 = vmax.f32 %v4356, %v4402
    %v4405 = vmax.f32 %v4357, %v4403
    %4406 = vrot.lane.b32.xlu0 %v4404, 16
    %v4407 = vpop.permute.xlu0 %4406
    %4408 = vrot.lane.b32.xlu0 %v4405, 16
    %v4409 = vpop.permute.xlu0 %4408
    %v4410 = vsel %vm86, %v4407, %v4409
    %v4411 = vsel %vm86, %v4409, %v4407
    %v4412 = vsel %vm36, -1e+30, %v4411
    %v4413 = vsel %vm37, -1e+30, %v4410
    %v4414 = vmax.f32 %v4404, %v4412
    %v4415 = vmax.f32 %v4405, %v4413
    %4416 = vrot.lane.b32.xlu0 %v4404, 112
    %v4417 = vpop.permute.xlu0 %4416
    %4418 = vrot.lane.b32.xlu0 %v4405, 112
    %v4419 = vpop.permute.xlu0 %4418
    %v4420 = vsel %vm129, %v4417, %v4419
    %v4421 = vsel %vm129, %v4419, %v4417
    %v4422 = vsel %vm50, -1e+30, %v4420
    %v4423 = vsel %vm51, -1e+30, %v4421
    %v4424 = vmax.f32 %v4414, %v4422
    %v4425 = vmax.f32 %v4415, %v4423
    %4426 = vrot.lane.b32.xlu0 %v4424, 1
    %v4427 = vpop.permute.xlu0 %4426
    %4428 = vrot.lane.b32.xlu0 %v4425, 1
    %v4429 = vpop.permute.xlu0 %4428
    %v4430 = vsel %vm95, %v4427, %v4429
    %v4431 = vsel %vm95, %v4429, %v4427
    %v4432 = vsel %vm64, -1e+30, %v4431
    %v4433 = vsel %vm65, -1e+30, %v4430
    %v4434 = vmax.f32 %v4424, %v4432
    %v4435 = vmax.f32 %v4425, %v4433
    %4436 = vrot.lane.b32.xlu0 %v4424, 127
    %v4437 = vpop.permute.xlu0 %4436
    %4438 = vrot.lane.b32.xlu0 %v4425, 127
    %v4439 = vpop.permute.xlu0 %4438
    %v4440 = vsel %vm104, %v4437, %v4439
    %v4441 = vsel %vm104, %v4439, %v4437
    %v4442 = vsel %vm78, -1e+30, %v4440
    %v4443 = vsel %vm79, -1e+30, %v4441
    %v4444 = vmax.f32 %v4434, %v4442
    %v4445 = vmax.f32 %v4435, %v4443
    %v4446 = vsub.f32 %v4444, %v23
    %v4447 = vsub.f32 %v4445, %v24
    %v4448 = vmul.f32 %v4260, %v4446
    %v4449 = vmul.f32 %v4261, %v4447
    %v4450 = vadd.f32 %v23, %v4448
    %v4451 = vadd.f32 %v24, %v4449
    %v4452 = vmax.f32 %v4404, %v4450
    %v4453 = vmax.f32 %v4405, %v4451
    %4454 = vrot.lane.b32.xlu0 %v4452, 16
    %v4455 = vpop.permute.xlu0 %4454
    %4456 = vrot.lane.b32.xlu0 %v4453, 16
    %v4457 = vpop.permute.xlu0 %4456
    %v4458 = vsel %vm86, %v4455, %v4457
    %v4459 = vsel %vm86, %v4457, %v4455
    %v4460 = vsel %vm36, -1e+30, %v4459
    %v4461 = vsel %vm37, -1e+30, %v4458
    %v4462 = vmax.f32 %v4452, %v4460
    %v4463 = vmax.f32 %v4453, %v4461
    %4464 = vrot.lane.b32.xlu0 %v4452, 112
    %v4465 = vpop.permute.xlu0 %4464
    %4466 = vrot.lane.b32.xlu0 %v4453, 112
    %v4467 = vpop.permute.xlu0 %4466
    %v4468 = vsel %vm129, %v4465, %v4467
    %v4469 = vsel %vm129, %v4467, %v4465
    %v4470 = vsel %vm50, -1e+30, %v4468
    %v4471 = vsel %vm51, -1e+30, %v4469
    %v4472 = vmax.f32 %v4462, %v4470
    %v4473 = vmax.f32 %v4463, %v4471
    %4474 = vrot.lane.b32.xlu0 %v4472, 1
    %v4475 = vpop.permute.xlu0 %4474
    %4476 = vrot.lane.b32.xlu0 %v4473, 1
    %v4477 = vpop.permute.xlu0 %4476
    %v4478 = vsel %vm95, %v4475, %v4477
    %v4479 = vsel %vm95, %v4477, %v4475
    %v4480 = vsel %vm64, -1e+30, %v4479
    %v4481 = vsel %vm65, -1e+30, %v4478
    %v4482 = vmax.f32 %v4472, %v4480
    %v4483 = vmax.f32 %v4473, %v4481
    %4484 = vrot.lane.b32.xlu0 %v4472, 127
    %v4485 = vpop.permute.xlu0 %4484
    %4486 = vrot.lane.b32.xlu0 %v4473, 127
    %v4487 = vpop.permute.xlu0 %4486
    %v4488 = vsel %vm104, %v4485, %v4487
    %v4489 = vsel %vm104, %v4487, %v4485
    %v4490 = vsel %vm78, -1e+30, %v4488
    %v4491 = vsel %vm79, -1e+30, %v4489
    %v4492 = vmax.f32 %v4482, %v4490
    %v4493 = vmax.f32 %v4483, %v4491
    %v4494 = vsub.f32 %v4492, %v23
    %v4495 = vsub.f32 %v4493, %v24
    %v4496 = vmul.f32 %v4260, %v4494
    %v4497 = vmul.f32 %v4261, %v4495
    %v4498 = vadd.f32 %v23, %v4496
    %v4499 = vadd.f32 %v24, %v4497
    %v4500 = vmax.f32 %v4452, %v4498
    %v4501 = vmax.f32 %v4453, %v4499
    %4502 = vrot.lane.b32.xlu0 %v4500, 16
    %v4503 = vpop.permute.xlu0 %4502
    %4504 = vrot.lane.b32.xlu0 %v4501, 16
    %v4505 = vpop.permute.xlu0 %4504
    %v4506 = vsel %vm86, %v4503, %v4505
    %v4507 = vsel %vm86, %v4505, %v4503
    %v4508 = vsel %vm36, -1e+30, %v4507
    %v4509 = vsel %vm37, -1e+30, %v4506
    %v4510 = vmax.f32 %v4500, %v4508
    %v4511 = vmax.f32 %v4501, %v4509
    %4512 = vrot.lane.b32.xlu0 %v4500, 112
    %v4513 = vpop.permute.xlu0 %4512
    %4514 = vrot.lane.b32.xlu0 %v4501, 112
    %v4515 = vpop.permute.xlu0 %4514
    %v4516 = vsel %vm129, %v4513, %v4515
    %v4517 = vsel %vm129, %v4515, %v4513
    %v4518 = vsel %vm50, -1e+30, %v4516
    %v4519 = vsel %vm51, -1e+30, %v4517
    %v4520 = vmax.f32 %v4510, %v4518
    %v4521 = vmax.f32 %v4511, %v4519
    %4522 = vrot.lane.b32.xlu0 %v4520, 1
    %v4523 = vpop.permute.xlu0 %4522
    %4524 = vrot.lane.b32.xlu0 %v4521, 1
    %v4525 = vpop.permute.xlu0 %4524
    %v4526 = vsel %vm95, %v4523, %v4525
    %v4527 = vsel %vm95, %v4525, %v4523
    %v4528 = vsel %vm64, -1e+30, %v4527
    %v4529 = vsel %vm65, -1e+30, %v4526
    %v4530 = vmax.f32 %v4520, %v4528
    %v4531 = vmax.f32 %v4521, %v4529
    %4532 = vrot.lane.b32.xlu0 %v4520, 127
    %v4533 = vpop.permute.xlu0 %4532
    %4534 = vrot.lane.b32.xlu0 %v4521, 127
    %v4535 = vpop.permute.xlu0 %4534
    %v4536 = vsel %vm104, %v4533, %v4535
    %v4537 = vsel %vm104, %v4535, %v4533
    %v4538 = vsel %vm78, -1e+30, %v4536
    %v4539 = vsel %vm79, -1e+30, %v4537
    %v4540 = vmax.f32 %v4530, %v4538
    %v4541 = vmax.f32 %v4531, %v4539
    %v4542 = vsub.f32 %v4540, %v23
    %v4543 = vsub.f32 %v4541, %v24
    %v4544 = vmul.f32 %v4260, %v4542
    %v4545 = vmul.f32 %v4261, %v4543
    %v4546 = vadd.f32 %v23, %v4544
    %v4547 = vadd.f32 %v24, %v4545
    %v4548 = vmax.f32 %v4500, %v4546
    %v4549 = vmax.f32 %v4501, %v4547
    %4550 = vrot.lane.b32.xlu0 %v4548, 16
    %v4551 = vpop.permute.xlu0 %4550
    %4552 = vrot.lane.b32.xlu0 %v4549, 16
    %v4553 = vpop.permute.xlu0 %4552
    %v4554 = vsel %vm86, %v4551, %v4553
    %v4555 = vsel %vm86, %v4553, %v4551
    %v4556 = vsel %vm36, -1e+30, %v4555
    %v4557 = vsel %vm37, -1e+30, %v4554
    %v4558 = vmax.f32 %v4548, %v4556
    %v4559 = vmax.f32 %v4549, %v4557
    %4560 = vrot.lane.b32.xlu0 %v4548, 112
    %v4561 = vpop.permute.xlu0 %4560
    %4562 = vrot.lane.b32.xlu0 %v4549, 112
    %v4563 = vpop.permute.xlu0 %4562
    %v4564 = vsel %vm129, %v4561, %v4563
    %v4565 = vsel %vm129, %v4563, %v4561
    %v4566 = vsel %vm50, -1e+30, %v4564
    %v4567 = vsel %vm51, -1e+30, %v4565
    %v4568 = vmax.f32 %v4558, %v4566
    %v4569 = vmax.f32 %v4559, %v4567
    %4570 = vrot.lane.b32.xlu0 %v4568, 1
    %v4571 = vpop.permute.xlu0 %4570
    %4572 = vrot.lane.b32.xlu0 %v4569, 1
    %v4573 = vpop.permute.xlu0 %4572
    %v4574 = vsel %vm95, %v4571, %v4573
    %v4575 = vsel %vm95, %v4573, %v4571
    %v4576 = vsel %vm64, -1e+30, %v4575
    %v4577 = vsel %vm65, -1e+30, %v4574
    %v4578 = vmax.f32 %v4568, %v4576
    %v4579 = vmax.f32 %v4569, %v4577
    %4580 = vrot.lane.b32.xlu0 %v4568, 127
    %v4581 = vpop.permute.xlu0 %4580
    %4582 = vrot.lane.b32.xlu0 %v4569, 127
    %v4583 = vpop.permute.xlu0 %4582
    %v4584 = vsel %vm104, %v4581, %v4583
    %v4585 = vsel %vm104, %v4583, %v4581
    %v4586 = vsel %vm78, -1e+30, %v4584
    %v4587 = vsel %vm79, -1e+30, %v4585
    %v4588 = vmax.f32 %v4578, %v4586
    %v4589 = vmax.f32 %v4579, %v4587
    %v4590 = vsub.f32 %v4588, %v23
    %v4591 = vsub.f32 %v4589, %v24
    %v4592 = vmul.f32 %v4260, %v4590
    %v4593 = vmul.f32 %v4261, %v4591
    %v4594 = vadd.f32 %v23, %v4592
    %v4595 = vadd.f32 %v24, %v4593
    %v4596 = vmax.f32 %v4548, %v4594
    %v4597 = vmax.f32 %v4549, %v4595
    %4598 = vrot.lane.b32.xlu0 %v4596, 16
    %v4599 = vpop.permute.xlu0 %4598
    %4600 = vrot.lane.b32.xlu0 %v4597, 16
    %v4601 = vpop.permute.xlu0 %4600
    %v4602 = vsel %vm86, %v4599, %v4601
    %v4603 = vsel %vm86, %v4601, %v4599
    %v4604 = vsel %vm36, -1e+30, %v4603
    %v4605 = vsel %vm37, -1e+30, %v4602
    %v4606 = vmax.f32 %v4596, %v4604
    %v4607 = vmax.f32 %v4597, %v4605
    %4608 = vrot.lane.b32.xlu0 %v4596, 112
    %v4609 = vpop.permute.xlu0 %4608
    %4610 = vrot.lane.b32.xlu0 %v4597, 112
    %v4611 = vpop.permute.xlu0 %4610
    %v4612 = vsel %vm129, %v4609, %v4611
    %v4613 = vsel %vm129, %v4611, %v4609
    %v4614 = vsel %vm50, -1e+30, %v4612
    %v4615 = vsel %vm51, -1e+30, %v4613
    %v4616 = vmax.f32 %v4606, %v4614
    %v4617 = vmax.f32 %v4607, %v4615
    %4618 = vrot.lane.b32.xlu0 %v4616, 1
    %v4619 = vpop.permute.xlu0 %4618
    %4620 = vrot.lane.b32.xlu0 %v4617, 1
    %v4621 = vpop.permute.xlu0 %4620
    %v4622 = vsel %vm95, %v4619, %v4621
    %v4623 = vsel %vm95, %v4621, %v4619
    %v4624 = vsel %vm64, -1e+30, %v4623
    %v4625 = vsel %vm65, -1e+30, %v4622
    %v4626 = vmax.f32 %v4616, %v4624
    %v4627 = vmax.f32 %v4617, %v4625
    %4628 = vrot.lane.b32.xlu0 %v4616, 127
    %v4629 = vpop.permute.xlu0 %4628
    %4630 = vrot.lane.b32.xlu0 %v4617, 127
    %v4631 = vpop.permute.xlu0 %4630
    %v4632 = vsel %vm104, %v4629, %v4631
    %v4633 = vsel %vm104, %v4631, %v4629
    %v4634 = vsel %vm78, -1e+30, %v4632
    %v4635 = vsel %vm79, -1e+30, %v4633
    %v4636 = vmax.f32 %v4626, %v4634
    %v4637 = vmax.f32 %v4627, %v4635
    %v4638 = vsub.f32 %v4636, %v23
    %v4639 = vsub.f32 %v4637, %v24
    %v4640 = vmul.f32 %v4260, %v4638
    %v4641 = vmul.f32 %v4261, %v4639
    %v4642 = vadd.f32 %v23, %v4640
    %v4643 = vadd.f32 %v24, %v4641
    %v4644 = vmax.f32 %v4596, %v4642
    %v4645 = vmax.f32 %v4597, %v4643
    %vm4646 = vcmp.gt.f32.partialorder %v21, 0.49
    %vm4647 = vcmp.gt.f32.partialorder %v22, 0.49
    %v4648 = vsel %vm4646, %v4644, -1.0
    %v4649 = vsel %vm4647, %v4645, -1.0
    %4650 = vst [vmem:[#allocation4] sm:$0xff] %v4648
    %4651 = vst [vmem:[#allocation4 + $0x8] sm:$0xff] %v4649
    // Predicated region
    $region22: #{tpu_custom_call.1} parent=1 // pred_check
      _
    $region23: #{tpu_custom_call.1} parent=1 // pred_check_branch
      %4653 = sbr.rel (0) target = $region25
    $region24: #{tpu_custom_call.1} parent=1 // pred_region
      %s4655 = ssub.s32 256, 256
      %4656 = vsyncadd [#allocation5], %s4655
      %s4658 = sshll.u32 [#allocation4], 4
      %s4659 = int_to_ptr.vmem [resolvable:$true] %s4658
      %4661 = dma.vmem_to_hbm [thread:$0]  %s4659, 256, %s5, [#allocation5]
    $region25: #{tpu_custom_call.1} parent=1 // pred_fallthru
      _
    // Predicated region
    $region26: #{tpu_custom_call.1} parent=1 // pred_check
      _
    $region27: #{tpu_custom_call.1} parent=1 // pred_check_branch
      %4663 = sbr.rel (0) target = $region29
    $region28: #{tpu_custom_call.1} parent=1 // pred_region
      %4664 = dma.done [#allocation5], 256
    $region29: #{tpu_custom_call.1} parent=1 // pred_fallthru
      _
    %4665 = vsyncpa [#allocation5], 1

</llo_original>
